<compile_context>
chip_gen: v7x
topology: tpu7x:2x2x1
jax: 0.10.0
libtpu: 0.0.40
codegen_flags: <defaults>
</compile_context>

<pallas_src>
import jax
import jax.numpy as jnp
from jax import lax
from jax.experimental import pallas as pl
from jax.experimental.pallas import tpu as pltpu


def _op_bytes(tb, n_input, n_states, n_obs):
    """f32 bytes of the per-chunk scan/readout operators held in VMEM."""
    return 4 * (tb * n_input * tb * n_states       # W  (fused input->state scan)
                + tb * n_states * tb * n_obs       # block-diagonal C (readout)
                + n_states * tb * n_states         # P  (carry propagation)
                + tb * n_input * n_states          # W_last
                + tb * n_obs)                      # d row


def _pick_time_block(tm, n_input, n_states, n_obs, max_op_bytes):
    """Chunk length TB for the blocked parallel scan. Either the whole sequence
    (single chunk: blocks == full arrays, no (8,128) alignment needed) or the
    largest power-of-two multiple of 128 whose operators fit the VMEM budget."""
    if _op_bytes(tm, n_input, n_states, n_obs) <= max_op_bytes:
        return tm
    tb = 128
    while tb * 2 < tm and _op_bytes(tb * 2, n_input, n_states, n_obs) <= max_op_bytes:
        tb *= 2
    return tb


def _make_kernel(nonlinearity):
    def kernel(u_ref, x0_ref, w_ref, wlast_ref, p_ref, plast_ref, cb_ref, d_ref,
               xt_ref, yt_ref, xc):
        # Initialize the carried hidden state once, at the first chunk.
        @pl.when(pl.program_id(0) == 0)
        def _():
            xc[...] = x0_ref[...]

        xc_val = xc[...]          # (batch, S) state entering this chunk
        u_val = u_ref[...]        # (batch, TB*I) chunk inputs, time-major in lanes

        # All TB states of the chunk from two MXU matmuls (blocked parallel scan).
        x = (jnp.dot(xc_val, p_ref[...], preferred_element_type=jnp.float32)
             + jnp.dot(u_val, w_ref[...], preferred_element_type=jnp.float32))
        xt_ref[...] = x.astype(xt_ref.dtype)      # one lane-dense store per chunk

        # Carry x_TB for the next chunk: recomputed via dedicated last-column
        # operators (avoids an unaligned lane slice of x).
        xc[...] = (jnp.dot(xc_val, plast_ref[...], preferred_element_type=jnp.float32)
                   + jnp.dot(u_val, wlast_ref[...], preferred_element_type=jnp.float32))

        # Readout y_t = f(x_t @ C + d) for the whole chunk, computed from the
        # full-precision f32 value of x (not the downcast output ref).
        y = jnp.dot(x, cb_ref[...], preferred_element_type=jnp.float32) + d_ref[...]
        if nonlinearity == "tanh":
            y = jnp.tanh(y)
        elif nonlinearity == "relu":
            y = jnp.maximum(y, 0.0)
        elif nonlinearity == "logsigmoid":
            y = jnp.minimum(y, 0.0) - jnp.log1p(jnp.exp(-jnp.abs(y)))
        yt_ref[...] = y.astype(yt_ref.dtype)

    return kernel


def lnds_forward(u, x0, A, B, C, d, dt=0.1, nonlinearity=None,
                 max_operator_bytes=12 << 20, out_dtype=jnp.float32):
    """u: (tm, batch, n_input); x0: (1, batch, n_states). Returns (xt, yt)."""
    tm, batch, n_input = u.shape
    n_states = A.shape[0]
    n_obs = C.shape[1]
    if nonlinearity not in (None, "tanh", "relu", "logsigmoid"):
        raise ValueError(f"unsupported nonlinearity: {nonlinearity!r}")

    f32 = jnp.float32
    hp = lax.Precision.HIGHEST

    # Fold dt into the weights once:  x_t = x_{t-1} @ M + u_t @ Bp.
    M = jnp.eye(n_states, dtype=f32) + dt * A.astype(f32)
    Bp = (dt * B).astype(f32)
    Cf = C.astype(f32)
    df = d.astype(f32).reshape(1, n_obs)

    TB = _pick_time_block(tm, n_input, n_states, n_obs, max_operator_bytes)
    num_chunks = -(-tm // TB)
    tm_pad = num_chunks * TB

    # ---- operator construction (wrapper-side XLA, once per trace) ----
    def _mpow_step(c, _):
        c2 = jnp.matmul(c, M, precision=hp)
        return c2, c2

    eye_s = jnp.eye(n_states, dtype=f32)
    _, mp_tail = lax.scan(_mpow_step, eye_s, None, length=TB)       # M^1 .. M^TB
    Mp = jnp.concatenate([eye_s[None], mp_tail], axis=0)            # (TB+1, S, S)

    BpM = jnp.einsum("ij,kjl->kil", Bp, Mp[:TB], precision=hp)      # Bp @ M^k

    idx = jnp.arange(TB)
    diff = idx[None, :] - idx[:, None]                              # diff[s,t] = t - s
    Wb = jnp.where((diff >= 0)[:, :, None, None],
                   BpM[jnp.clip(diff, 0, TB - 1)], 0.0)             # (TB, TB, I, S)
    W = Wb.transpose(0, 2, 1, 3).reshape(TB * n_input, TB * n_states)
    W_last = W[:, (TB - 1) * n_states:]                             # (TB*I, S)

    P = Mp[1:].transpose(1, 0, 2).reshape(n_states, TB * n_states)  # (S, TB*S)
    P_last = Mp[TB]                                                 # (S, S) = M^TB

    Cblk = jnp.kron(jnp.eye(TB, dtype=f32), Cf)                     # (TB*S, TB*O)
    d_row = jnp.tile(df, (1, TB))                                   # (1, TB*O)

    # ---- lane-dense data layout: batch rows, (time x feature) in lanes ----
    u_pad = u.astype(f32)
    if tm_pad != tm:
        u_pad = jnp.concatenate(
            [u_pad, jnp.zeros((tm_pad - tm, batch, n_input), f32)], axis=0)
    u_flat = u_pad.transpose(1, 0, 2).reshape(batch, tm_pad * n_input)
    x0_2d = x0.astype(f32).reshape(batch, n_states)

    R_in, R_x, R_y = TB * n_input, TB * n_states, TB * n_obs

    grid_spec = pltpu.PrefetchScalarGridSpec(
        num_scalar_prefetch=0,
        grid=(num_chunks,),
        in_specs=[
            pl.BlockSpec((batch, R_in), lambda c: (0, c)),             # u chunk
            pl.BlockSpec((batch, n_states), lambda c: (0, 0)),         # x0
            pl.BlockSpec((TB * n_input, R_x), lambda c: (0, 0)),       # W
            pl.BlockSpec((TB * n_input, n_states), lambda c: (0, 0)),  # W_last
            pl.BlockSpec((n_states, R_x), lambda c: (0, 0)),           # P
            pl.BlockSpec((n_states, n_states), lambda c: (0, 0)),      # P_last = M^TB
            pl.BlockSpec((R_x, R_y), lambda c: (0, 0)),                # kron(I, C)
            pl.BlockSpec((1, R_y), lambda c: (0, 0)),                  # d tiled
        ],
        out_specs=[
            pl.BlockSpec((batch, R_x), lambda c: (0, c)),              # xt chunk
            pl.BlockSpec((batch, R_y), lambda c: (0, c)),              # yt chunk
        ],
        scratch_shapes=[pltpu.VMEM((batch, n_states), f32)],           # state carry
    )

    # VMEM budget: the constant operators dominate; everything else is tiny.
    op_bytes = _op_bytes(TB, n_input, n_states, n_obs)
    vmem_est = (2 * op_bytes
                + 2 * 4 * batch * (R_in + R_x + R_y)
                + 8 * batch * n_states)
    vmem_limit = None
    if vmem_est > 28 * 1024 * 1024:          # only raise when actually needed, and
        try:                                 # never past physical VMEM (v7x: 64 MiB)
            cap = pltpu.get_tpu_info().vmem_capacity_bytes - (8 << 20)
        except Exception:
            cap = 56 << 20
        vmem_limit = min(int(vmem_est * 1.25), cap)

    xt_flat, yt_flat = pl.pallas_call(
        _make_kernel(nonlinearity),
        out_shape=(
            jax.ShapeDtypeStruct((batch, tm_pad * n_states), out_dtype),
            jax.ShapeDtypeStruct((batch, tm_pad * n_obs), out_dtype),
        ),
        grid_spec=grid_spec,
        compiler_params=pltpu.CompilerParams(
            dimension_semantics=("arbitrary",),   # sequential cross-chunk carry
            vmem_limit_bytes=vmem_limit),
    )(u_flat, x0_2d, W, W_last, P, P_last, Cblk, d_row)

    xt = xt_flat.reshape(batch, tm_pad, n_states).transpose(1, 0, 2)[:tm]
    yt = yt_flat.reshape(batch, tm_pad, n_obs).transpose(1, 0, 2)[:tm]
    return xt, yt


def lnds_reference(u, x0, A, B, C, d, dt=0.1, nonlinearity=None):
    """Plain-JAX reference (lax.scan) mirroring the PyTorch loop exactly."""
    hp = lax.Precision.HIGHEST
    nl = {None: (lambda z: z),
          "tanh": jnp.tanh,
          "relu": (lambda z: jnp.maximum(z, 0.0)),
          "logsigmoid": jax.nn.log_sigmoid}[nonlinearity]

    def step(x, u_t):
        x_new = x + dt * (jnp.matmul(x, A, precision=hp)
                          + jnp.matmul(u_t, B, precision=hp))
        y = nl(jnp.matmul(x_new, C, precision=hp) + d)
        return x_new, (x_new, y)

    _, (xt, yt) = lax.scan(step, x0.reshape(x0.shape[1], -1), u)
    return xt, yt


if __name__ == "__main__":
    # Module hyperparameters (LNDS defaults) at small shapes; tm is big enough to
    # exercise two time chunks and the cross-chunk carry (TB picks 256 here).
    n_states, n_input, n_obs = 3, 5, 3
    batch, tm = 2, 512
    A_sigma, B_sigma, C_sigma, x0_sigma, d_sigma = 0.1, 0.1, 0.1, 1.0, 0.1
    dt = 0.1

    key = jax.random.PRNGKey(0)
    kA, kB, kC, kx0, kd, ku = jax.random.split(key, 6)

    # Deterministic parameter init mirroring the torch __init__ logic.
    A = (A_sigma * jax.random.normal(kA, (n_states, n_states), jnp.float32)
         - jnp.eye(n_states, dtype=jnp.float32))
    B = B_sigma * jax.random.normal(kB, (n_input, n_states), jnp.float32)
    C = C_sigma * jax.random.normal(kC, (n_states, n_obs), jnp.float32)
    x0 = x0_sigma * jax.random.normal(kx0, (1, batch, n_states), jnp.float32)
    d = d_sigma * jax.random.normal(kd, (1, n_obs), jnp.float32)
    u = jax.random.normal(ku, (tm, batch, n_input), jnp.float32)

    fwd = jax.jit(lambda *args: lnds_forward(*args, dt=dt, nonlinearity=None))
    xt, yt = fwd(u, x0, A, B, C, d)
    xt, yt = jax.block_until_ready((xt, yt))

    ref = jax.jit(lambda *args: lnds_reference(*args, dt=dt, nonlinearity=None))
    xt_r, yt_r = jax.block_until_ready(ref(u, x0, A, B, C, d))

    assert xt.shape == (tm, batch, n_states) and yt.shape == (tm, batch, n_obs)
    # Tolerance covers MXU pass-precision rounding of the long (TB*I)-term sums in
    # the parallel-scan matmul; a layout/semantics bug would show as O(0.1) errors.
    assert jnp.allclose(xt, xt_r, atol=3e-3, rtol=3e-3), \
        float(jnp.max(jnp.abs(xt - xt_r)))
    assert jnp.allclose(yt, yt_r, atol=3e-3, rtol=3e-3), \
        float(jnp.max(jnp.abs(yt - yt_r)))

    print("KERNEL_OK")
</pallas_src>

<mosaic_0001>
module attributes {stable_mosaic.version = 11 : i64} {
  func.func @kernel(%arg0: i32, %arg1: memref<2x1280xf32, #tpu.memory_space<vmem>>, %arg2: memref<2x3xf32, #tpu.memory_space<vmem>>, %arg3: memref<1280x768xf32, #tpu.memory_space<vmem>>, %arg4: memref<1280x3xf32, #tpu.memory_space<vmem>>, %arg5: memref<3x768xf32, #tpu.memory_space<vmem>>, %arg6: memref<3x3xf32, #tpu.memory_space<vmem>>, %arg7: memref<768x768xf32, #tpu.memory_space<vmem>>, %arg8: memref<1x768xf32, #tpu.memory_space<vmem>>, %arg9: memref<2x768xf32, #tpu.memory_space<vmem>>, %arg10: memref<2x768xf32, #tpu.memory_space<vmem>>, %arg11: memref<2x3xf32, #tpu.memory_space<vmem>>) attributes {dimension_semantics = [#tpu.dimension_semantics<arbitrary>], iteration_bounds = array<i64: 2>, scalar_prefetch = 0 : i64, scratch_operands = 1 : i64, tpu.core_type = #tpu.core_type<tc>, window_params = [{transform_indices = @transform_0, window_bounds = array<i64: 2, 1280>}, {pipeline_mode = #tpu.pipeline_mode<synchronous>, transform_indices = @transform_1, window_bounds = array<i64: 2, 3>}, {pipeline_mode = #tpu.pipeline_mode<synchronous>, transform_indices = @transform_2, window_bounds = array<i64: 1280, 768>}, {pipeline_mode = #tpu.pipeline_mode<synchronous>, transform_indices = @transform_3, window_bounds = array<i64: 1280, 3>}, {pipeline_mode = #tpu.pipeline_mode<synchronous>, transform_indices = @transform_4, window_bounds = array<i64: 3, 768>}, {pipeline_mode = #tpu.pipeline_mode<synchronous>, transform_indices = @transform_5, window_bounds = array<i64: 3, 3>}, {pipeline_mode = #tpu.pipeline_mode<synchronous>, transform_indices = @transform_6, window_bounds = array<i64: 768, 768>}, {pipeline_mode = #tpu.pipeline_mode<synchronous>, transform_indices = @transform_7, window_bounds = array<i64: 1, 768>}, {transform_indices = @transform_8, window_bounds = array<i64: 2, 768>}, {transform_indices = @transform_9, window_bounds = array<i64: 2, 768>}]} {
    %c0_i32 = arith.constant 0 : i32
    %0 = arith.cmpi eq, %arg0, %c0_i32 : i32
    %1 = arith.extui %0 : i1 to i32
    %c0_i32_0 = arith.constant 0 : i32
    %2 = arith.cmpi ne, %1, %c0_i32_0 : i32
    scf.if %2 {
      %c0_26 = arith.constant 0 : index
      %c0_27 = arith.constant 0 : index
      %23 = vector.load %arg2[%c0_26, %c0_27] : memref<2x3xf32, #tpu.memory_space<vmem>>, vector<2x3xf32>
      %c0_28 = arith.constant 0 : index
      %c0_29 = arith.constant 0 : index
      %24 = vector.load %arg11[%c0_28, %c0_29] : memref<2x3xf32, #tpu.memory_space<vmem>>, vector<2x3xf32>
      tpu.vector_store %arg11[%c0_28, %c0_29], %23 {strides = array<i32>} : memref<2x3xf32, #tpu.memory_space<vmem>>, vector<2x3xf32>,
    } else {
    }
    %c0 = arith.constant 0 : index
    %c0_1 = arith.constant 0 : index
    %3 = vector.load %arg11[%c0, %c0_1] : memref<2x3xf32, #tpu.memory_space<vmem>>, vector<2x3xf32>
    %c0_2 = arith.constant 0 : index
    %c0_3 = arith.constant 0 : index
    %4 = vector.load %arg1[%c0_2, %c0_3] : memref<2x1280xf32, #tpu.memory_space<vmem>>, vector<2x1280xf32>
    %c0_4 = arith.constant 0 : index
    %c0_5 = arith.constant 0 : index
    %5 = vector.load %arg5[%c0_4, %c0_5] : memref<3x768xf32, #tpu.memory_space<vmem>>, vector<3x768xf32>
    %cst = arith.constant dense<0.000000e+00> : vector<2x768xf32>
    %6 = tpu.matmul %3, %5, %cst {dimension_numbers = #tpu.dot_dimension_numbers<[1], [0], [0], [1], [0, 0, 1, 1], [], []>} : vector<2x3xf32>, vector<3x768xf32>, vector<2x768xf32> -> vector<2x768xf32>
    %c0_6 = arith.constant 0 : index
    %c0_7 = arith.constant 0 : index
    %7 = vector.load %arg3[%c0_6, %c0_7] : memref<1280x768xf32, #tpu.memory_space<vmem>>, vector<1280x768xf32>
    %cst_8 = arith.constant dense<0.000000e+00> : vector<2x768xf32>
    %8 = tpu.matmul %4, %7, %cst_8 {dimension_numbers = #tpu.dot_dimension_numbers<[1], [0], [0], [1], [0, 0, 1, 1], [], []>} : vector<2x1280xf32>, vector<1280x768xf32>, vector<2x768xf32> -> vector<2x768xf32>
    %9 = arith.addf %6, %8 : vector<2x768xf32>
    %c0_9 = arith.constant 0 : index
    %c0_10 = arith.constant 0 : index
    %10 = vector.load %arg9[%c0_9, %c0_10] : memref<2x768xf32, #tpu.memory_space<vmem>>, vector<2x768xf32>
    tpu.vector_store %arg9[%c0_9, %c0_10], %9 {strides = array<i32>} : memref<2x768xf32, #tpu.memory_space<vmem>>, vector<2x768xf32>,
    %c0_11 = arith.constant 0 : index
    %c0_12 = arith.constant 0 : index
    %11 = vector.load %arg6[%c0_11, %c0_12] : memref<3x3xf32, #tpu.memory_space<vmem>>, vector<3x3xf32>
    %cst_13 = arith.constant dense<0.000000e+00> : vector<2x3xf32>
    %12 = tpu.matmul %3, %11, %cst_13 {dimension_numbers = #tpu.dot_dimension_numbers<[1], [0], [0], [1], [0, 0, 1, 1], [], []>} : vector<2x3xf32>, vector<3x3xf32>, vector<2x3xf32> -> vector<2x3xf32>
    %c0_14 = arith.constant 0 : index
    %c0_15 = arith.constant 0 : index
    %13 = vector.load %arg4[%c0_14, %c0_15] : memref<1280x3xf32, #tpu.memory_space<vmem>>, vector<1280x3xf32>
    %cst_16 = arith.constant dense<0.000000e+00> : vector<2x3xf32>
    %14 = tpu.matmul %4, %13, %cst_16 {dimension_numbers = #tpu.dot_dimension_numbers<[1], [0], [0], [1], [0, 0, 1, 1], [], []>} : vector<2x1280xf32>, vector<1280x3xf32>, vector<2x3xf32> -> vector<2x3xf32>
    %15 = arith.addf %12, %14 : vector<2x3xf32>
    %c0_17 = arith.constant 0 : index
    %c0_18 = arith.constant 0 : index
    %16 = vector.load %arg11[%c0_17, %c0_18] : memref<2x3xf32, #tpu.memory_space<vmem>>, vector<2x3xf32>
    tpu.vector_store %arg11[%c0_17, %c0_18], %15 {strides = array<i32>} : memref<2x3xf32, #tpu.memory_space<vmem>>, vector<2x3xf32>,
    %c0_19 = arith.constant 0 : index
    %c0_20 = arith.constant 0 : index
    %17 = vector.load %arg7[%c0_19, %c0_20] : memref<768x768xf32, #tpu.memory_space<vmem>>, vector<768x768xf32>
    %cst_21 = arith.constant dense<0.000000e+00> : vector<2x768xf32>
    %18 = tpu.matmul %9, %17, %cst_21 {dimension_numbers = #tpu.dot_dimension_numbers<[1], [0], [0], [1], [0, 0, 1, 1], [], []>} : vector<2x768xf32>, vector<768x768xf32>, vector<2x768xf32> -> vector<2x768xf32>
    %c0_22 = arith.constant 0 : index
    %c0_23 = arith.constant 0 : index
    %19 = vector.load %arg8[%c0_22, %c0_23] : memref<1x768xf32, #tpu.memory_space<vmem>>, vector<1x768xf32>
    %20 = vector.broadcast %19 : vector<1x768xf32> to vector<2x768xf32>
    %21 = arith.addf %18, %20 : vector<2x768xf32>
    %c0_24 = arith.constant 0 : index
    %c0_25 = arith.constant 0 : index
    %22 = vector.load %arg10[%c0_24, %c0_25] : memref<2x768xf32, #tpu.memory_space<vmem>>, vector<2x768xf32>
    tpu.vector_store %arg10[%c0_24, %c0_25], %21 {strides = array<i32>} : memref<2x768xf32, #tpu.memory_space<vmem>>, vector<2x768xf32>,
    return
  }
  func.func @transform_0(%arg0: i32) -> (i32, i32) {
    %c0_i32 = arith.constant 0 : i32
    %c0_i32_0 = arith.constant 0 : i32
    return %c0_i32, %arg0 : i32, i32
  }
  func.func @transform_1(%arg0: i32) -> (i32, i32) {
    %c0_i32 = arith.constant 0 : i32
    %c0_i32_0 = arith.constant 0 : i32
    %c0_i32_1 = arith.constant 0 : i32
    return %c0_i32, %c0_i32_0 : i32, i32
  }
  func.func @transform_2(%arg0: i32) -> (i32, i32) {
    %c0_i32 = arith.constant 0 : i32
    %c0_i32_0 = arith.constant 0 : i32
    %c0_i32_1 = arith.constant 0 : i32
    return %c0_i32, %c0_i32_0 : i32, i32
  }
  func.func @transform_3(%arg0: i32) -> (i32, i32) {
    %c0_i32 = arith.constant 0 : i32
    %c0_i32_0 = arith.constant 0 : i32
    %c0_i32_1 = arith.constant 0 : i32
    return %c0_i32, %c0_i32_0 : i32, i32
  }
  func.func @transform_4(%arg0: i32) -> (i32, i32) {
    %c0_i32 = arith.constant 0 : i32
    %c0_i32_0 = arith.constant 0 : i32
    %c0_i32_1 = arith.constant 0 : i32
    return %c0_i32, %c0_i32_0 : i32, i32
  }
  func.func @transform_5(%arg0: i32) -> (i32, i32) {
    %c0_i32 = arith.constant 0 : i32
    %c0_i32_0 = arith.constant 0 : i32
    %c0_i32_1 = arith.constant 0 : i32
    return %c0_i32, %c0_i32_0 : i32, i32
  }
  func.func @transform_6(%arg0: i32) -> (i32, i32) {
    %c0_i32 = arith.constant 0 : i32
    %c0_i32_0 = arith.constant 0 : i32
    %c0_i32_1 = arith.constant 0 : i32
    return %c0_i32, %c0_i32_0 : i32, i32
  }
  func.func @transform_7(%arg0: i32) -> (i32, i32) {
    %c0_i32 = arith.constant 0 : i32
    %c0_i32_0 = arith.constant 0 : i32
    %c0_i32_1 = arith.constant 0 : i32
    return %c0_i32, %c0_i32_0 : i32, i32
  }
  func.func @transform_8(%arg0: i32) -> (i32, i32) {
    %c0_i32 = arith.constant 0 : i32
    %c0_i32_0 = arith.constant 0 : i32
    return %c0_i32, %arg0 : i32, i32
  }
  func.func @transform_9(%arg0: i32) -> (i32, i32) {
    %c0_i32 = arith.constant 0 : i32
    %c0_i32_0 = arith.constant 0 : i32
    return %c0_i32, %arg0 : i32, i32
  }
}

</mosaic_0001>

<llo_original>
// kernel: custom-call.2
$region0: #{custom-call.2}
  %s0 = inlined_call_operand.vmem [shape: f32[256,3,3], index: 0, kind: output, shape index: {}]

// kernel: _lambda_.1
$region0: #{_lambda_.1}
  #allocation0 [shape = 'u32[]', space=smem, size = 0x4, offset = 0x4, fixed_abs, tag = 'smem constant byte address 0x4 - core index']
  #allocation1 [shape = 'u32[144,128]{1,0:T(1,128)}', space=vmem, size = 0x12000, scoped, tag = 'internal scratch']
  #allocation2 [shape = 'f32[2,3]{1,0:T(2,128)}', space=vmem, size = 0x400, scoped, tag = 'scratch operand']
  %s0 = inlined_call_operand.vmem [shape: f32[2,2560], index: 0, kind: input, shape index: {}]
  %s1 = inlined_call_operand.vmem [shape: f32[2,3], index: 1, kind: input, shape index: {}]
  %s2 = inlined_call_operand.vmem [shape: f32[1280,768], index: 2, kind: input, shape index: {}]
  %s3 = inlined_call_operand.vmem [shape: f32[1280,3], index: 3, kind: input, shape index: {}]
  %s4 = inlined_call_operand.vmem [shape: f32[3,768], index: 4, kind: input, shape index: {}]
  %s5 = inlined_call_operand.vmem [shape: f32[3,3], index: 5, kind: input, shape index: {}]
  %s6 = inlined_call_operand.vmem [shape: f32[768,768], index: 6, kind: input, shape index: {}]
  %s7 = inlined_call_operand.vmem [shape: f32[1,768], index: 7, kind: input, shape index: {}]
  %s8 = inlined_call_operand.vmem [shape: f32[2,1536], index: 8, kind: output, shape index: {0}]
  %s9 = inlined_call_operand.vmem [shape: f32[2,1536], index: 9, kind: output, shape index: {1}]
  %10 = xla_tuple %s8, %s9
  %s11 = sld [smem:[#allocation0]]
  $region77: #{_lambda_.1} parent=0
    _
  %s13 = ssub.s32 1, %s11
  %s14 = scalar_select 0, %s13, %s11
  loop: start=0, step=1, limit=4
  $region2: #{_lambda_.1} parent=0 // loop_pre_header
    _
  $region3: #{_lambda_.1} parent=0 // loop_header
    %s16 = sphi 0, %s20
    %p17 = scmp.ge.s32.totalorder %s16, 4
    %s26 = sphi 0, %s28
    %s29 = sphi 0, %s26
    %s30 = sphi 0, %s29
    %s46 = sphi 0, %s30
    %s50 = sphi 0, %s50
    %s52 = sphi 0, %s50
    %s53 = sphi 0, %s52
    %s67 = sphi 0, %s53
    %s71 = sphi 0, %s71
    %s73 = sphi 0, %s71
    %s74 = sphi 0, %s73
    %s88 = sphi 0, %s74
    %s92 = sphi 0, %s92
    %s94 = sphi 0, %s92
    %s95 = sphi 0, %s94
    %s109 = sphi 0, %s95
    %s113 = sphi 0, %s113
    %s115 = sphi 0, %s113
    %s116 = sphi 0, %s115
    %s130 = sphi 0, %s116
    %s134 = sphi 0, %s134
    %s136 = sphi 0, %s134
    %s137 = sphi 0, %s136
    %s151 = sphi 0, %s137
    %s155 = sphi 0, %s155
    %s157 = sphi 0, %s155
    %s158 = sphi 0, %s157
    %s172 = sphi 0, %s158
    %s176 = sphi 0, %s176
    %s178 = sphi 0, %s176
    %s179 = sphi 0, %s178
    %s193 = sphi 0, %s179
    %s199 = sphi 0, %s201
    %s202 = sphi 0, %s199
    %s203 = sphi 0, %s202
    %s219 = sphi 0, %s203
    %s225 = sphi 0, %s227
    %s228 = sphi 0, %s225
    %s229 = sphi 0, %s228
    %s245 = sphi 0, %s229
  $region4: #{_lambda_.1} parent=0 // loop_header_branch
    %19 = sbr.rel (%p17) target = $region8
  $region5: #{_lambda_.1} parent=0 // loop_body
    %s21 = ssub.s32 %s16, 1
    %s22 = ssub.s32 %s16, 2
    %s23 = sadd.s32 %s16, 1
    %s24 = ssub.s32 %s16, %s23
    %p25 = scmp.eq.s32.totalorder %s24, 0
    %s27 = sadd.s32 %s26, 1
    %s28 = scalar_select %p25, %s26, %s27
    %p31 = pneg %p25
    %p32 = scmp.eq.s32.totalorder %s16, 1
    %p33 = por %p31, %p32
    %p34 = scmp.ne.s32.totalorder %s26, %s29
    %p35 = scmp.eq.s32.totalorder %s16, 0
    %p36 = por %p34, %p35
    %p37 = scmp.ne.s32.totalorder %s26, %s29
    %p38 = scmp.eq.s32.totalorder %s21, 1
    %p39 = por %p37, %p38
    %p40 = scmp.ne.s32.totalorder %s29, %s30
    %p41 = scmp.eq.s32.totalorder %s21, 0
    %p42 = por %p40, %p41
    %p43 = scmp.ne.s32.totalorder %s29, %s30
    %p44 = scmp.eq.s32.totalorder %s22, 1
    %p45 = por %p43, %p44
    %p47 = scmp.ne.s32.totalorder %s30, %s46
    %p48 = scmp.eq.s32.totalorder %s22, 0
    %p49 = por %p47, %p48
    %s51 = sadd.s32 %s50, 1
    %p54 = scmp.eq.s32.totalorder %s16, 1
    %p55 = scmp.ne.s32.totalorder %s50, %s52
    %p56 = scmp.eq.s32.totalorder %s16, 0
    %p57 = por %p55, %p56
    %p58 = scmp.ne.s32.totalorder %s50, %s52
    %p59 = scmp.eq.s32.totalorder %s21, 1
    %p60 = por %p58, %p59
    %p61 = scmp.ne.s32.totalorder %s52, %s53
    %p62 = scmp.eq.s32.totalorder %s21, 0
    %p63 = por %p61, %p62
    %p64 = scmp.ne.s32.totalorder %s52, %s53
    %p65 = scmp.eq.s32.totalorder %s22, 1
    %p66 = por %p64, %p65
    %p68 = scmp.ne.s32.totalorder %s53, %s67
    %p69 = scmp.eq.s32.totalorder %s22, 0
    %p70 = por %p68, %p69
    %s72 = sadd.s32 %s71, 1
    %p75 = scmp.eq.s32.totalorder %s16, 1
    %p76 = scmp.ne.s32.totalorder %s71, %s73
    %p77 = scmp.eq.s32.totalorder %s16, 0
    %p78 = por %p76, %p77
    %p79 = scmp.ne.s32.totalorder %s71, %s73
    %p80 = scmp.eq.s32.totalorder %s21, 1
    %p81 = por %p79, %p80
    %p82 = scmp.ne.s32.totalorder %s73, %s74
    %p83 = scmp.eq.s32.totalorder %s21, 0
    %p84 = por %p82, %p83
    %p85 = scmp.ne.s32.totalorder %s73, %s74
    %p86 = scmp.eq.s32.totalorder %s22, 1
    %p87 = por %p85, %p86
    %p89 = scmp.ne.s32.totalorder %s74, %s88
    %p90 = scmp.eq.s32.totalorder %s22, 0
    %p91 = por %p89, %p90
    %s93 = sadd.s32 %s92, 1
    %p96 = scmp.eq.s32.totalorder %s16, 1
    %p97 = scmp.ne.s32.totalorder %s92, %s94
    %p98 = scmp.eq.s32.totalorder %s16, 0
    %p99 = por %p97, %p98
    %p100 = scmp.ne.s32.totalorder %s92, %s94
    %p101 = scmp.eq.s32.totalorder %s21, 1
    %p102 = por %p100, %p101
    %p103 = scmp.ne.s32.totalorder %s94, %s95
    %p104 = scmp.eq.s32.totalorder %s21, 0
    %p105 = por %p103, %p104
    %p106 = scmp.ne.s32.totalorder %s94, %s95
    %p107 = scmp.eq.s32.totalorder %s22, 1
    %p108 = por %p106, %p107
    %p110 = scmp.ne.s32.totalorder %s95, %s109
    %p111 = scmp.eq.s32.totalorder %s22, 0
    %p112 = por %p110, %p111
    %s114 = sadd.s32 %s113, 1
    %p117 = scmp.eq.s32.totalorder %s16, 1
    %p118 = scmp.ne.s32.totalorder %s113, %s115
    %p119 = scmp.eq.s32.totalorder %s16, 0
    %p120 = por %p118, %p119
    %p121 = scmp.ne.s32.totalorder %s113, %s115
    %p122 = scmp.eq.s32.totalorder %s21, 1
    %p123 = por %p121, %p122
    %p124 = scmp.ne.s32.totalorder %s115, %s116
    %p125 = scmp.eq.s32.totalorder %s21, 0
    %p126 = por %p124, %p125
    %p127 = scmp.ne.s32.totalorder %s115, %s116
    %p128 = scmp.eq.s32.totalorder %s22, 1
    %p129 = por %p127, %p128
    %p131 = scmp.ne.s32.totalorder %s116, %s130
    %p132 = scmp.eq.s32.totalorder %s22, 0
    %p133 = por %p131, %p132
    %s135 = sadd.s32 %s134, 1
    %p138 = scmp.eq.s32.totalorder %s16, 1
    %p139 = scmp.ne.s32.totalorder %s134, %s136
    %p140 = scmp.eq.s32.totalorder %s16, 0
    %p141 = por %p139, %p140
    %p142 = scmp.ne.s32.totalorder %s134, %s136
    %p143 = scmp.eq.s32.totalorder %s21, 1
    %p144 = por %p142, %p143
    %p145 = scmp.ne.s32.totalorder %s136, %s137
    %p146 = scmp.eq.s32.totalorder %s21, 0
    %p147 = por %p145, %p146
    %p148 = scmp.ne.s32.totalorder %s136, %s137
    %p149 = scmp.eq.s32.totalorder %s22, 1
    %p150 = por %p148, %p149
    %p152 = scmp.ne.s32.totalorder %s137, %s151
    %p153 = scmp.eq.s32.totalorder %s22, 0
    %p154 = por %p152, %p153
    %s156 = sadd.s32 %s155, 1
    %p159 = scmp.eq.s32.totalorder %s16, 1
    %p160 = scmp.ne.s32.totalorder %s155, %s157
    %p161 = scmp.eq.s32.totalorder %s16, 0
    %p162 = por %p160, %p161
    %p163 = scmp.ne.s32.totalorder %s155, %s157
    %p164 = scmp.eq.s32.totalorder %s21, 1
    %p165 = por %p163, %p164
    %p166 = scmp.ne.s32.totalorder %s157, %s158
    %p167 = scmp.eq.s32.totalorder %s21, 0
    %p168 = por %p166, %p167
    %p169 = scmp.ne.s32.totalorder %s157, %s158
    %p170 = scmp.eq.s32.totalorder %s22, 1
    %p171 = por %p169, %p170
    %p173 = scmp.ne.s32.totalorder %s158, %s172
    %p174 = scmp.eq.s32.totalorder %s22, 0
    %p175 = por %p173, %p174
    %s177 = sadd.s32 %s176, 1
    %p180 = scmp.eq.s32.totalorder %s16, 1
    %p181 = scmp.ne.s32.totalorder %s176, %s178
    %p182 = scmp.eq.s32.totalorder %s16, 0
    %p183 = por %p181, %p182
    %p184 = scmp.ne.s32.totalorder %s176, %s178
    %p185 = scmp.eq.s32.totalorder %s21, 1
    %p186 = por %p184, %p185
    %p187 = scmp.ne.s32.totalorder %s178, %s179
    %p188 = scmp.eq.s32.totalorder %s21, 0
    %p189 = por %p187, %p188
    %p190 = scmp.ne.s32.totalorder %s178, %s179
    %p191 = scmp.eq.s32.totalorder %s22, 1
    %p192 = por %p190, %p191
    %p194 = scmp.ne.s32.totalorder %s179, %s193
    %p195 = scmp.eq.s32.totalorder %s22, 0
    %p196 = por %p194, %p195
    %s197 = ssub.s32 %s16, %s23
    %p198 = scmp.eq.s32.totalorder %s197, 0
    %s200 = sadd.s32 %s199, 1
    %s201 = scalar_select %p198, %s199, %s200
    %p204 = pneg %p198
    %p205 = scmp.eq.s32.totalorder %s16, 1
    %p206 = por %p204, %p205
    %p207 = scmp.ne.s32.totalorder %s199, %s202
    %p208 = scmp.eq.s32.totalorder %s16, 0
    %p209 = por %p207, %p208
    %p210 = scmp.ne.s32.totalorder %s199, %s202
    %p211 = scmp.eq.s32.totalorder %s21, 1
    %p212 = por %p210, %p211
    %p213 = scmp.ne.s32.totalorder %s202, %s203
    %p214 = scmp.eq.s32.totalorder %s21, 0
    %p215 = por %p213, %p214
    %p216 = scmp.ne.s32.totalorder %s202, %s203
    %p217 = scmp.eq.s32.totalorder %s22, 1
    %p218 = por %p216, %p217
    %p220 = scmp.ne.s32.totalorder %s203, %s219
    %p221 = scmp.eq.s32.totalorder %s22, 0
    %p222 = por %p220, %p221
    %s223 = ssub.s32 %s16, %s23
    %p224 = scmp.eq.s32.totalorder %s223, 0
    %s226 = sadd.s32 %s225, 1
    %s227 = scalar_select %p224, %s225, %s226
    %p230 = pneg %p224
    %p231 = scmp.eq.s32.totalorder %s16, 1
    %p232 = por %p230, %p231
    %p233 = scmp.ne.s32.totalorder %s225, %s228
    %p234 = scmp.eq.s32.totalorder %s16, 0
    %p235 = por %p233, %p234
    %p236 = scmp.ne.s32.totalorder %s225, %s228
    %p237 = scmp.eq.s32.totalorder %s21, 1
    %p238 = por %p236, %p237
    %p239 = scmp.ne.s32.totalorder %s228, %s229
    %p240 = scmp.eq.s32.totalorder %s21, 0
    %p241 = por %p239, %p240
    %p242 = scmp.ne.s32.totalorder %s228, %s229
    %p243 = scmp.eq.s32.totalorder %s22, 1
    %p244 = por %p242, %p243
    %p246 = scmp.ne.s32.totalorder %s229, %s245
    %p247 = scmp.eq.s32.totalorder %s22, 0
    %p248 = por %p246, %p247
    %p249 = scmp.le.s32.totalorder 1, %s16
    %p250 = scmp.lt.s32.totalorder %s16, 3
    %p251 = pnand %p249, %p250
    %p252 = pneg %p251
    // Predicated region
    $region9: #{_lambda_.1} parent=5 // pred_check
      _
    $region10: #{_lambda_.1} parent=5 // pred_check_branch
      %254 = sbr.rel (%p251) target = $region12
    $region11: #{_lambda_.1} parent=5 // pred_region
      %s255 = ssub.s32 %s16, 1
      // Predicated region
      $region13: #{_lambda_.1} parent=11 // pred_check
        %p256 = pneg %p63
      $region14: #{_lambda_.1} parent=11 // pred_check_branch
        %258 = sbr.rel (%p256) target = $region16
      $region15: #{_lambda_.1} parent=11 // pred_region
        _
      $region16: #{_lambda_.1} parent=11 // pred_fallthru
        _
      // Predicated region
      $region17: #{_lambda_.1} parent=11 // pred_check
        %p259 = pneg %p84
      $region18: #{_lambda_.1} parent=11 // pred_check_branch
        %261 = sbr.rel (%p259) target = $region20
      $region19: #{_lambda_.1} parent=11 // pred_region
        _
      $region20: #{_lambda_.1} parent=11 // pred_fallthru
        _
      // Predicated region
      $region21: #{_lambda_.1} parent=11 // pred_check
        %p262 = pneg %p105
      $region22: #{_lambda_.1} parent=11 // pred_check_branch
        %264 = sbr.rel (%p262) target = $region24
      $region23: #{_lambda_.1} parent=11 // pred_region
        _
      $region24: #{_lambda_.1} parent=11 // pred_fallthru
        _
      // Predicated region
      $region25: #{_lambda_.1} parent=11 // pred_check
        %p265 = pneg %p126
      $region26: #{_lambda_.1} parent=11 // pred_check_branch
        %267 = sbr.rel (%p265) target = $region28
      $region27: #{_lambda_.1} parent=11 // pred_region
        _
      $region28: #{_lambda_.1} parent=11 // pred_fallthru
        _
      // Predicated region
      $region29: #{_lambda_.1} parent=11 // pred_check
        %p268 = pneg %p147
      $region30: #{_lambda_.1} parent=11 // pred_check_branch
        %270 = sbr.rel (%p268) target = $region32
      $region31: #{_lambda_.1} parent=11 // pred_region
        _
      $region32: #{_lambda_.1} parent=11 // pred_fallthru
        _
      // Predicated region
      $region33: #{_lambda_.1} parent=11 // pred_check
        %p271 = pneg %p168
      $region34: #{_lambda_.1} parent=11 // pred_check_branch
        %273 = sbr.rel (%p271) target = $region36
      $region35: #{_lambda_.1} parent=11 // pred_region
        _
      $region36: #{_lambda_.1} parent=11 // pred_fallthru
        _
      // Predicated region
      $region37: #{_lambda_.1} parent=11 // pred_check
        %p274 = pneg %p189
      $region38: #{_lambda_.1} parent=11 // pred_check_branch
        %276 = sbr.rel (%p274) target = $region40
      $region39: #{_lambda_.1} parent=11 // pred_region
        _
      $region40: #{_lambda_.1} parent=11 // pred_fallthru
        _
    $region12: #{_lambda_.1} parent=5 // pred_fallthru
      _
    %p277 = scmp.lt.s32.totalorder %s16, 2
    // Predicated region
    $region41: #{_lambda_.1} parent=5 // pred_check
      %p278 = pneg %p277
    $region42: #{_lambda_.1} parent=5 // pred_check_branch
      %280 = sbr.rel (%p278) target = $region44
    $region43: #{_lambda_.1} parent=5 // pred_region
      // Predicated region
      $region45: #{_lambda_.1} parent=43 // pred_check
        %p281 = pneg %p36
      $region46: #{_lambda_.1} parent=43 // pred_check_branch
        %283 = sbr.rel (%p281) target = $region48
      $region47: #{_lambda_.1} parent=43 // pred_region
        %s284 = smul.u32 10, %s16
        %p285 = scmp.lt.s32.totalorder %s284, 19
        %s286 = scalar_select %p285, %s284, 19
        %s287 = smul.addr %s286, 2
        %s288 = scalar_lea.vmem %s0, %s287
        %s289 = smul.u32 10, %s16
      $region48: #{_lambda_.1} parent=43 // pred_fallthru
        _
    $region44: #{_lambda_.1} parent=5 // pred_fallthru
      _
    %p290 = scmp.le.s32.totalorder 1, %s16
    %p291 = scmp.lt.s32.totalorder %s16, 3
    %p292 = pnand %p290, %p291
    %p293 = pneg %p292
    // Predicated region
    $region49: #{_lambda_.1} parent=5 // pred_check
      _
    $region50: #{_lambda_.1} parent=5 // pred_check_branch
      %295 = sbr.rel (%p292) target = $region52
    $region51: #{_lambda_.1} parent=5 // pred_region
      %s296 = ssub.s32 %s16, 1
      %s297 = smul.u32 10, %s21
      %p298 = scmp.lt.s32.totalorder %s297, 19
      %s299 = scalar_select %p298, %s297, 19
      %s300 = smul.addr %s299, 2
      %s301 = scalar_lea.vmem %s0, %s300
      %p302 = pneg %p42
      %p303 = pneg %p39
      %p304 = pneg %p63
      %p305 = pneg %p60
      %p306 = pneg %p84
      %p307 = pneg %p81
      %p308 = pneg %p105
      %p309 = pneg %p102
      %p310 = pneg %p126
      %p311 = pneg %p123
      %p312 = pneg %p147
      %p313 = pneg %p144
      %p314 = pneg %p168
      %p315 = pneg %p165
      %p316 = pneg %p189
      %p317 = pneg %p186
      %p318 = pneg %p215
      %p319 = pneg %p212
      %s320 = smul.u32 6, %s21
      %p321 = scmp.lt.s32.totalorder %s320, 11
      %s322 = scalar_select %p321, %s320, 11
      %s323 = smul.addr %s322, 2
      %s324 = scalar_lea.vmem %s8, %s323
      %p325 = pneg %p241
      %p326 = pneg %p238
      %s327 = smul.u32 6, %s21
      %p328 = scmp.lt.s32.totalorder %s327, 11
      %s329 = scalar_select %p328, %s327, 11
      %s330 = smul.addr %s329, 2
      %s331 = scalar_lea.vmem %s9, %s330
      %s332 = smul.u32 10, %s21
      %p333 = scmp.lt.s32.totalorder %s332, 19
      %s334 = scalar_select %p333, %s332, 19
      %s335 = smul.addr %s334, 2
      %s336 = scalar_lea.vmem %s0, %s335
      %s337 = smul.u32 10, %s21
      %s338 = smul.u32 6, %s21
      %p339 = scmp.lt.s32.totalorder %s338, 11
      %s340 = scalar_select %p339, %s338, 11
      %s341 = smul.addr %s340, 2
      %s342 = scalar_lea.vmem %s8, %s341
      %s343 = smul.u32 6, %s21
      %s344 = smul.u32 6, %s21
      %p345 = scmp.lt.s32.totalorder %s344, 11
      %s346 = scalar_select %p345, %s344, 11
      %s347 = smul.addr %s346, 2
      %s348 = scalar_lea.vmem %s9, %s347
      %s349 = smul.u32 6, %s21
      %p350 = scmp.eq.s32.totalorder %s21, 0
      // Predicated region
      $region53: #{_lambda_.1} parent=51 // pred_check
        %p351 = pneg %p350
      $region54: #{_lambda_.1} parent=51 // pred_check_branch
        %353 = sbr.rel (%p351) target = $region56
      $region55: #{_lambda_.1} parent=51 // pred_region
        %v354 = vld [vmem:[%s1] sm:$0x3]
        %vm355 = vcmask 17408
        %356 = vst.msk [vmem:[#allocation2] sm:$0x3] %vm355, %v354
      $region56: #{_lambda_.1} parent=51 // pred_fallthru
        _
      %v357 = vld [vmem:[#allocation2] sm:$0x3]
      %v358 = vld [vmem:[%s336] sm:$0xff]
      %v359 = vld [vmem:[%s336 + $0x8] sm:$0xff]
      %v360 = vld [vmem:[%s336 + $0x10] sm:$0xf]
      %v361 = vld [vmem:[%s4] sm:$0x77]
      %v362 = vld [vmem:[%s4 + $0x8] sm:$0x77]
      %v363 = vld [vmem:[%s4 + $0x10] sm:$0x77]
      %v364 = vld [vmem:[%s2] sm:$0xff]
      %v365 = vld [vmem:[%s2 + $0x8] sm:$0xff]
      %v366 = vld [vmem:[%s2 + $0x10] sm:$0xff]
      %v367 = vld [vmem:[%s2 + $0x18] sm:$0xff]
      %v368 = vld [vmem:[%s2 + $0x20] sm:$0xff]
      %v369 = vld [vmem:[%s2 + $0x28] sm:$0xff]
      %v370 = vld [vmem:[%s2 + $0x30] sm:$0xff]
      %v371 = vld [vmem:[%s2 + $0x38] sm:$0xff]
      %v372 = vld [vmem:[%s2 + $0x40] sm:$0xff]
      %v373 = vld [vmem:[%s2 + $0x48] sm:$0xff]
      %v374 = vld [vmem:[%s2 + $0x50] sm:$0xff]
      %v375 = vld [vmem:[%s2 + $0x58] sm:$0xff]
      %v376 = vld [vmem:[%s2 + $0x60] sm:$0xff]
      %v377 = vld [vmem:[%s2 + $0x68] sm:$0xff]
      %v378 = vld [vmem:[%s2 + $0x70] sm:$0xff]
      %v379 = vld [vmem:[%s2 + $0x78] sm:$0xff]
      %v380 = vld [vmem:[%s2 + $0x80] sm:$0xff]
      %v381 = vld [vmem:[%s2 + $0x88] sm:$0xff]
      %v382 = vld [vmem:[%s2 + $0x90] sm:$0xff]
      %v383 = vld [vmem:[%s2 + $0x98] sm:$0xff]
      %v384 = vld [vmem:[%s2 + $0xa0] sm:$0xff]
      %v385 = vld [vmem:[%s2 + $0xa8] sm:$0xff]
      %v386 = vld [vmem:[%s2 + $0xb0] sm:$0xff]
      %v387 = vld [vmem:[%s2 + $0xb8] sm:$0xff]
      %v388 = vld [vmem:[%s2 + $0xc0] sm:$0xff]
      %v389 = vld [vmem:[%s2 + $0xc8] sm:$0xff]
      %v390 = vld [vmem:[%s2 + $0xd0] sm:$0xff]
      %v391 = vld [vmem:[%s2 + $0xd8] sm:$0xff]
      %v392 = vld [vmem:[%s2 + $0xe0] sm:$0xff]
      %v393 = vld [vmem:[%s2 + $0xe8] sm:$0xff]
      %v394 = vld [vmem:[%s2 + $0xf0] sm:$0xff]
      %v395 = vld [vmem:[%s2 + $0xf8] sm:$0xff]
      %v396 = vld [vmem:[%s2 + $0x100] sm:$0xff]
      %v397 = vld [vmem:[%s2 + $0x108] sm:$0xff]
      %v398 = vld [vmem:[%s2 + $0x110] sm:$0xff]
      %v399 = vld [vmem:[%s2 + $0x118] sm:$0xff]
      %v400 = vld [vmem:[%s2 + $0x120] sm:$0xff]
      %v401 = vld [vmem:[%s2 + $0x128] sm:$0xff]
      %v402 = vld [vmem:[%s2 + $0x130] sm:$0xff]
      %v403 = vld [vmem:[%s2 + $0x138] sm:$0xff]
      %v404 = vld [vmem:[%s2 + $0x140] sm:$0xff]
      %v405 = vld [vmem:[%s2 + $0x148] sm:$0xff]
      %v406 = vld [vmem:[%s2 + $0x150] sm:$0xff]
      %v407 = vld [vmem:[%s2 + $0x158] sm:$0xff]
      %v408 = vld [vmem:[%s2 + $0x160] sm:$0xff]
      %v409 = vld [vmem:[%s2 + $0x168] sm:$0xff]
      %v410 = vld [vmem:[%s2 + $0x170] sm:$0xff]
      %v411 = vld [vmem:[%s2 + $0x178] sm:$0xff]
      %v412 = vld [vmem:[%s2 + $0x180] sm:$0xff]
      %v413 = vld [vmem:[%s2 + $0x188] sm:$0xff]
      %v414 = vld [vmem:[%s2 + $0x190] sm:$0xff]
      %v415 = vld [vmem:[%s2 + $0x198] sm:$0xff]
      %v416 = vld [vmem:[%s2 + $0x1a0] sm:$0xff]
      %v417 = vld [vmem:[%s2 + $0x1a8] sm:$0xff]
      %v418 = vld [vmem:[%s2 + $0x1b0] sm:$0xff]
      %v419 = vld [vmem:[%s2 + $0x1b8] sm:$0xff]
      %v420 = vld [vmem:[%s2 + $0x1c0] sm:$0xff]
      %v421 = vld [vmem:[%s2 + $0x1c8] sm:$0xff]
      %v422 = vld [vmem:[%s2 + $0x1d0] sm:$0xff]
      %v423 = vld [vmem:[%s2 + $0x1d8] sm:$0xff]
      %v424 = vld [vmem:[%s2 + $0x1e0] sm:$0xff]
      %v425 = vld [vmem:[%s2 + $0x1e8] sm:$0xff]
      %v426 = vld [vmem:[%s2 + $0x1f0] sm:$0xff]
      %v427 = vld [vmem:[%s2 + $0x1f8] sm:$0xff]
      %v428 = vld [vmem:[%s2 + $0x200] sm:$0xff]
      %v429 = vld [vmem:[%s2 + $0x208] sm:$0xff]
      %v430 = vld [vmem:[%s2 + $0x210] sm:$0xff]
      %v431 = vld [vmem:[%s2 + $0x218] sm:$0xff]
      %v432 = vld [vmem:[%s2 + $0x220] sm:$0xff]
      %v433 = vld [vmem:[%s2 + $0x228] sm:$0xff]
      %v434 = vld [vmem:[%s2 + $0x230] sm:$0xff]
      %v435 = vld [vmem:[%s2 + $0x238] sm:$0xff]
      %v436 = vld [vmem:[%s2 + $0x240] sm:$0xff]
      %v437 = vld [vmem:[%s2 + $0x248] sm:$0xff]
      %v438 = vld [vmem:[%s2 + $0x250] sm:$0xff]
      %v439 = vld [vmem:[%s2 + $0x258] sm:$0xff]
      %v440 = vld [vmem:[%s2 + $0x260] sm:$0xff]
      %v441 = vld [vmem:[%s2 + $0x268] sm:$0xff]
      %v442 = vld [vmem:[%s2 + $0x270] sm:$0xff]
      %v443 = vld [vmem:[%s2 + $0x278] sm:$0xff]
      %v444 = vld [vmem:[%s2 + $0x280] sm:$0xff]
      %v445 = vld [vmem:[%s2 + $0x288] sm:$0xff]
      %v446 = vld [vmem:[%s2 + $0x290] sm:$0xff]
      %v447 = vld [vmem:[%s2 + $0x298] sm:$0xff]
      %v448 = vld [vmem:[%s2 + $0x2a0] sm:$0xff]
      %v449 = vld [vmem:[%s2 + $0x2a8] sm:$0xff]
      %v450 = vld [vmem:[%s2 + $0x2b0] sm:$0xff]
      %v451 = vld [vmem:[%s2 + $0x2b8] sm:$0xff]
      %v452 = vld [vmem:[%s2 + $0x2c0] sm:$0xff]
      %v453 = vld [vmem:[%s2 + $0x2c8] sm:$0xff]
      %v454 = vld [vmem:[%s2 + $0x2d0] sm:$0xff]
      %v455 = vld [vmem:[%s2 + $0x2d8] sm:$0xff]
      %v456 = vld [vmem:[%s2 + $0x2e0] sm:$0xff]
      %v457 = vld [vmem:[%s2 + $0x2e8] sm:$0xff]
      %v458 = vld [vmem:[%s2 + $0x2f0] sm:$0xff]
      %v459 = vld [vmem:[%s2 + $0x2f8] sm:$0xff]
      %v460 = vld [vmem:[%s2 + $0x300] sm:$0xff]
      %v461 = vld [vmem:[%s2 + $0x308] sm:$0xff]
      %v462 = vld [vmem:[%s2 + $0x310] sm:$0xff]
      %v463 = vld [vmem:[%s2 + $0x318] sm:$0xff]
      %v464 = vld [vmem:[%s2 + $0x320] sm:$0xff]
      %v465 = vld [vmem:[%s2 + $0x328] sm:$0xff]
      %v466 = vld [vmem:[%s2 + $0x330] sm:$0xff]
      %v467 = vld [vmem:[%s2 + $0x338] sm:$0xff]
      %v468 = vld [vmem:[%s2 + $0x340] sm:$0xff]
      %v469 = vld [vmem:[%s2 + $0x348] sm:$0xff]
      %v470 = vld [vmem:[%s2 + $0x350] sm:$0xff]
      %v471 = vld [vmem:[%s2 + $0x358] sm:$0xff]
      %v472 = vld [vmem:[%s2 + $0x360] sm:$0xff]
      %v473 = vld [vmem:[%s2 + $0x368] sm:$0xff]
      %v474 = vld [vmem:[%s2 + $0x370] sm:$0xff]
      %v475 = vld [vmem:[%s2 + $0x378] sm:$0xff]
      %v476 = vld [vmem:[%s2 + $0x380] sm:$0xff]
      %v477 = vld [vmem:[%s2 + $0x388] sm:$0xff]
      %v478 = vld [vmem:[%s2 + $0x390] sm:$0xff]
      %v479 = vld [vmem:[%s2 + $0x398] sm:$0xff]
      %v480 = vld [vmem:[%s2 + $0x3a0] sm:$0xff]
      %v481 = vld [vmem:[%s2 + $0x3a8] sm:$0xff]
      %v482 = vld [vmem:[%s2 + $0x3b0] sm:$0xff]
      %v483 = vld [vmem:[%s2 + $0x3b8] sm:$0xff]
      %v484 = vld [vmem:[%s2 + $0x3c0] sm:$0xff]
      %v485 = vld [vmem:[%s2 + $0x3c8] sm:$0xff]
      %v486 = vld [vmem:[%s2 + $0x3d0] sm:$0xff]
      %v487 = vld [vmem:[%s2 + $0x3d8] sm:$0xff]
      %v488 = vld [vmem:[%s2 + $0x3e0] sm:$0xff]
      %v489 = vld [vmem:[%s2 + $0x3e8] sm:$0xff]
      %v490 = vld [vmem:[%s2 + $0x3f0] sm:$0xff]
      %v491 = vld [vmem:[%s2 + $0x3f8] sm:$0xff]
      %v492 = vld [vmem:[%s2 + $0x400] sm:$0xff]
      %v493 = vld [vmem:[%s2 + $0x408] sm:$0xff]
      %v494 = vld [vmem:[%s2 + $0x410] sm:$0xff]
      %v495 = vld [vmem:[%s2 + $0x418] sm:$0xff]
      %v496 = vld [vmem:[%s2 + $0x420] sm:$0xff]
      %v497 = vld [vmem:[%s2 + $0x428] sm:$0xff]
      %v498 = vld [vmem:[%s2 + $0x430] sm:$0xff]
      %v499 = vld [vmem:[%s2 + $0x438] sm:$0xff]
      %v500 = vld [vmem:[%s2 + $0x440] sm:$0xff]
      %v501 = vld [vmem:[%s2 + $0x448] sm:$0xff]
      %v502 = vld [vmem:[%s2 + $0x450] sm:$0xff]
      %v503 = vld [vmem:[%s2 + $0x458] sm:$0xff]
      %v504 = vld [vmem:[%s2 + $0x460] sm:$0xff]
      %v505 = vld [vmem:[%s2 + $0x468] sm:$0xff]
      %v506 = vld [vmem:[%s2 + $0x470] sm:$0xff]
      %v507 = vld [vmem:[%s2 + $0x478] sm:$0xff]
      %v508 = vld [vmem:[%s2 + $0x480] sm:$0xff]
      %v509 = vld [vmem:[%s2 + $0x488] sm:$0xff]
      %v510 = vld [vmem:[%s2 + $0x490] sm:$0xff]
      %v511 = vld [vmem:[%s2 + $0x498] sm:$0xff]
      %v512 = vld [vmem:[%s2 + $0x4a0] sm:$0xff]
      %v513 = vld [vmem:[%s2 + $0x4a8] sm:$0xff]
      %v514 = vld [vmem:[%s2 + $0x4b0] sm:$0xff]
      %v515 = vld [vmem:[%s2 + $0x4b8] sm:$0xff]
      %v516 = vld [vmem:[%s2 + $0x4c0] sm:$0xff]
      %v517 = vld [vmem:[%s2 + $0x4c8] sm:$0xff]
      %v518 = vld [vmem:[%s2 + $0x4d0] sm:$0xff]
      %v519 = vld [vmem:[%s2 + $0x4d8] sm:$0xff]
      %v520 = vld [vmem:[%s2 + $0x4e0] sm:$0xff]
      %v521 = vld [vmem:[%s2 + $0x4e8] sm:$0xff]
      %v522 = vld [vmem:[%s2 + $0x4f0] sm:$0xff]
      %v523 = vld [vmem:[%s2 + $0x4f8] sm:$0xff]
      %v524 = vld [vmem:[%s2 + $0x500] sm:$0xff]
      %v525 = vld [vmem:[%s2 + $0x508] sm:$0xff]
      %v526 = vld [vmem:[%s2 + $0x510] sm:$0xff]
      %v527 = vld [vmem:[%s2 + $0x518] sm:$0xff]
      %v528 = vld [vmem:[%s2 + $0x520] sm:$0xff]
      %v529 = vld [vmem:[%s2 + $0x528] sm:$0xff]
      %v530 = vld [vmem:[%s2 + $0x530] sm:$0xff]
      %v531 = vld [vmem:[%s2 + $0x538] sm:$0xff]
      %v532 = vld [vmem:[%s2 + $0x540] sm:$0xff]
      %v533 = vld [vmem:[%s2 + $0x548] sm:$0xff]
      %v534 = vld [vmem:[%s2 + $0x550] sm:$0xff]
      %v535 = vld [vmem:[%s2 + $0x558] sm:$0xff]
      %v536 = vld [vmem:[%s2 + $0x560] sm:$0xff]
      %v537 = vld [vmem:[%s2 + $0x568] sm:$0xff]
      %v538 = vld [vmem:[%s2 + $0x570] sm:$0xff]
      %v539 = vld [vmem:[%s2 + $0x578] sm:$0xff]
      %v540 = vld [vmem:[%s2 + $0x580] sm:$0xff]
      %v541 = vld [vmem:[%s2 + $0x588] sm:$0xff]
      %v542 = vld [vmem:[%s2 + $0x590] sm:$0xff]
      %v543 = vld [vmem:[%s2 + $0x598] sm:$0xff]
      %v544 = vld [vmem:[%s2 + $0x5a0] sm:$0xff]
      %v545 = vld [vmem:[%s2 + $0x5a8] sm:$0xff]
      %v546 = vld [vmem:[%s2 + $0x5b0] sm:$0xff]
      %v547 = vld [vmem:[%s2 + $0x5b8] sm:$0xff]
      %v548 = vld [vmem:[%s2 + $0x5c0] sm:$0xff]
      %v549 = vld [vmem:[%s2 + $0x5c8] sm:$0xff]
      %v550 = vld [vmem:[%s2 + $0x5d0] sm:$0xff]
      %v551 = vld [vmem:[%s2 + $0x5d8] sm:$0xff]
      %v552 = vld [vmem:[%s2 + $0x5e0] sm:$0xff]
      %v553 = vld [vmem:[%s2 + $0x5e8] sm:$0xff]
      %v554 = vld [vmem:[%s2 + $0x5f0] sm:$0xff]
      %v555 = vld [vmem:[%s2 + $0x5f8] sm:$0xff]
      %v556 = vld [vmem:[%s2 + $0x600] sm:$0xff]
      %v557 = vld [vmem:[%s2 + $0x608] sm:$0xff]
      %v558 = vld [vmem:[%s2 + $0x610] sm:$0xff]
      %v559 = vld [vmem:[%s2 + $0x618] sm:$0xff]
      %v560 = vld [vmem:[%s2 + $0x620] sm:$0xff]
      %v561 = vld [vmem:[%s2 + $0x628] sm:$0xff]
      %v562 = vld [vmem:[%s2 + $0x630] sm:$0xff]
      %v563 = vld [vmem:[%s2 + $0x638] sm:$0xff]
      %v564 = vld [vmem:[%s2 + $0x640] sm:$0xff]
      %v565 = vld [vmem:[%s2 + $0x648] sm:$0xff]
      %v566 = vld [vmem:[%s2 + $0x650] sm:$0xff]
      %v567 = vld [vmem:[%s2 + $0x658] sm:$0xff]
      %v568 = vld [vmem:[%s2 + $0x660] sm:$0xff]
      %v569 = vld [vmem:[%s2 + $0x668] sm:$0xff]
      %v570 = vld [vmem:[%s2 + $0x670] sm:$0xff]
      %v571 = vld [vmem:[%s2 + $0x678] sm:$0xff]
      %v572 = vld [vmem:[%s2 + $0x680] sm:$0xff]
      %v573 = vld [vmem:[%s2 + $0x688] sm:$0xff]
      %v574 = vld [vmem:[%s2 + $0x690] sm:$0xff]
      %v575 = vld [vmem:[%s2 + $0x698] sm:$0xff]
      %v576 = vld [vmem:[%s2 + $0x6a0] sm:$0xff]
      %v577 = vld [vmem:[%s2 + $0x6a8] sm:$0xff]
      %v578 = vld [vmem:[%s2 + $0x6b0] sm:$0xff]
      %v579 = vld [vmem:[%s2 + $0x6b8] sm:$0xff]
      %v580 = vld [vmem:[%s2 + $0x6c0] sm:$0xff]
      %v581 = vld [vmem:[%s2 + $0x6c8] sm:$0xff]
      %v582 = vld [vmem:[%s2 + $0x6d0] sm:$0xff]
      %v583 = vld [vmem:[%s2 + $0x6d8] sm:$0xff]
      %v584 = vld [vmem:[%s2 + $0x6e0] sm:$0xff]
      %v585 = vld [vmem:[%s2 + $0x6e8] sm:$0xff]
      %v586 = vld [vmem:[%s2 + $0x6f0] sm:$0xff]
      %v587 = vld [vmem:[%s2 + $0x6f8] sm:$0xff]
      %v588 = vld [vmem:[%s2 + $0x700] sm:$0xff]
      %v589 = vld [vmem:[%s2 + $0x708] sm:$0xff]
      %v590 = vld [vmem:[%s2 + $0x710] sm:$0xff]
      %v591 = vld [vmem:[%s2 + $0x718] sm:$0xff]
      %v592 = vld [vmem:[%s2 + $0x720] sm:$0xff]
      %v593 = vld [vmem:[%s2 + $0x728] sm:$0xff]
      %v594 = vld [vmem:[%s2 + $0x730] sm:$0xff]
      %v595 = vld [vmem:[%s2 + $0x738] sm:$0xff]
      %v596 = vld [vmem:[%s2 + $0x740] sm:$0xff]
      %v597 = vld [vmem:[%s2 + $0x748] sm:$0xff]
      %v598 = vld [vmem:[%s2 + $0x750] sm:$0xff]
      %v599 = vld [vmem:[%s2 + $0x758] sm:$0xff]
      %v600 = vld [vmem:[%s2 + $0x760] sm:$0xff]
      %v601 = vld [vmem:[%s2 + $0x768] sm:$0xff]
      %v602 = vld [vmem:[%s2 + $0x770] sm:$0xff]
      %v603 = vld [vmem:[%s2 + $0x778] sm:$0xff]
      %v604 = vld [vmem:[%s2 + $0x780] sm:$0xff]
      %v605 = vld [vmem:[%s2 + $0x788] sm:$0xff]
      %v606 = vld [vmem:[%s2 + $0x790] sm:$0xff]
      %v607 = vld [vmem:[%s2 + $0x798] sm:$0xff]
      %v608 = vld [vmem:[%s2 + $0x7a0] sm:$0xff]
      %v609 = vld [vmem:[%s2 + $0x7a8] sm:$0xff]
      %v610 = vld [vmem:[%s2 + $0x7b0] sm:$0xff]
      %v611 = vld [vmem:[%s2 + $0x7b8] sm:$0xff]
      %v612 = vld [vmem:[%s2 + $0x7c0] sm:$0xff]
      %v613 = vld [vmem:[%s2 + $0x7c8] sm:$0xff]
      %v614 = vld [vmem:[%s2 + $0x7d0] sm:$0xff]
      %v615 = vld [vmem:[%s2 + $0x7d8] sm:$0xff]
      %v616 = vld [vmem:[%s2 + $0x7e0] sm:$0xff]
      %v617 = vld [vmem:[%s2 + $0x7e8] sm:$0xff]
      %v618 = vld [vmem:[%s2 + $0x7f0] sm:$0xff]
      %v619 = vld [vmem:[%s2 + $0x7f8] sm:$0xff]
      %v620 = vld [vmem:[%s2 + $0x800] sm:$0xff]
      %v621 = vld [vmem:[%s2 + $0x808] sm:$0xff]
      %v622 = vld [vmem:[%s2 + $0x810] sm:$0xff]
      %v623 = vld [vmem:[%s2 + $0x818] sm:$0xff]
      %v624 = vld [vmem:[%s2 + $0x820] sm:$0xff]
      %v625 = vld [vmem:[%s2 + $0x828] sm:$0xff]
      %v626 = vld [vmem:[%s2 + $0x830] sm:$0xff]
      %v627 = vld [vmem:[%s2 + $0x838] sm:$0xff]
      %v628 = vld [vmem:[%s2 + $0x840] sm:$0xff]
      %v629 = vld [vmem:[%s2 + $0x848] sm:$0xff]
      %v630 = vld [vmem:[%s2 + $0x850] sm:$0xff]
      %v631 = vld [vmem:[%s2 + $0x858] sm:$0xff]
      %v632 = vld [vmem:[%s2 + $0x860] sm:$0xff]
      %v633 = vld [vmem:[%s2 + $0x868] sm:$0xff]
      %v634 = vld [vmem:[%s2 + $0x870] sm:$0xff]
      %v635 = vld [vmem:[%s2 + $0x878] sm:$0xff]
      %v636 = vld [vmem:[%s2 + $0x880] sm:$0xff]
      %v637 = vld [vmem:[%s2 + $0x888] sm:$0xff]
      %v638 = vld [vmem:[%s2 + $0x890] sm:$0xff]
      %v639 = vld [vmem:[%s2 + $0x898] sm:$0xff]
      %v640 = vld [vmem:[%s2 + $0x8a0] sm:$0xff]
      %v641 = vld [vmem:[%s2 + $0x8a8] sm:$0xff]
      %v642 = vld [vmem:[%s2 + $0x8b0] sm:$0xff]
      %v643 = vld [vmem:[%s2 + $0x8b8] sm:$0xff]
      %v644 = vld [vmem:[%s2 + $0x8c0] sm:$0xff]
      %v645 = vld [vmem:[%s2 + $0x8c8] sm:$0xff]
      %v646 = vld [vmem:[%s2 + $0x8d0] sm:$0xff]
      %v647 = vld [vmem:[%s2 + $0x8d8] sm:$0xff]
      %v648 = vld [vmem:[%s2 + $0x8e0] sm:$0xff]
      %v649 = vld [vmem:[%s2 + $0x8e8] sm:$0xff]
      %v650 = vld [vmem:[%s2 + $0x8f0] sm:$0xff]
      %v651 = vld [vmem:[%s2 + $0x8f8] sm:$0xff]
      %v652 = vld [vmem:[%s2 + $0x900] sm:$0xff]
      %v653 = vld [vmem:[%s2 + $0x908] sm:$0xff]
      %v654 = vld [vmem:[%s2 + $0x910] sm:$0xff]
      %v655 = vld [vmem:[%s2 + $0x918] sm:$0xff]
      %v656 = vld [vmem:[%s2 + $0x920] sm:$0xff]
      %v657 = vld [vmem:[%s2 + $0x928] sm:$0xff]
      %v658 = vld [vmem:[%s2 + $0x930] sm:$0xff]
      %v659 = vld [vmem:[%s2 + $0x938] sm:$0xff]
      %v660 = vld [vmem:[%s2 + $0x940] sm:$0xff]
      %v661 = vld [vmem:[%s2 + $0x948] sm:$0xff]
      %v662 = vld [vmem:[%s2 + $0x950] sm:$0xff]
      %v663 = vld [vmem:[%s2 + $0x958] sm:$0xff]
      %v664 = vld [vmem:[%s2 + $0x960] sm:$0xff]
      %v665 = vld [vmem:[%s2 + $0x968] sm:$0xff]
      %v666 = vld [vmem:[%s2 + $0x970] sm:$0xff]
      %v667 = vld [vmem:[%s2 + $0x978] sm:$0xff]
      %v668 = vld [vmem:[%s2 + $0x980] sm:$0xff]
      %v669 = vld [vmem:[%s2 + $0x988] sm:$0xff]
      %v670 = vld [vmem:[%s2 + $0x990] sm:$0xff]
      %v671 = vld [vmem:[%s2 + $0x998] sm:$0xff]
      %v672 = vld [vmem:[%s2 + $0x9a0] sm:$0xff]
      %v673 = vld [vmem:[%s2 + $0x9a8] sm:$0xff]
      %v674 = vld [vmem:[%s2 + $0x9b0] sm:$0xff]
      %v675 = vld [vmem:[%s2 + $0x9b8] sm:$0xff]
      %v676 = vld [vmem:[%s2 + $0x9c0] sm:$0xff]
      %v677 = vld [vmem:[%s2 + $0x9c8] sm:$0xff]
      %v678 = vld [vmem:[%s2 + $0x9d0] sm:$0xff]
      %v679 = vld [vmem:[%s2 + $0x9d8] sm:$0xff]
      %v680 = vld [vmem:[%s2 + $0x9e0] sm:$0xff]
      %v681 = vld [vmem:[%s2 + $0x9e8] sm:$0xff]
      %v682 = vld [vmem:[%s2 + $0x9f0] sm:$0xff]
      %v683 = vld [vmem:[%s2 + $0x9f8] sm:$0xff]
      %v684 = vld [vmem:[%s2 + $0xa00] sm:$0xff]
      %v685 = vld [vmem:[%s2 + $0xa08] sm:$0xff]
      %v686 = vld [vmem:[%s2 + $0xa10] sm:$0xff]
      %v687 = vld [vmem:[%s2 + $0xa18] sm:$0xff]
      %v688 = vld [vmem:[%s2 + $0xa20] sm:$0xff]
      %v689 = vld [vmem:[%s2 + $0xa28] sm:$0xff]
      %v690 = vld [vmem:[%s2 + $0xa30] sm:$0xff]
      %v691 = vld [vmem:[%s2 + $0xa38] sm:$0xff]
      %v692 = vld [vmem:[%s2 + $0xa40] sm:$0xff]
      %v693 = vld [vmem:[%s2 + $0xa48] sm:$0xff]
      %v694 = vld [vmem:[%s2 + $0xa50] sm:$0xff]
      %v695 = vld [vmem:[%s2 + $0xa58] sm:$0xff]
      %v696 = vld [vmem:[%s2 + $0xa60] sm:$0xff]
      %v697 = vld [vmem:[%s2 + $0xa68] sm:$0xff]
      %v698 = vld [vmem:[%s2 + $0xa70] sm:$0xff]
      %v699 = vld [vmem:[%s2 + $0xa78] sm:$0xff]
      %v700 = vld [vmem:[%s2 + $0xa80] sm:$0xff]
      %v701 = vld [vmem:[%s2 + $0xa88] sm:$0xff]
      %v702 = vld [vmem:[%s2 + $0xa90] sm:$0xff]
      %v703 = vld [vmem:[%s2 + $0xa98] sm:$0xff]
      %v704 = vld [vmem:[%s2 + $0xaa0] sm:$0xff]
      %v705 = vld [vmem:[%s2 + $0xaa8] sm:$0xff]
      %v706 = vld [vmem:[%s2 + $0xab0] sm:$0xff]
      %v707 = vld [vmem:[%s2 + $0xab8] sm:$0xff]
      %v708 = vld [vmem:[%s2 + $0xac0] sm:$0xff]
      %v709 = vld [vmem:[%s2 + $0xac8] sm:$0xff]
      %v710 = vld [vmem:[%s2 + $0xad0] sm:$0xff]
      %v711 = vld [vmem:[%s2 + $0xad8] sm:$0xff]
      %v712 = vld [vmem:[%s2 + $0xae0] sm:$0xff]
      %v713 = vld [vmem:[%s2 + $0xae8] sm:$0xff]
      %v714 = vld [vmem:[%s2 + $0xaf0] sm:$0xff]
      %v715 = vld [vmem:[%s2 + $0xaf8] sm:$0xff]
      %v716 = vld [vmem:[%s2 + $0xb00] sm:$0xff]
      %v717 = vld [vmem:[%s2 + $0xb08] sm:$0xff]
      %v718 = vld [vmem:[%s2 + $0xb10] sm:$0xff]
      %v719 = vld [vmem:[%s2 + $0xb18] sm:$0xff]
      %v720 = vld [vmem:[%s2 + $0xb20] sm:$0xff]
      %v721 = vld [vmem:[%s2 + $0xb28] sm:$0xff]
      %v722 = vld [vmem:[%s2 + $0xb30] sm:$0xff]
      %v723 = vld [vmem:[%s2 + $0xb38] sm:$0xff]
      %v724 = vld [vmem:[%s2 + $0xb40] sm:$0xff]
      %v725 = vld [vmem:[%s2 + $0xb48] sm:$0xff]
      %v726 = vld [vmem:[%s2 + $0xb50] sm:$0xff]
      %v727 = vld [vmem:[%s2 + $0xb58] sm:$0xff]
      %v728 = vld [vmem:[%s2 + $0xb60] sm:$0xff]
      %v729 = vld [vmem:[%s2 + $0xb68] sm:$0xff]
      %v730 = vld [vmem:[%s2 + $0xb70] sm:$0xff]
      %v731 = vld [vmem:[%s2 + $0xb78] sm:$0xff]
      %v732 = vld [vmem:[%s2 + $0xb80] sm:$0xff]
      %v733 = vld [vmem:[%s2 + $0xb88] sm:$0xff]
      %v734 = vld [vmem:[%s2 + $0xb90] sm:$0xff]
      %v735 = vld [vmem:[%s2 + $0xb98] sm:$0xff]
      %v736 = vld [vmem:[%s2 + $0xba0] sm:$0xff]
      %v737 = vld [vmem:[%s2 + $0xba8] sm:$0xff]
      %v738 = vld [vmem:[%s2 + $0xbb0] sm:$0xff]
      %v739 = vld [vmem:[%s2 + $0xbb8] sm:$0xff]
      %v740 = vld [vmem:[%s2 + $0xbc0] sm:$0xff]
      %v741 = vld [vmem:[%s2 + $0xbc8] sm:$0xff]
      %v742 = vld [vmem:[%s2 + $0xbd0] sm:$0xff]
      %v743 = vld [vmem:[%s2 + $0xbd8] sm:$0xff]
      %v744 = vld [vmem:[%s2 + $0xbe0] sm:$0xff]
      %v745 = vld [vmem:[%s2 + $0xbe8] sm:$0xff]
      %v746 = vld [vmem:[%s2 + $0xbf0] sm:$0xff]
      %v747 = vld [vmem:[%s2 + $0xbf8] sm:$0xff]
      %v748 = vld [vmem:[%s2 + $0xc00] sm:$0xff]
      %v749 = vld [vmem:[%s2 + $0xc08] sm:$0xff]
      %v750 = vld [vmem:[%s2 + $0xc10] sm:$0xff]
      %v751 = vld [vmem:[%s2 + $0xc18] sm:$0xff]
      %v752 = vld [vmem:[%s2 + $0xc20] sm:$0xff]
      %v753 = vld [vmem:[%s2 + $0xc28] sm:$0xff]
      %v754 = vld [vmem:[%s2 + $0xc30] sm:$0xff]
      %v755 = vld [vmem:[%s2 + $0xc38] sm:$0xff]
      %v756 = vld [vmem:[%s2 + $0xc40] sm:$0xff]
      %v757 = vld [vmem:[%s2 + $0xc48] sm:$0xff]
      %v758 = vld [vmem:[%s2 + $0xc50] sm:$0xff]
      %v759 = vld [vmem:[%s2 + $0xc58] sm:$0xff]
      %v760 = vld [vmem:[%s2 + $0xc60] sm:$0xff]
      %v761 = vld [vmem:[%s2 + $0xc68] sm:$0xff]
      %v762 = vld [vmem:[%s2 + $0xc70] sm:$0xff]
      %v763 = vld [vmem:[%s2 + $0xc78] sm:$0xff]
      %v764 = vld [vmem:[%s2 + $0xc80] sm:$0xff]
      %v765 = vld [vmem:[%s2 + $0xc88] sm:$0xff]
      %v766 = vld [vmem:[%s2 + $0xc90] sm:$0xff]
      %v767 = vld [vmem:[%s2 + $0xc98] sm:$0xff]
      %v768 = vld [vmem:[%s2 + $0xca0] sm:$0xff]
      %v769 = vld [vmem:[%s2 + $0xca8] sm:$0xff]
      %v770 = vld [vmem:[%s2 + $0xcb0] sm:$0xff]
      %v771 = vld [vmem:[%s2 + $0xcb8] sm:$0xff]
      %v772 = vld [vmem:[%s2 + $0xcc0] sm:$0xff]
      %v773 = vld [vmem:[%s2 + $0xcc8] sm:$0xff]
      %v774 = vld [vmem:[%s2 + $0xcd0] sm:$0xff]
      %v775 = vld [vmem:[%s2 + $0xcd8] sm:$0xff]
      %v776 = vld [vmem:[%s2 + $0xce0] sm:$0xff]
      %v777 = vld [vmem:[%s2 + $0xce8] sm:$0xff]
      %v778 = vld [vmem:[%s2 + $0xcf0] sm:$0xff]
      %v779 = vld [vmem:[%s2 + $0xcf8] sm:$0xff]
      %v780 = vld [vmem:[%s2 + $0xd00] sm:$0xff]
      %v781 = vld [vmem:[%s2 + $0xd08] sm:$0xff]
      %v782 = vld [vmem:[%s2 + $0xd10] sm:$0xff]
      %v783 = vld [vmem:[%s2 + $0xd18] sm:$0xff]
      %v784 = vld [vmem:[%s2 + $0xd20] sm:$0xff]
      %v785 = vld [vmem:[%s2 + $0xd28] sm:$0xff]
      %v786 = vld [vmem:[%s2 + $0xd30] sm:$0xff]
      %v787 = vld [vmem:[%s2 + $0xd38] sm:$0xff]
      %v788 = vld [vmem:[%s2 + $0xd40] sm:$0xff]
      %v789 = vld [vmem:[%s2 + $0xd48] sm:$0xff]
      %v790 = vld [vmem:[%s2 + $0xd50] sm:$0xff]
      %v791 = vld [vmem:[%s2 + $0xd58] sm:$0xff]
      %v792 = vld [vmem:[%s2 + $0xd60] sm:$0xff]
      %v793 = vld [vmem:[%s2 + $0xd68] sm:$0xff]
      %v794 = vld [vmem:[%s2 + $0xd70] sm:$0xff]
      %v795 = vld [vmem:[%s2 + $0xd78] sm:$0xff]
      %v796 = vld [vmem:[%s2 + $0xd80] sm:$0xff]
      %v797 = vld [vmem:[%s2 + $0xd88] sm:$0xff]
      %v798 = vld [vmem:[%s2 + $0xd90] sm:$0xff]
      %v799 = vld [vmem:[%s2 + $0xd98] sm:$0xff]
      %v800 = vld [vmem:[%s2 + $0xda0] sm:$0xff]
      %v801 = vld [vmem:[%s2 + $0xda8] sm:$0xff]
      %v802 = vld [vmem:[%s2 + $0xdb0] sm:$0xff]
      %v803 = vld [vmem:[%s2 + $0xdb8] sm:$0xff]
      %v804 = vld [vmem:[%s2 + $0xdc0] sm:$0xff]
      %v805 = vld [vmem:[%s2 + $0xdc8] sm:$0xff]
      %v806 = vld [vmem:[%s2 + $0xdd0] sm:$0xff]
      %v807 = vld [vmem:[%s2 + $0xdd8] sm:$0xff]
      %v808 = vld [vmem:[%s2 + $0xde0] sm:$0xff]
      %v809 = vld [vmem:[%s2 + $0xde8] sm:$0xff]
      %v810 = vld [vmem:[%s2 + $0xdf0] sm:$0xff]
      %v811 = vld [vmem:[%s2 + $0xdf8] sm:$0xff]
      %v812 = vld [vmem:[%s2 + $0xe00] sm:$0xff]
      %v813 = vld [vmem:[%s2 + $0xe08] sm:$0xff]
      %v814 = vld [vmem:[%s2 + $0xe10] sm:$0xff]
      %v815 = vld [vmem:[%s2 + $0xe18] sm:$0xff]
      %v816 = vld [vmem:[%s2 + $0xe20] sm:$0xff]
      %v817 = vld [vmem:[%s2 + $0xe28] sm:$0xff]
      %v818 = vld [vmem:[%s2 + $0xe30] sm:$0xff]
      %v819 = vld [vmem:[%s2 + $0xe38] sm:$0xff]
      %v820 = vld [vmem:[%s2 + $0xe40] sm:$0xff]
      %v821 = vld [vmem:[%s2 + $0xe48] sm:$0xff]
      %v822 = vld [vmem:[%s2 + $0xe50] sm:$0xff]
      %v823 = vld [vmem:[%s2 + $0xe58] sm:$0xff]
      %v824 = vld [vmem:[%s2 + $0xe60] sm:$0xff]
      %v825 = vld [vmem:[%s2 + $0xe68] sm:$0xff]
      %v826 = vld [vmem:[%s2 + $0xe70] sm:$0xff]
      %v827 = vld [vmem:[%s2 + $0xe78] sm:$0xff]
      %v828 = vld [vmem:[%s2 + $0xe80] sm:$0xff]
      %v829 = vld [vmem:[%s2 + $0xe88] sm:$0xff]
      %v830 = vld [vmem:[%s2 + $0xe90] sm:$0xff]
      %v831 = vld [vmem:[%s2 + $0xe98] sm:$0xff]
      %v832 = vld [vmem:[%s2 + $0xea0] sm:$0xff]
      %v833 = vld [vmem:[%s2 + $0xea8] sm:$0xff]
      %v834 = vld [vmem:[%s2 + $0xeb0] sm:$0xff]
      %v835 = vld [vmem:[%s2 + $0xeb8] sm:$0xff]
      %v836 = vld [vmem:[%s2 + $0xec0] sm:$0xff]
      %v837 = vld [vmem:[%s2 + $0xec8] sm:$0xff]
      %v838 = vld [vmem:[%s2 + $0xed0] sm:$0xff]
      %v839 = vld [vmem:[%s2 + $0xed8] sm:$0xff]
      %v840 = vld [vmem:[%s2 + $0xee0] sm:$0xff]
      %v841 = vld [vmem:[%s2 + $0xee8] sm:$0xff]
      %v842 = vld [vmem:[%s2 + $0xef0] sm:$0xff]
      %v843 = vld [vmem:[%s2 + $0xef8] sm:$0xff]
      %v844 = vld [vmem:[%s2 + $0xf00] sm:$0xff]
      %v845 = vld [vmem:[%s2 + $0xf08] sm:$0xff]
      %v846 = vld [vmem:[%s2 + $0xf10] sm:$0xff]
      %v847 = vld [vmem:[%s2 + $0xf18] sm:$0xff]
      %v848 = vld [vmem:[%s2 + $0xf20] sm:$0xff]
      %v849 = vld [vmem:[%s2 + $0xf28] sm:$0xff]
      %v850 = vld [vmem:[%s2 + $0xf30] sm:$0xff]
      %v851 = vld [vmem:[%s2 + $0xf38] sm:$0xff]
      %v852 = vld [vmem:[%s2 + $0xf40] sm:$0xff]
      %v853 = vld [vmem:[%s2 + $0xf48] sm:$0xff]
      %v854 = vld [vmem:[%s2 + $0xf50] sm:$0xff]
      %v855 = vld [vmem:[%s2 + $0xf58] sm:$0xff]
      %v856 = vld [vmem:[%s2 + $0xf60] sm:$0xff]
      %v857 = vld [vmem:[%s2 + $0xf68] sm:$0xff]
      %v858 = vld [vmem:[%s2 + $0xf70] sm:$0xff]
      %v859 = vld [vmem:[%s2 + $0xf78] sm:$0xff]
      %v860 = vld [vmem:[%s2 + $0xf80] sm:$0xff]
      %v861 = vld [vmem:[%s2 + $0xf88] sm:$0xff]
      %v862 = vld [vmem:[%s2 + $0xf90] sm:$0xff]
      %v863 = vld [vmem:[%s2 + $0xf98] sm:$0xff]
      %v864 = vld [vmem:[%s2 + $0xfa0] sm:$0xff]
      %v865 = vld [vmem:[%s2 + $0xfa8] sm:$0xff]
      %v866 = vld [vmem:[%s2 + $0xfb0] sm:$0xff]
      %v867 = vld [vmem:[%s2 + $0xfb8] sm:$0xff]
      %v868 = vld [vmem:[%s2 + $0xfc0] sm:$0xff]
      %v869 = vld [vmem:[%s2 + $0xfc8] sm:$0xff]
      %v870 = vld [vmem:[%s2 + $0xfd0] sm:$0xff]
      %v871 = vld [vmem:[%s2 + $0xfd8] sm:$0xff]
      %v872 = vld [vmem:[%s2 + $0xfe0] sm:$0xff]
      %v873 = vld [vmem:[%s2 + $0xfe8] sm:$0xff]
      %v874 = vld [vmem:[%s2 + $0xff0] sm:$0xff]
      %v875 = vld [vmem:[%s2 + $0xff8] sm:$0xff]
      %v876 = vld [vmem:[%s2 + $0x1000] sm:$0xff]
      %v877 = vld [vmem:[%s2 + $0x1008] sm:$0xff]
      %v878 = vld [vmem:[%s2 + $0x1010] sm:$0xff]
      %v879 = vld [vmem:[%s2 + $0x1018] sm:$0xff]
      %v880 = vld [vmem:[%s2 + $0x1020] sm:$0xff]
      %v881 = vld [vmem:[%s2 + $0x1028] sm:$0xff]
      %v882 = vld [vmem:[%s2 + $0x1030] sm:$0xff]
      %v883 = vld [vmem:[%s2 + $0x1038] sm:$0xff]
      %v884 = vld [vmem:[%s2 + $0x1040] sm:$0xff]
      %v885 = vld [vmem:[%s2 + $0x1048] sm:$0xff]
      %v886 = vld [vmem:[%s2 + $0x1050] sm:$0xff]
      %v887 = vld [vmem:[%s2 + $0x1058] sm:$0xff]
      %v888 = vld [vmem:[%s2 + $0x1060] sm:$0xff]
      %v889 = vld [vmem:[%s2 + $0x1068] sm:$0xff]
      %v890 = vld [vmem:[%s2 + $0x1070] sm:$0xff]
      %v891 = vld [vmem:[%s2 + $0x1078] sm:$0xff]
      %v892 = vld [vmem:[%s2 + $0x1080] sm:$0xff]
      %v893 = vld [vmem:[%s2 + $0x1088] sm:$0xff]
      %v894 = vld [vmem:[%s2 + $0x1090] sm:$0xff]
      %v895 = vld [vmem:[%s2 + $0x1098] sm:$0xff]
      %v896 = vld [vmem:[%s2 + $0x10a0] sm:$0xff]
      %v897 = vld [vmem:[%s2 + $0x10a8] sm:$0xff]
      %v898 = vld [vmem:[%s2 + $0x10b0] sm:$0xff]
      %v899 = vld [vmem:[%s2 + $0x10b8] sm:$0xff]
      %v900 = vld [vmem:[%s2 + $0x10c0] sm:$0xff]
      %v901 = vld [vmem:[%s2 + $0x10c8] sm:$0xff]
      %v902 = vld [vmem:[%s2 + $0x10d0] sm:$0xff]
      %v903 = vld [vmem:[%s2 + $0x10d8] sm:$0xff]
      %v904 = vld [vmem:[%s2 + $0x10e0] sm:$0xff]
      %v905 = vld [vmem:[%s2 + $0x10e8] sm:$0xff]
      %v906 = vld [vmem:[%s2 + $0x10f0] sm:$0xff]
      %v907 = vld [vmem:[%s2 + $0x10f8] sm:$0xff]
      %v908 = vld [vmem:[%s2 + $0x1100] sm:$0xff]
      %v909 = vld [vmem:[%s2 + $0x1108] sm:$0xff]
      %v910 = vld [vmem:[%s2 + $0x1110] sm:$0xff]
      %v911 = vld [vmem:[%s2 + $0x1118] sm:$0xff]
      %v912 = vld [vmem:[%s2 + $0x1120] sm:$0xff]
      %v913 = vld [vmem:[%s2 + $0x1128] sm:$0xff]
      %v914 = vld [vmem:[%s2 + $0x1130] sm:$0xff]
      %v915 = vld [vmem:[%s2 + $0x1138] sm:$0xff]
      %v916 = vld [vmem:[%s2 + $0x1140] sm:$0xff]
      %v917 = vld [vmem:[%s2 + $0x1148] sm:$0xff]
      %v918 = vld [vmem:[%s2 + $0x1150] sm:$0xff]
      %v919 = vld [vmem:[%s2 + $0x1158] sm:$0xff]
      %v920 = vld [vmem:[%s2 + $0x1160] sm:$0xff]
      %v921 = vld [vmem:[%s2 + $0x1168] sm:$0xff]
      %v922 = vld [vmem:[%s2 + $0x1170] sm:$0xff]
      %v923 = vld [vmem:[%s2 + $0x1178] sm:$0xff]
      %v924 = vld [vmem:[%s2 + $0x1180] sm:$0xff]
      %v925 = vld [vmem:[%s2 + $0x1188] sm:$0xff]
      %v926 = vld [vmem:[%s2 + $0x1190] sm:$0xff]
      %v927 = vld [vmem:[%s2 + $0x1198] sm:$0xff]
      %v928 = vld [vmem:[%s2 + $0x11a0] sm:$0xff]
      %v929 = vld [vmem:[%s2 + $0x11a8] sm:$0xff]
      %v930 = vld [vmem:[%s2 + $0x11b0] sm:$0xff]
      %v931 = vld [vmem:[%s2 + $0x11b8] sm:$0xff]
      %v932 = vld [vmem:[%s2 + $0x11c0] sm:$0xff]
      %v933 = vld [vmem:[%s2 + $0x11c8] sm:$0xff]
      %v934 = vld [vmem:[%s2 + $0x11d0] sm:$0xff]
      %v935 = vld [vmem:[%s2 + $0x11d8] sm:$0xff]
      %v936 = vld [vmem:[%s2 + $0x11e0] sm:$0xff]
      %v937 = vld [vmem:[%s2 + $0x11e8] sm:$0xff]
      %v938 = vld [vmem:[%s2 + $0x11f0] sm:$0xff]
      %v939 = vld [vmem:[%s2 + $0x11f8] sm:$0xff]
      %v940 = vld [vmem:[%s2 + $0x1200] sm:$0xff]
      %v941 = vld [vmem:[%s2 + $0x1208] sm:$0xff]
      %v942 = vld [vmem:[%s2 + $0x1210] sm:$0xff]
      %v943 = vld [vmem:[%s2 + $0x1218] sm:$0xff]
      %v944 = vld [vmem:[%s2 + $0x1220] sm:$0xff]
      %v945 = vld [vmem:[%s2 + $0x1228] sm:$0xff]
      %v946 = vld [vmem:[%s2 + $0x1230] sm:$0xff]
      %v947 = vld [vmem:[%s2 + $0x1238] sm:$0xff]
      %v948 = vld [vmem:[%s2 + $0x1240] sm:$0xff]
      %v949 = vld [vmem:[%s2 + $0x1248] sm:$0xff]
      %v950 = vld [vmem:[%s2 + $0x1250] sm:$0xff]
      %v951 = vld [vmem:[%s2 + $0x1258] sm:$0xff]
      %v952 = vld [vmem:[%s2 + $0x1260] sm:$0xff]
      %v953 = vld [vmem:[%s2 + $0x1268] sm:$0xff]
      %v954 = vld [vmem:[%s2 + $0x1270] sm:$0xff]
      %v955 = vld [vmem:[%s2 + $0x1278] sm:$0xff]
      %v956 = vld [vmem:[%s2 + $0x1280] sm:$0xff]
      %v957 = vld [vmem:[%s2 + $0x1288] sm:$0xff]
      %v958 = vld [vmem:[%s2 + $0x1290] sm:$0xff]
      %v959 = vld [vmem:[%s2 + $0x1298] sm:$0xff]
      %v960 = vld [vmem:[%s2 + $0x12a0] sm:$0xff]
      %v961 = vld [vmem:[%s2 + $0x12a8] sm:$0xff]
      %v962 = vld [vmem:[%s2 + $0x12b0] sm:$0xff]
      %v963 = vld [vmem:[%s2 + $0x12b8] sm:$0xff]
      %v964 = vld [vmem:[%s2 + $0x12c0] sm:$0xff]
      %v965 = vld [vmem:[%s2 + $0x12c8] sm:$0xff]
      %v966 = vld [vmem:[%s2 + $0x12d0] sm:$0xff]
      %v967 = vld [vmem:[%s2 + $0x12d8] sm:$0xff]
      %v968 = vld [vmem:[%s2 + $0x12e0] sm:$0xff]
      %v969 = vld [vmem:[%s2 + $0x12e8] sm:$0xff]
      %v970 = vld [vmem:[%s2 + $0x12f0] sm:$0xff]
      %v971 = vld [vmem:[%s2 + $0x12f8] sm:$0xff]
      %v972 = vld [vmem:[%s2 + $0x1300] sm:$0xff]
      %v973 = vld [vmem:[%s2 + $0x1308] sm:$0xff]
      %v974 = vld [vmem:[%s2 + $0x1310] sm:$0xff]
      %v975 = vld [vmem:[%s2 + $0x1318] sm:$0xff]
      %v976 = vld [vmem:[%s2 + $0x1320] sm:$0xff]
      %v977 = vld [vmem:[%s2 + $0x1328] sm:$0xff]
      %v978 = vld [vmem:[%s2 + $0x1330] sm:$0xff]
      %v979 = vld [vmem:[%s2 + $0x1338] sm:$0xff]
      %v980 = vld [vmem:[%s2 + $0x1340] sm:$0xff]
      %v981 = vld [vmem:[%s2 + $0x1348] sm:$0xff]
      %v982 = vld [vmem:[%s2 + $0x1350] sm:$0xff]
      %v983 = vld [vmem:[%s2 + $0x1358] sm:$0xff]
      %v984 = vld [vmem:[%s2 + $0x1360] sm:$0xff]
      %v985 = vld [vmem:[%s2 + $0x1368] sm:$0xff]
      %v986 = vld [vmem:[%s2 + $0x1370] sm:$0xff]
      %v987 = vld [vmem:[%s2 + $0x1378] sm:$0xff]
      %v988 = vld [vmem:[%s2 + $0x1380] sm:$0xff]
      %v989 = vld [vmem:[%s2 + $0x1388] sm:$0xff]
      %v990 = vld [vmem:[%s2 + $0x1390] sm:$0xff]
      %v991 = vld [vmem:[%s2 + $0x1398] sm:$0xff]
      %v992 = vld [vmem:[%s2 + $0x13a0] sm:$0xff]
      %v993 = vld [vmem:[%s2 + $0x13a8] sm:$0xff]
      %v994 = vld [vmem:[%s2 + $0x13b0] sm:$0xff]
      %v995 = vld [vmem:[%s2 + $0x13b8] sm:$0xff]
      %v996 = vld [vmem:[%s2 + $0x13c0] sm:$0xff]
      %v997 = vld [vmem:[%s2 + $0x13c8] sm:$0xff]
      %v998 = vld [vmem:[%s2 + $0x13d0] sm:$0xff]
      %v999 = vld [vmem:[%s2 + $0x13d8] sm:$0xff]
      %v1000 = vld [vmem:[%s2 + $0x13e0] sm:$0xff]
      %v1001 = vld [vmem:[%s2 + $0x13e8] sm:$0xff]
      %v1002 = vld [vmem:[%s2 + $0x13f0] sm:$0xff]
      %v1003 = vld [vmem:[%s2 + $0x13f8] sm:$0xff]
      %v1004 = vld [vmem:[%s2 + $0x1400] sm:$0xff]
      %v1005 = vld [vmem:[%s2 + $0x1408] sm:$0xff]
      %v1006 = vld [vmem:[%s2 + $0x1410] sm:$0xff]
      %v1007 = vld [vmem:[%s2 + $0x1418] sm:$0xff]
      %v1008 = vld [vmem:[%s2 + $0x1420] sm:$0xff]
      %v1009 = vld [vmem:[%s2 + $0x1428] sm:$0xff]
      %v1010 = vld [vmem:[%s2 + $0x1430] sm:$0xff]
      %v1011 = vld [vmem:[%s2 + $0x1438] sm:$0xff]
      %v1012 = vld [vmem:[%s2 + $0x1440] sm:$0xff]
      %v1013 = vld [vmem:[%s2 + $0x1448] sm:$0xff]
      %v1014 = vld [vmem:[%s2 + $0x1450] sm:$0xff]
      %v1015 = vld [vmem:[%s2 + $0x1458] sm:$0xff]
      %v1016 = vld [vmem:[%s2 + $0x1460] sm:$0xff]
      %v1017 = vld [vmem:[%s2 + $0x1468] sm:$0xff]
      %v1018 = vld [vmem:[%s2 + $0x1470] sm:$0xff]
      %v1019 = vld [vmem:[%s2 + $0x1478] sm:$0xff]
      %v1020 = vld [vmem:[%s2 + $0x1480] sm:$0xff]
      %v1021 = vld [vmem:[%s2 + $0x1488] sm:$0xff]
      %v1022 = vld [vmem:[%s2 + $0x1490] sm:$0xff]
      %v1023 = vld [vmem:[%s2 + $0x1498] sm:$0xff]
      %v1024 = vld [vmem:[%s2 + $0x14a0] sm:$0xff]
      %v1025 = vld [vmem:[%s2 + $0x14a8] sm:$0xff]
      %v1026 = vld [vmem:[%s2 + $0x14b0] sm:$0xff]
      %v1027 = vld [vmem:[%s2 + $0x14b8] sm:$0xff]
      %v1028 = vld [vmem:[%s2 + $0x14c0] sm:$0xff]
      %v1029 = vld [vmem:[%s2 + $0x14c8] sm:$0xff]
      %v1030 = vld [vmem:[%s2 + $0x14d0] sm:$0xff]
      %v1031 = vld [vmem:[%s2 + $0x14d8] sm:$0xff]
      %v1032 = vld [vmem:[%s2 + $0x14e0] sm:$0xff]
      %v1033 = vld [vmem:[%s2 + $0x14e8] sm:$0xff]
      %v1034 = vld [vmem:[%s2 + $0x14f0] sm:$0xff]
      %v1035 = vld [vmem:[%s2 + $0x14f8] sm:$0xff]
      %v1036 = vld [vmem:[%s2 + $0x1500] sm:$0xff]
      %v1037 = vld [vmem:[%s2 + $0x1508] sm:$0xff]
      %v1038 = vld [vmem:[%s2 + $0x1510] sm:$0xff]
      %v1039 = vld [vmem:[%s2 + $0x1518] sm:$0xff]
      %v1040 = vld [vmem:[%s2 + $0x1520] sm:$0xff]
      %v1041 = vld [vmem:[%s2 + $0x1528] sm:$0xff]
      %v1042 = vld [vmem:[%s2 + $0x1530] sm:$0xff]
      %v1043 = vld [vmem:[%s2 + $0x1538] sm:$0xff]
      %v1044 = vld [vmem:[%s2 + $0x1540] sm:$0xff]
      %v1045 = vld [vmem:[%s2 + $0x1548] sm:$0xff]
      %v1046 = vld [vmem:[%s2 + $0x1550] sm:$0xff]
      %v1047 = vld [vmem:[%s2 + $0x1558] sm:$0xff]
      %v1048 = vld [vmem:[%s2 + $0x1560] sm:$0xff]
      %v1049 = vld [vmem:[%s2 + $0x1568] sm:$0xff]
      %v1050 = vld [vmem:[%s2 + $0x1570] sm:$0xff]
      %v1051 = vld [vmem:[%s2 + $0x1578] sm:$0xff]
      %v1052 = vld [vmem:[%s2 + $0x1580] sm:$0xff]
      %v1053 = vld [vmem:[%s2 + $0x1588] sm:$0xff]
      %v1054 = vld [vmem:[%s2 + $0x1590] sm:$0xff]
      %v1055 = vld [vmem:[%s2 + $0x1598] sm:$0xff]
      %v1056 = vld [vmem:[%s2 + $0x15a0] sm:$0xff]
      %v1057 = vld [vmem:[%s2 + $0x15a8] sm:$0xff]
      %v1058 = vld [vmem:[%s2 + $0x15b0] sm:$0xff]
      %v1059 = vld [vmem:[%s2 + $0x15b8] sm:$0xff]
      %v1060 = vld [vmem:[%s2 + $0x15c0] sm:$0xff]
      %v1061 = vld [vmem:[%s2 + $0x15c8] sm:$0xff]
      %v1062 = vld [vmem:[%s2 + $0x15d0] sm:$0xff]
      %v1063 = vld [vmem:[%s2 + $0x15d8] sm:$0xff]
      %v1064 = vld [vmem:[%s2 + $0x15e0] sm:$0xff]
      %v1065 = vld [vmem:[%s2 + $0x15e8] sm:$0xff]
      %v1066 = vld [vmem:[%s2 + $0x15f0] sm:$0xff]
      %v1067 = vld [vmem:[%s2 + $0x15f8] sm:$0xff]
      %v1068 = vld [vmem:[%s2 + $0x1600] sm:$0xff]
      %v1069 = vld [vmem:[%s2 + $0x1608] sm:$0xff]
      %v1070 = vld [vmem:[%s2 + $0x1610] sm:$0xff]
      %v1071 = vld [vmem:[%s2 + $0x1618] sm:$0xff]
      %v1072 = vld [vmem:[%s2 + $0x1620] sm:$0xff]
      %v1073 = vld [vmem:[%s2 + $0x1628] sm:$0xff]
      %v1074 = vld [vmem:[%s2 + $0x1630] sm:$0xff]
      %v1075 = vld [vmem:[%s2 + $0x1638] sm:$0xff]
      %v1076 = vld [vmem:[%s2 + $0x1640] sm:$0xff]
      %v1077 = vld [vmem:[%s2 + $0x1648] sm:$0xff]
      %v1078 = vld [vmem:[%s2 + $0x1650] sm:$0xff]
      %v1079 = vld [vmem:[%s2 + $0x1658] sm:$0xff]
      %v1080 = vld [vmem:[%s2 + $0x1660] sm:$0xff]
      %v1081 = vld [vmem:[%s2 + $0x1668] sm:$0xff]
      %v1082 = vld [vmem:[%s2 + $0x1670] sm:$0xff]
      %v1083 = vld [vmem:[%s2 + $0x1678] sm:$0xff]
      %v1084 = vld [vmem:[%s2 + $0x1680] sm:$0xff]
      %v1085 = vld [vmem:[%s2 + $0x1688] sm:$0xff]
      %v1086 = vld [vmem:[%s2 + $0x1690] sm:$0xff]
      %v1087 = vld [vmem:[%s2 + $0x1698] sm:$0xff]
      %v1088 = vld [vmem:[%s2 + $0x16a0] sm:$0xff]
      %v1089 = vld [vmem:[%s2 + $0x16a8] sm:$0xff]
      %v1090 = vld [vmem:[%s2 + $0x16b0] sm:$0xff]
      %v1091 = vld [vmem:[%s2 + $0x16b8] sm:$0xff]
      %v1092 = vld [vmem:[%s2 + $0x16c0] sm:$0xff]
      %v1093 = vld [vmem:[%s2 + $0x16c8] sm:$0xff]
      %v1094 = vld [vmem:[%s2 + $0x16d0] sm:$0xff]
      %v1095 = vld [vmem:[%s2 + $0x16d8] sm:$0xff]
      %v1096 = vld [vmem:[%s2 + $0x16e0] sm:$0xff]
      %v1097 = vld [vmem:[%s2 + $0x16e8] sm:$0xff]
      %v1098 = vld [vmem:[%s2 + $0x16f0] sm:$0xff]
      %v1099 = vld [vmem:[%s2 + $0x16f8] sm:$0xff]
      %v1100 = vld [vmem:[%s2 + $0x1700] sm:$0xff]
      %v1101 = vld [vmem:[%s2 + $0x1708] sm:$0xff]
      %v1102 = vld [vmem:[%s2 + $0x1710] sm:$0xff]
      %v1103 = vld [vmem:[%s2 + $0x1718] sm:$0xff]
      %v1104 = vld [vmem:[%s2 + $0x1720] sm:$0xff]
      %v1105 = vld [vmem:[%s2 + $0x1728] sm:$0xff]
      %v1106 = vld [vmem:[%s2 + $0x1730] sm:$0xff]
      %v1107 = vld [vmem:[%s2 + $0x1738] sm:$0xff]
      %v1108 = vld [vmem:[%s2 + $0x1740] sm:$0xff]
      %v1109 = vld [vmem:[%s2 + $0x1748] sm:$0xff]
      %v1110 = vld [vmem:[%s2 + $0x1750] sm:$0xff]
      %v1111 = vld [vmem:[%s2 + $0x1758] sm:$0xff]
      %v1112 = vld [vmem:[%s2 + $0x1760] sm:$0xff]
      %v1113 = vld [vmem:[%s2 + $0x1768] sm:$0xff]
      %v1114 = vld [vmem:[%s2 + $0x1770] sm:$0xff]
      %v1115 = vld [vmem:[%s2 + $0x1778] sm:$0xff]
      %v1116 = vld [vmem:[%s2 + $0x1780] sm:$0xff]
      %v1117 = vld [vmem:[%s2 + $0x1788] sm:$0xff]
      %v1118 = vld [vmem:[%s2 + $0x1790] sm:$0xff]
      %v1119 = vld [vmem:[%s2 + $0x1798] sm:$0xff]
      %v1120 = vld [vmem:[%s2 + $0x17a0] sm:$0xff]
      %v1121 = vld [vmem:[%s2 + $0x17a8] sm:$0xff]
      %v1122 = vld [vmem:[%s2 + $0x17b0] sm:$0xff]
      %v1123 = vld [vmem:[%s2 + $0x17b8] sm:$0xff]
      %v1124 = vld [vmem:[%s2 + $0x17c0] sm:$0xff]
      %v1125 = vld [vmem:[%s2 + $0x17c8] sm:$0xff]
      %v1126 = vld [vmem:[%s2 + $0x17d0] sm:$0xff]
      %v1127 = vld [vmem:[%s2 + $0x17d8] sm:$0xff]
      %v1128 = vld [vmem:[%s2 + $0x17e0] sm:$0xff]
      %v1129 = vld [vmem:[%s2 + $0x17e8] sm:$0xff]
      %v1130 = vld [vmem:[%s2 + $0x17f0] sm:$0xff]
      %v1131 = vld [vmem:[%s2 + $0x17f8] sm:$0xff]
      %v1132 = vld [vmem:[%s2 + $0x1800] sm:$0xff]
      %v1133 = vld [vmem:[%s2 + $0x1808] sm:$0xff]
      %v1134 = vld [vmem:[%s2 + $0x1810] sm:$0xff]
      %v1135 = vld [vmem:[%s2 + $0x1818] sm:$0xff]
      %v1136 = vld [vmem:[%s2 + $0x1820] sm:$0xff]
      %v1137 = vld [vmem:[%s2 + $0x1828] sm:$0xff]
      %v1138 = vld [vmem:[%s2 + $0x1830] sm:$0xff]
      %v1139 = vld [vmem:[%s2 + $0x1838] sm:$0xff]
      %v1140 = vld [vmem:[%s2 + $0x1840] sm:$0xff]
      %v1141 = vld [vmem:[%s2 + $0x1848] sm:$0xff]
      %v1142 = vld [vmem:[%s2 + $0x1850] sm:$0xff]
      %v1143 = vld [vmem:[%s2 + $0x1858] sm:$0xff]
      %v1144 = vld [vmem:[%s2 + $0x1860] sm:$0xff]
      %v1145 = vld [vmem:[%s2 + $0x1868] sm:$0xff]
      %v1146 = vld [vmem:[%s2 + $0x1870] sm:$0xff]
      %v1147 = vld [vmem:[%s2 + $0x1878] sm:$0xff]
      %v1148 = vld [vmem:[%s2 + $0x1880] sm:$0xff]
      %v1149 = vld [vmem:[%s2 + $0x1888] sm:$0xff]
      %v1150 = vld [vmem:[%s2 + $0x1890] sm:$0xff]
      %v1151 = vld [vmem:[%s2 + $0x1898] sm:$0xff]
      %v1152 = vld [vmem:[%s2 + $0x18a0] sm:$0xff]
      %v1153 = vld [vmem:[%s2 + $0x18a8] sm:$0xff]
      %v1154 = vld [vmem:[%s2 + $0x18b0] sm:$0xff]
      %v1155 = vld [vmem:[%s2 + $0x18b8] sm:$0xff]
      %v1156 = vld [vmem:[%s2 + $0x18c0] sm:$0xff]
      %v1157 = vld [vmem:[%s2 + $0x18c8] sm:$0xff]
      %v1158 = vld [vmem:[%s2 + $0x18d0] sm:$0xff]
      %v1159 = vld [vmem:[%s2 + $0x18d8] sm:$0xff]
      %v1160 = vld [vmem:[%s2 + $0x18e0] sm:$0xff]
      %v1161 = vld [vmem:[%s2 + $0x18e8] sm:$0xff]
      %v1162 = vld [vmem:[%s2 + $0x18f0] sm:$0xff]
      %v1163 = vld [vmem:[%s2 + $0x18f8] sm:$0xff]
      %v1164 = vld [vmem:[%s2 + $0x1900] sm:$0xff]
      %v1165 = vld [vmem:[%s2 + $0x1908] sm:$0xff]
      %v1166 = vld [vmem:[%s2 + $0x1910] sm:$0xff]
      %v1167 = vld [vmem:[%s2 + $0x1918] sm:$0xff]
      %v1168 = vld [vmem:[%s2 + $0x1920] sm:$0xff]
      %v1169 = vld [vmem:[%s2 + $0x1928] sm:$0xff]
      %v1170 = vld [vmem:[%s2 + $0x1930] sm:$0xff]
      %v1171 = vld [vmem:[%s2 + $0x1938] sm:$0xff]
      %v1172 = vld [vmem:[%s2 + $0x1940] sm:$0xff]
      %v1173 = vld [vmem:[%s2 + $0x1948] sm:$0xff]
      %v1174 = vld [vmem:[%s2 + $0x1950] sm:$0xff]
      %v1175 = vld [vmem:[%s2 + $0x1958] sm:$0xff]
      %v1176 = vld [vmem:[%s2 + $0x1960] sm:$0xff]
      %v1177 = vld [vmem:[%s2 + $0x1968] sm:$0xff]
      %v1178 = vld [vmem:[%s2 + $0x1970] sm:$0xff]
      %v1179 = vld [vmem:[%s2 + $0x1978] sm:$0xff]
      %v1180 = vld [vmem:[%s2 + $0x1980] sm:$0xff]
      %v1181 = vld [vmem:[%s2 + $0x1988] sm:$0xff]
      %v1182 = vld [vmem:[%s2 + $0x1990] sm:$0xff]
      %v1183 = vld [vmem:[%s2 + $0x1998] sm:$0xff]
      %v1184 = vld [vmem:[%s2 + $0x19a0] sm:$0xff]
      %v1185 = vld [vmem:[%s2 + $0x19a8] sm:$0xff]
      %v1186 = vld [vmem:[%s2 + $0x19b0] sm:$0xff]
      %v1187 = vld [vmem:[%s2 + $0x19b8] sm:$0xff]
      %v1188 = vld [vmem:[%s2 + $0x19c0] sm:$0xff]
      %v1189 = vld [vmem:[%s2 + $0x19c8] sm:$0xff]
      %v1190 = vld [vmem:[%s2 + $0x19d0] sm:$0xff]
      %v1191 = vld [vmem:[%s2 + $0x19d8] sm:$0xff]
      %v1192 = vld [vmem:[%s2 + $0x19e0] sm:$0xff]
      %v1193 = vld [vmem:[%s2 + $0x19e8] sm:$0xff]
      %v1194 = vld [vmem:[%s2 + $0x19f0] sm:$0xff]
      %v1195 = vld [vmem:[%s2 + $0x19f8] sm:$0xff]
      %v1196 = vld [vmem:[%s2 + $0x1a00] sm:$0xff]
      %v1197 = vld [vmem:[%s2 + $0x1a08] sm:$0xff]
      %v1198 = vld [vmem:[%s2 + $0x1a10] sm:$0xff]
      %v1199 = vld [vmem:[%s2 + $0x1a18] sm:$0xff]
      %v1200 = vld [vmem:[%s2 + $0x1a20] sm:$0xff]
      %v1201 = vld [vmem:[%s2 + $0x1a28] sm:$0xff]
      %v1202 = vld [vmem:[%s2 + $0x1a30] sm:$0xff]
      %v1203 = vld [vmem:[%s2 + $0x1a38] sm:$0xff]
      %v1204 = vld [vmem:[%s2 + $0x1a40] sm:$0xff]
      %v1205 = vld [vmem:[%s2 + $0x1a48] sm:$0xff]
      %v1206 = vld [vmem:[%s2 + $0x1a50] sm:$0xff]
      %v1207 = vld [vmem:[%s2 + $0x1a58] sm:$0xff]
      %v1208 = vld [vmem:[%s2 + $0x1a60] sm:$0xff]
      %v1209 = vld [vmem:[%s2 + $0x1a68] sm:$0xff]
      %v1210 = vld [vmem:[%s2 + $0x1a70] sm:$0xff]
      %v1211 = vld [vmem:[%s2 + $0x1a78] sm:$0xff]
      %v1212 = vld [vmem:[%s2 + $0x1a80] sm:$0xff]
      %v1213 = vld [vmem:[%s2 + $0x1a88] sm:$0xff]
      %v1214 = vld [vmem:[%s2 + $0x1a90] sm:$0xff]
      %v1215 = vld [vmem:[%s2 + $0x1a98] sm:$0xff]
      %v1216 = vld [vmem:[%s2 + $0x1aa0] sm:$0xff]
      %v1217 = vld [vmem:[%s2 + $0x1aa8] sm:$0xff]
      %v1218 = vld [vmem:[%s2 + $0x1ab0] sm:$0xff]
      %v1219 = vld [vmem:[%s2 + $0x1ab8] sm:$0xff]
      %v1220 = vld [vmem:[%s2 + $0x1ac0] sm:$0xff]
      %v1221 = vld [vmem:[%s2 + $0x1ac8] sm:$0xff]
      %v1222 = vld [vmem:[%s2 + $0x1ad0] sm:$0xff]
      %v1223 = vld [vmem:[%s2 + $0x1ad8] sm:$0xff]
      %v1224 = vld [vmem:[%s2 + $0x1ae0] sm:$0xff]
      %v1225 = vld [vmem:[%s2 + $0x1ae8] sm:$0xff]
      %v1226 = vld [vmem:[%s2 + $0x1af0] sm:$0xff]
      %v1227 = vld [vmem:[%s2 + $0x1af8] sm:$0xff]
      %v1228 = vld [vmem:[%s2 + $0x1b00] sm:$0xff]
      %v1229 = vld [vmem:[%s2 + $0x1b08] sm:$0xff]
      %v1230 = vld [vmem:[%s2 + $0x1b10] sm:$0xff]
      %v1231 = vld [vmem:[%s2 + $0x1b18] sm:$0xff]
      %v1232 = vld [vmem:[%s2 + $0x1b20] sm:$0xff]
      %v1233 = vld [vmem:[%s2 + $0x1b28] sm:$0xff]
      %v1234 = vld [vmem:[%s2 + $0x1b30] sm:$0xff]
      %v1235 = vld [vmem:[%s2 + $0x1b38] sm:$0xff]
      %v1236 = vld [vmem:[%s2 + $0x1b40] sm:$0xff]
      %v1237 = vld [vmem:[%s2 + $0x1b48] sm:$0xff]
      %v1238 = vld [vmem:[%s2 + $0x1b50] sm:$0xff]
      %v1239 = vld [vmem:[%s2 + $0x1b58] sm:$0xff]
      %v1240 = vld [vmem:[%s2 + $0x1b60] sm:$0xff]
      %v1241 = vld [vmem:[%s2 + $0x1b68] sm:$0xff]
      %v1242 = vld [vmem:[%s2 + $0x1b70] sm:$0xff]
      %v1243 = vld [vmem:[%s2 + $0x1b78] sm:$0xff]
      %v1244 = vld [vmem:[%s2 + $0x1b80] sm:$0xff]
      %v1245 = vld [vmem:[%s2 + $0x1b88] sm:$0xff]
      %v1246 = vld [vmem:[%s2 + $0x1b90] sm:$0xff]
      %v1247 = vld [vmem:[%s2 + $0x1b98] sm:$0xff]
      %v1248 = vld [vmem:[%s2 + $0x1ba0] sm:$0xff]
      %v1249 = vld [vmem:[%s2 + $0x1ba8] sm:$0xff]
      %v1250 = vld [vmem:[%s2 + $0x1bb0] sm:$0xff]
      %v1251 = vld [vmem:[%s2 + $0x1bb8] sm:$0xff]
      %v1252 = vld [vmem:[%s2 + $0x1bc0] sm:$0xff]
      %v1253 = vld [vmem:[%s2 + $0x1bc8] sm:$0xff]
      %v1254 = vld [vmem:[%s2 + $0x1bd0] sm:$0xff]
      %v1255 = vld [vmem:[%s2 + $0x1bd8] sm:$0xff]
      %v1256 = vld [vmem:[%s2 + $0x1be0] sm:$0xff]
      %v1257 = vld [vmem:[%s2 + $0x1be8] sm:$0xff]
      %v1258 = vld [vmem:[%s2 + $0x1bf0] sm:$0xff]
      %v1259 = vld [vmem:[%s2 + $0x1bf8] sm:$0xff]
      %v1260 = vld [vmem:[%s2 + $0x1c00] sm:$0xff]
      %v1261 = vld [vmem:[%s2 + $0x1c08] sm:$0xff]
      %v1262 = vld [vmem:[%s2 + $0x1c10] sm:$0xff]
      %v1263 = vld [vmem:[%s2 + $0x1c18] sm:$0xff]
      %v1264 = vld [vmem:[%s2 + $0x1c20] sm:$0xff]
      %v1265 = vld [vmem:[%s2 + $0x1c28] sm:$0xff]
      %v1266 = vld [vmem:[%s2 + $0x1c30] sm:$0xff]
      %v1267 = vld [vmem:[%s2 + $0x1c38] sm:$0xff]
      %v1268 = vld [vmem:[%s2 + $0x1c40] sm:$0xff]
      %v1269 = vld [vmem:[%s2 + $0x1c48] sm:$0xff]
      %v1270 = vld [vmem:[%s2 + $0x1c50] sm:$0xff]
      %v1271 = vld [vmem:[%s2 + $0x1c58] sm:$0xff]
      %v1272 = vld [vmem:[%s2 + $0x1c60] sm:$0xff]
      %v1273 = vld [vmem:[%s2 + $0x1c68] sm:$0xff]
      %v1274 = vld [vmem:[%s2 + $0x1c70] sm:$0xff]
      %v1275 = vld [vmem:[%s2 + $0x1c78] sm:$0xff]
      %v1276 = vld [vmem:[%s2 + $0x1c80] sm:$0xff]
      %v1277 = vld [vmem:[%s2 + $0x1c88] sm:$0xff]
      %v1278 = vld [vmem:[%s2 + $0x1c90] sm:$0xff]
      %v1279 = vld [vmem:[%s2 + $0x1c98] sm:$0xff]
      %v1280 = vld [vmem:[%s2 + $0x1ca0] sm:$0xff]
      %v1281 = vld [vmem:[%s2 + $0x1ca8] sm:$0xff]
      %v1282 = vld [vmem:[%s2 + $0x1cb0] sm:$0xff]
      %v1283 = vld [vmem:[%s2 + $0x1cb8] sm:$0xff]
      %v1284 = vld [vmem:[%s2 + $0x1cc0] sm:$0xff]
      %v1285 = vld [vmem:[%s2 + $0x1cc8] sm:$0xff]
      %v1286 = vld [vmem:[%s2 + $0x1cd0] sm:$0xff]
      %v1287 = vld [vmem:[%s2 + $0x1cd8] sm:$0xff]
      %v1288 = vld [vmem:[%s2 + $0x1ce0] sm:$0xff]
      %v1289 = vld [vmem:[%s2 + $0x1ce8] sm:$0xff]
      %v1290 = vld [vmem:[%s2 + $0x1cf0] sm:$0xff]
      %v1291 = vld [vmem:[%s2 + $0x1cf8] sm:$0xff]
      %v1292 = vld [vmem:[%s2 + $0x1d00] sm:$0xff]
      %v1293 = vld [vmem:[%s2 + $0x1d08] sm:$0xff]
      %v1294 = vld [vmem:[%s2 + $0x1d10] sm:$0xff]
      %v1295 = vld [vmem:[%s2 + $0x1d18] sm:$0xff]
      %v1296 = vld [vmem:[%s2 + $0x1d20] sm:$0xff]
      %v1297 = vld [vmem:[%s2 + $0x1d28] sm:$0xff]
      %v1298 = vld [vmem:[%s2 + $0x1d30] sm:$0xff]
      %v1299 = vld [vmem:[%s2 + $0x1d38] sm:$0xff]
      %v1300 = vld [vmem:[%s2 + $0x1d40] sm:$0xff]
      %v1301 = vld [vmem:[%s2 + $0x1d48] sm:$0xff]
      %v1302 = vld [vmem:[%s2 + $0x1d50] sm:$0xff]
      %v1303 = vld [vmem:[%s2 + $0x1d58] sm:$0xff]
      %v1304 = vld [vmem:[%s2 + $0x1d60] sm:$0xff]
      %v1305 = vld [vmem:[%s2 + $0x1d68] sm:$0xff]
      %v1306 = vld [vmem:[%s2 + $0x1d70] sm:$0xff]
      %v1307 = vld [vmem:[%s2 + $0x1d78] sm:$0xff]
      %v1308 = vld [vmem:[%s2 + $0x1d80] sm:$0xff]
      %v1309 = vld [vmem:[%s2 + $0x1d88] sm:$0xff]
      %v1310 = vld [vmem:[%s2 + $0x1d90] sm:$0xff]
      %v1311 = vld [vmem:[%s2 + $0x1d98] sm:$0xff]
      %v1312 = vld [vmem:[%s2 + $0x1da0] sm:$0xff]
      %v1313 = vld [vmem:[%s2 + $0x1da8] sm:$0xff]
      %v1314 = vld [vmem:[%s2 + $0x1db0] sm:$0xff]
      %v1315 = vld [vmem:[%s2 + $0x1db8] sm:$0xff]
      %v1316 = vld [vmem:[%s2 + $0x1dc0] sm:$0xff]
      %v1317 = vld [vmem:[%s2 + $0x1dc8] sm:$0xff]
      %v1318 = vld [vmem:[%s2 + $0x1dd0] sm:$0xff]
      %v1319 = vld [vmem:[%s2 + $0x1dd8] sm:$0xff]
      %v1320 = vld [vmem:[%s2 + $0x1de0] sm:$0xff]
      %v1321 = vld [vmem:[%s2 + $0x1de8] sm:$0xff]
      %v1322 = vld [vmem:[%s2 + $0x1df0] sm:$0xff]
      %v1323 = vld [vmem:[%s2 + $0x1df8] sm:$0xff]
      %v1327 = vcombine.high %v358, %v358
      %v1329 = vunpack.c.l.s4 1983009808
      %v1330 = vunpack.c.0.s8 %v1329
      %v1331 = vlaneseq
      %v1332 = vshrl.u32 %v1331, 7
      %v1333 = vsub.s32 %v1330, %v1332
      %v1334 = vrot.slane %v358, %v1333
      %v1336 = vunpack.c.l.s4 1983009808
      %v1337 = vunpack.c.0.s8 %v1336
      %v1338 = vlaneseq
      %v1339 = vshrl.u32 %v1338, 7
      %v1340 = vsub.s32 %v1337, %v1339
      %v1341 = vrot.slane %v1327, %v1340
      %v1342 = vcombine.high %v1334, %v1334
      %v1343 = vcombine.high %v1341, %v1341
      %v1344 = vcombine.high %v359, %v359
      %v1346 = vunpack.c.l.s4 1983009808
      %v1347 = vunpack.c.0.s8 %v1346
      %v1348 = vlaneseq
      %v1349 = vshrl.u32 %v1348, 7
      %v1350 = vsub.s32 %v1347, %v1349
      %v1351 = vrot.slane %v359, %v1350
      %v1353 = vunpack.c.l.s4 1983009808
      %v1354 = vunpack.c.0.s8 %v1353
      %v1355 = vlaneseq
      %v1356 = vshrl.u32 %v1355, 7
      %v1357 = vsub.s32 %v1354, %v1356
      %v1358 = vrot.slane %v1344, %v1357
      %v1359 = vcombine.high %v1351, %v1351
      %v1360 = vcombine.high %v1358, %v1358
      %v1362 = vunpack.c.l.s4 1983009808
      %v1363 = vunpack.c.0.s8 %v1362
      %v1364 = vlaneseq
      %v1365 = vshrl.u32 %v1364, 7
      %v1366 = vsub.s32 %v1363, %v1365
      %v1367 = vrot.slane %v360, %v1366
      %v1368 = vcombine.high %v1367, %v1367
      %1379 = vmatprep.subr.mxu0 %v365
      %1380 = vmatpush1.msra.mxu0 %v364
      %1381 = vmatprep.subr.mxu0 %v371
      %1382 = vmatpush1.msra.mxu0 %v370
      %1383 = vmatprep.subr.mxu0 %v377
      %1384 = vmatpush1.msra.mxu0 %v376
      %1385 = vmatprep.subr.mxu0 %v383
      %1386 = vmatpush1.msra.mxu0 %v382
      %1387 = vmatprep.subr.mxu0 %v389
      %1388 = vmatpush1.msra.mxu0 %v388
      %1389 = vmatprep.subr.mxu0 %v395
      %1390 = vmatpush1.msra.mxu0 %v394
      %1391 = vmatprep.subr.mxu0 %v401
      %1392 = vmatpush1.msra.mxu0 %v400
      %1393 = vmatprep.subr.mxu0 %v407
      %1394 = vmatpush1.msra.mxu0 %v406
      %1395 = vmatprep.subr.mxu0 %v413
      %1396 = vmatpush1.msra.mxu0 %v412
      %1397 = vmatprep.subr.mxu0 %v419
      %1398 = vmatpush1.msra.mxu0 %v418
      %1399 = vmatprep.subr.mxu0 %v425
      %1400 = vmatpush1.msra.mxu0 %v424
      %1401 = vmatprep.subr.mxu0 %v431
      %1402 = vmatpush1.msra.mxu0 %v430
      %1403 = vmatprep.subr.mxu0 %v437
      %1404 = vmatpush1.msra.mxu0 %v436
      %1405 = vmatprep.subr.mxu0 %v443
      %1406 = vmatpush1.msra.mxu0 %v442
      %1407 = vmatprep.subr.mxu0 %v449
      %1408 = vmatpush1.msra.mxu0 %v448
      %1409 = vmatprep.subr.mxu0 %v455
      %1410 = vmatpush1.msra.mxu0 %v454
      %1411 = vmatprep.subr.mxu0 %v461
      %1412 = vmatpush1.msra.mxu0 %v460
      %1413 = vmatprep.subr.mxu0 %v467
      %1414 = vmatpush1.msra.mxu0 %v466
      %1415 = vmatprep.subr.mxu0 %v473
      %1416 = vmatpush1.msra.mxu0 %v472
      %1417 = vmatprep.subr.mxu0 %v479
      %1418 = vmatpush1.msra.mxu0 %v478
      %1419 = vmatprep.subr.mxu0 %v485
      %1420 = vmatpush1.msra.mxu0 %v484
      %1421 = vmatprep.subr.mxu0 %v491
      %1422 = vmatpush1.msra.mxu0 %v490
      %1423 = vmatprep.subr.mxu0 %v497
      %1424 = vmatpush1.msra.mxu0 %v496
      %1425 = vmatprep.subr.mxu0 %v503
      %1426 = vmatpush1.msra.mxu0 %v502
      %1427 = vmatprep.subr.mxu0 %v509
      %1428 = vmatpush1.msra.mxu0 %v508
      %1429 = vmatprep.subr.mxu0 %v515
      %1430 = vmatpush1.msra.mxu0 %v514
      %1431 = vmatprep.subr.mxu0 %v521
      %1432 = vmatpush1.msra.mxu0 %v520
      %1433 = vmatprep.subr.mxu0 %v527
      %1434 = vmatpush1.msra.mxu0 %v526
      %1435 = vmatprep.subr.mxu0 %v533
      %1436 = vmatpush1.msra.mxu0 %v532
      %1437 = vmatprep.subr.mxu0 %v539
      %1438 = vmatpush1.msra.mxu0 %v538
      %1439 = vmatprep.subr.mxu0 %v545
      %1440 = vmatpush1.msra.mxu0 %v544
      %1441 = vmatprep.subr.mxu0 %v551
      %1442 = vmatpush1.msra.mxu0 %v550
      %1443 = vmatprep.mubr.f32.mxu0 %v1342
      %1444 = vmatmul.mubr.f32.gmra.mrb[0].mxu0 %v1334
      %v1445 = vpop.f32.mrb[0].mxu0
      %v1446 = vadd.f32 0.0, %v1445
      %v1447 = vpop.f32.mrb[0].mxu0
      %v1448 = vadd.f32 0.0, %v1447
      %1449 = vdwg.mxu0
      %1450 = vmatprep.subr.mxu0 %v557
      %1451 = vmatpush1.msra.mxu0 %v556
      %1452 = vmatprep.subr.mxu0 %v563
      %1453 = vmatpush1.msra.mxu0 %v562
      %1454 = vmatprep.subr.mxu0 %v569
      %1455 = vmatpush1.msra.mxu0 %v568
      %1456 = vmatprep.subr.mxu0 %v575
      %1457 = vmatpush1.msra.mxu0 %v574
      %1458 = vmatprep.subr.mxu0 %v581
      %1459 = vmatpush1.msra.mxu0 %v580
      %1460 = vmatprep.subr.mxu0 %v587
      %1461 = vmatpush1.msra.mxu0 %v586
      %1462 = vmatprep.subr.mxu0 %v593
      %1463 = vmatpush1.msra.mxu0 %v592
      %1464 = vmatprep.subr.mxu0 %v599
      %1465 = vmatpush1.msra.mxu0 %v598
      %1466 = vmatprep.subr.mxu0 %v605
      %1467 = vmatpush1.msra.mxu0 %v604
      %1468 = vmatprep.subr.mxu0 %v611
      %1469 = vmatpush1.msra.mxu0 %v610
      %1470 = vmatprep.subr.mxu0 %v617
      %1471 = vmatpush1.msra.mxu0 %v616
      %1472 = vmatprep.subr.mxu0 %v623
      %1473 = vmatpush1.msra.mxu0 %v622
      %1474 = vmatprep.subr.mxu0 %v629
      %1475 = vmatpush1.msra.mxu0 %v628
      %1476 = vmatprep.subr.mxu0 %v635
      %1477 = vmatpush1.msra.mxu0 %v634
      %1478 = vmatprep.subr.mxu0 %v641
      %1479 = vmatpush1.msra.mxu0 %v640
      %1480 = vmatprep.subr.mxu0 %v647
      %1481 = vmatpush1.msra.mxu0 %v646
      %1482 = vmatprep.subr.mxu0 %v653
      %1483 = vmatpush1.msra.mxu0 %v652
      %1484 = vmatprep.subr.mxu0 %v659
      %1485 = vmatpush1.msra.mxu0 %v658
      %1486 = vmatprep.subr.mxu0 %v665
      %1487 = vmatpush1.msra.mxu0 %v664
      %1488 = vmatprep.subr.mxu0 %v671
      %1489 = vmatpush1.msra.mxu0 %v670
      %1490 = vmatprep.subr.mxu0 %v677
      %1491 = vmatpush1.msra.mxu0 %v676
      %1492 = vmatprep.subr.mxu0 %v683
      %1493 = vmatpush1.msra.mxu0 %v682
      %1494 = vmatprep.subr.mxu0 %v689
      %1495 = vmatpush1.msra.mxu0 %v688
      %1496 = vmatprep.subr.mxu0 %v695
      %1497 = vmatpush1.msra.mxu0 %v694
      %1498 = vmatprep.subr.mxu0 %v701
      %1499 = vmatpush1.msra.mxu0 %v700
      %1500 = vmatprep.subr.mxu0 %v707
      %1501 = vmatpush1.msra.mxu0 %v706
      %1502 = vmatprep.subr.mxu0 %v713
      %1503 = vmatpush1.msra.mxu0 %v712
      %1504 = vmatprep.subr.mxu0 %v719
      %1505 = vmatpush1.msra.mxu0 %v718
      %1506 = vmatprep.subr.mxu0 %v725
      %1507 = vmatpush1.msra.mxu0 %v724
      %1508 = vmatprep.subr.mxu0 %v731
      %1509 = vmatpush1.msra.mxu0 %v730
      %1510 = vmatprep.subr.mxu0 %v737
      %1511 = vmatpush1.msra.mxu0 %v736
      %1512 = vmatprep.subr.mxu0 %v743
      %1513 = vmatpush1.msra.mxu0 %v742
      %1514 = vmatprep.mubr.f32.mxu0 %v1343
      %1515 = vmatmul.mubr.f32.gmra.mrb[0].mxu0 %v1341
      %v1516 = vpop.f32.mrb[0].mxu0
      %v1517 = vadd.f32 %v1446, %v1516
      %v1518 = vpop.f32.mrb[0].mxu0
      %v1519 = vadd.f32 %v1448, %v1518
      %1520 = vdwg.mxu0
      %1521 = vmatprep.subr.mxu0 %v749
      %1522 = vmatpush1.msra.mxu0 %v748
      %1523 = vmatprep.subr.mxu0 %v755
      %1524 = vmatpush1.msra.mxu0 %v754
      %1525 = vmatprep.subr.mxu0 %v761
      %1526 = vmatpush1.msra.mxu0 %v760
      %1527 = vmatprep.subr.mxu0 %v767
      %1528 = vmatpush1.msra.mxu0 %v766
      %1529 = vmatprep.subr.mxu0 %v773
      %1530 = vmatpush1.msra.mxu0 %v772
      %1531 = vmatprep.subr.mxu0 %v779
      %1532 = vmatpush1.msra.mxu0 %v778
      %1533 = vmatprep.subr.mxu0 %v785
      %1534 = vmatpush1.msra.mxu0 %v784
      %1535 = vmatprep.subr.mxu0 %v791
      %1536 = vmatpush1.msra.mxu0 %v790
      %1537 = vmatprep.subr.mxu0 %v797
      %1538 = vmatpush1.msra.mxu0 %v796
      %1539 = vmatprep.subr.mxu0 %v803
      %1540 = vmatpush1.msra.mxu0 %v802
      %1541 = vmatprep.subr.mxu0 %v809
      %1542 = vmatpush1.msra.mxu0 %v808
      %1543 = vmatprep.subr.mxu0 %v815
      %1544 = vmatpush1.msra.mxu0 %v814
      %1545 = vmatprep.subr.mxu0 %v821
      %1546 = vmatpush1.msra.mxu0 %v820
      %1547 = vmatprep.subr.mxu0 %v827
      %1548 = vmatpush1.msra.mxu0 %v826
      %1549 = vmatprep.subr.mxu0 %v833
      %1550 = vmatpush1.msra.mxu0 %v832
      %1551 = vmatprep.subr.mxu0 %v839
      %1552 = vmatpush1.msra.mxu0 %v838
      %1553 = vmatprep.subr.mxu0 %v845
      %1554 = vmatpush1.msra.mxu0 %v844
      %1555 = vmatprep.subr.mxu0 %v851
      %1556 = vmatpush1.msra.mxu0 %v850
      %1557 = vmatprep.subr.mxu0 %v857
      %1558 = vmatpush1.msra.mxu0 %v856
      %1559 = vmatprep.subr.mxu0 %v863
      %1560 = vmatpush1.msra.mxu0 %v862
      %1561 = vmatprep.subr.mxu0 %v869
      %1562 = vmatpush1.msra.mxu0 %v868
      %1563 = vmatprep.subr.mxu0 %v875
      %1564 = vmatpush1.msra.mxu0 %v874
      %1565 = vmatprep.subr.mxu0 %v881
      %1566 = vmatpush1.msra.mxu0 %v880
      %1567 = vmatprep.subr.mxu0 %v887
      %1568 = vmatpush1.msra.mxu0 %v886
      %1569 = vmatprep.subr.mxu0 %v893
      %1570 = vmatpush1.msra.mxu0 %v892
      %1571 = vmatprep.subr.mxu0 %v899
      %1572 = vmatpush1.msra.mxu0 %v898
      %1573 = vmatprep.subr.mxu0 %v905
      %1574 = vmatpush1.msra.mxu0 %v904
      %1575 = vmatprep.subr.mxu0 %v911
      %1576 = vmatpush1.msra.mxu0 %v910
      %1577 = vmatprep.subr.mxu0 %v917
      %1578 = vmatpush1.msra.mxu0 %v916
      %1579 = vmatprep.subr.mxu0 %v923
      %1580 = vmatpush1.msra.mxu0 %v922
      %1581 = vmatprep.subr.mxu0 %v929
      %1582 = vmatpush1.msra.mxu0 %v928
      %1583 = vmatprep.subr.mxu0 %v935
      %1584 = vmatpush1.msra.mxu0 %v934
      %1585 = vmatprep.mubr.f32.mxu0 %v1359
      %1586 = vmatmul.mubr.f32.gmra.mrb[0].mxu0 %v1351
      %v1587 = vpop.f32.mrb[0].mxu0
      %v1588 = vadd.f32 %v1517, %v1587
      %v1589 = vpop.f32.mrb[0].mxu0
      %v1590 = vadd.f32 %v1519, %v1589
      %1591 = vdwg.mxu0
      %1592 = vmatprep.subr.mxu0 %v941
      %1593 = vmatpush1.msra.mxu0 %v940
      %1594 = vmatprep.subr.mxu0 %v947
      %1595 = vmatpush1.msra.mxu0 %v946
      %1596 = vmatprep.subr.mxu0 %v953
      %1597 = vmatpush1.msra.mxu0 %v952
      %1598 = vmatprep.subr.mxu0 %v959
      %1599 = vmatpush1.msra.mxu0 %v958
      %1600 = vmatprep.subr.mxu0 %v965
      %1601 = vmatpush1.msra.mxu0 %v964
      %1602 = vmatprep.subr.mxu0 %v971
      %1603 = vmatpush1.msra.mxu0 %v970
      %1604 = vmatprep.subr.mxu0 %v977
      %1605 = vmatpush1.msra.mxu0 %v976
      %1606 = vmatprep.subr.mxu0 %v983
      %1607 = vmatpush1.msra.mxu0 %v982
      %1608 = vmatprep.subr.mxu0 %v989
      %1609 = vmatpush1.msra.mxu0 %v988
      %1610 = vmatprep.subr.mxu0 %v995
      %1611 = vmatpush1.msra.mxu0 %v994
      %1612 = vmatprep.subr.mxu0 %v1001
      %1613 = vmatpush1.msra.mxu0 %v1000
      %1614 = vmatprep.subr.mxu0 %v1007
      %1615 = vmatpush1.msra.mxu0 %v1006
      %1616 = vmatprep.subr.mxu0 %v1013
      %1617 = vmatpush1.msra.mxu0 %v1012
      %1618 = vmatprep.subr.mxu0 %v1019
      %1619 = vmatpush1.msra.mxu0 %v1018
      %1620 = vmatprep.subr.mxu0 %v1025
      %1621 = vmatpush1.msra.mxu0 %v1024
      %1622 = vmatprep.subr.mxu0 %v1031
      %1623 = vmatpush1.msra.mxu0 %v1030
      %1624 = vmatprep.subr.mxu0 %v1037
      %1625 = vmatpush1.msra.mxu0 %v1036
      %1626 = vmatprep.subr.mxu0 %v1043
      %1627 = vmatpush1.msra.mxu0 %v1042
      %1628 = vmatprep.subr.mxu0 %v1049
      %1629 = vmatpush1.msra.mxu0 %v1048
      %1630 = vmatprep.subr.mxu0 %v1055
      %1631 = vmatpush1.msra.mxu0 %v1054
      %1632 = vmatprep.subr.mxu0 %v1061
      %1633 = vmatpush1.msra.mxu0 %v1060
      %1634 = vmatprep.subr.mxu0 %v1067
      %1635 = vmatpush1.msra.mxu0 %v1066
      %1636 = vmatprep.subr.mxu0 %v1073
      %1637 = vmatpush1.msra.mxu0 %v1072
      %1638 = vmatprep.subr.mxu0 %v1079
      %1639 = vmatpush1.msra.mxu0 %v1078
      %1640 = vmatprep.subr.mxu0 %v1085
      %1641 = vmatpush1.msra.mxu0 %v1084
      %1642 = vmatprep.subr.mxu0 %v1091
      %1643 = vmatpush1.msra.mxu0 %v1090
      %1644 = vmatprep.subr.mxu0 %v1097
      %1645 = vmatpush1.msra.mxu0 %v1096
      %1646 = vmatprep.subr.mxu0 %v1103
      %1647 = vmatpush1.msra.mxu0 %v1102
      %1648 = vmatprep.subr.mxu0 %v1109
      %1649 = vmatpush1.msra.mxu0 %v1108
      %1650 = vmatprep.subr.mxu0 %v1115
      %1651 = vmatpush1.msra.mxu0 %v1114
      %1652 = vmatprep.subr.mxu0 %v1121
      %1653 = vmatpush1.msra.mxu0 %v1120
      %1654 = vmatprep.subr.mxu0 %v1127
      %1655 = vmatpush1.msra.mxu0 %v1126
      %1656 = vmatprep.mubr.f32.mxu0 %v1360
      %1657 = vmatmul.mubr.f32.gmra.mrb[0].mxu0 %v1358
      %v1658 = vpop.f32.mrb[0].mxu0
      %v1659 = vadd.f32 %v1588, %v1658
      %v1660 = vpop.f32.mrb[0].mxu0
      %v1661 = vadd.f32 %v1590, %v1660
      %1662 = vdwg.mxu0
      %1663 = vmatprep.subr.mxu0 %v1133
      %1664 = vmatpush1.msra.mxu0 %v1132
      %1665 = vmatprep.subr.mxu0 %v1139
      %1666 = vmatpush1.msra.mxu0 %v1138
      %1667 = vmatprep.subr.mxu0 %v1145
      %1668 = vmatpush1.msra.mxu0 %v1144
      %1669 = vmatprep.subr.mxu0 %v1151
      %1670 = vmatpush1.msra.mxu0 %v1150
      %1671 = vmatprep.subr.mxu0 %v1157
      %1672 = vmatpush1.msra.mxu0 %v1156
      %1673 = vmatprep.subr.mxu0 %v1163
      %1674 = vmatpush1.msra.mxu0 %v1162
      %1675 = vmatprep.subr.mxu0 %v1169
      %1676 = vmatpush1.msra.mxu0 %v1168
      %1677 = vmatprep.subr.mxu0 %v1175
      %1678 = vmatpush1.msra.mxu0 %v1174
      %1679 = vmatprep.subr.mxu0 %v1181
      %1680 = vmatpush1.msra.mxu0 %v1180
      %1681 = vmatprep.subr.mxu0 %v1187
      %1682 = vmatpush1.msra.mxu0 %v1186
      %1683 = vmatprep.subr.mxu0 %v1193
      %1684 = vmatpush1.msra.mxu0 %v1192
      %1685 = vmatprep.subr.mxu0 %v1199
      %1686 = vmatpush1.msra.mxu0 %v1198
      %1687 = vmatprep.subr.mxu0 %v1205
      %1688 = vmatpush1.msra.mxu0 %v1204
      %1689 = vmatprep.subr.mxu0 %v1211
      %1690 = vmatpush1.msra.mxu0 %v1210
      %1691 = vmatprep.subr.mxu0 %v1217
      %1692 = vmatpush1.msra.mxu0 %v1216
      %1693 = vmatprep.subr.mxu0 %v1223
      %1694 = vmatpush1.msra.mxu0 %v1222
      %1695 = vmatprep.subr.mxu0 %v1229
      %1696 = vmatpush1.msra.mxu0 %v1228
      %1697 = vmatprep.subr.mxu0 %v1235
      %1698 = vmatpush1.msra.mxu0 %v1234
      %1699 = vmatprep.subr.mxu0 %v1241
      %1700 = vmatpush1.msra.mxu0 %v1240
      %1701 = vmatprep.subr.mxu0 %v1247
      %1702 = vmatpush1.msra.mxu0 %v1246
      %1703 = vmatprep.subr.mxu0 %v1253
      %1704 = vmatpush1.msra.mxu0 %v1252
      %1705 = vmatprep.subr.mxu0 %v1259
      %1706 = vmatpush1.msra.mxu0 %v1258
      %1707 = vmatprep.subr.mxu0 %v1265
      %1708 = vmatpush1.msra.mxu0 %v1264
      %1709 = vmatprep.subr.mxu0 %v1271
      %1710 = vmatpush1.msra.mxu0 %v1270
      %1711 = vmatprep.subr.mxu0 %v1277
      %1712 = vmatpush1.msra.mxu0 %v1276
      %1713 = vmatprep.subr.mxu0 %v1283
      %1714 = vmatpush1.msra.mxu0 %v1282
      %1715 = vmatprep.subr.mxu0 %v1289
      %1716 = vmatpush1.msra.mxu0 %v1288
      %1717 = vmatprep.subr.mxu0 %v1295
      %1718 = vmatpush1.msra.mxu0 %v1294
      %1719 = vmatprep.subr.mxu0 %v1301
      %1720 = vmatpush1.msra.mxu0 %v1300
      %1721 = vmatprep.subr.mxu0 %v1307
      %1722 = vmatpush1.msra.mxu0 %v1306
      %1723 = vmatprep.subr.mxu0 %v1313
      %1724 = vmatpush1.msra.mxu0 %v1312
      %1725 = vmatprep.subr.mxu0 %v1319
      %1726 = vmatpush1.msra.mxu0 %v1318
      %1727 = vmatprep.mubr.f32.mxu0 %v1368
      %1728 = vmatmul.mubr.f32.gmra.mrb[0].mxu0 %v1367
      %v1729 = vpop.f32.mrb[0].mxu0
      %v1730 = vadd.f32 %v1659, %v1729
      %v1731 = vpop.f32.mrb[0].mxu0
      %v1732 = vadd.f32 %v1661, %v1731
      %1733 = vdwg.mxu0
      %1734 = vmatprep.subr.mxu0 %v367
      %1735 = vmatpush1.msra.mxu0 %v366
      %1736 = vmatprep.subr.mxu0 %v373
      %1737 = vmatpush1.msra.mxu0 %v372
      %1738 = vmatprep.subr.mxu0 %v379
      %1739 = vmatpush1.msra.mxu0 %v378
      %1740 = vmatprep.subr.mxu0 %v385
      %1741 = vmatpush1.msra.mxu0 %v384
      %1742 = vmatprep.subr.mxu0 %v391
      %1743 = vmatpush1.msra.mxu0 %v390
      %1744 = vmatprep.subr.mxu0 %v397
      %1745 = vmatpush1.msra.mxu0 %v396
      %1746 = vmatprep.subr.mxu0 %v403
      %1747 = vmatpush1.msra.mxu0 %v402
      %1748 = vmatprep.subr.mxu0 %v409
      %1749 = vmatpush1.msra.mxu0 %v408
      %1750 = vmatprep.subr.mxu0 %v415
      %1751 = vmatpush1.msra.mxu0 %v414
      %1752 = vmatprep.subr.mxu0 %v421
      %1753 = vmatpush1.msra.mxu0 %v420
      %1754 = vmatprep.subr.mxu0 %v427
      %1755 = vmatpush1.msra.mxu0 %v426
      %1756 = vmatprep.subr.mxu0 %v433
      %1757 = vmatpush1.msra.mxu0 %v432
      %1758 = vmatprep.subr.mxu0 %v439
      %1759 = vmatpush1.msra.mxu0 %v438
      %1760 = vmatprep.subr.mxu0 %v445
      %1761 = vmatpush1.msra.mxu0 %v444
      %1762 = vmatprep.subr.mxu0 %v451
      %1763 = vmatpush1.msra.mxu0 %v450
      %1764 = vmatprep.subr.mxu0 %v457
      %1765 = vmatpush1.msra.mxu0 %v456
      %1766 = vmatprep.subr.mxu0 %v463
      %1767 = vmatpush1.msra.mxu0 %v462
      %1768 = vmatprep.subr.mxu0 %v469
      %1769 = vmatpush1.msra.mxu0 %v468
      %1770 = vmatprep.subr.mxu0 %v475
      %1771 = vmatpush1.msra.mxu0 %v474
      %1772 = vmatprep.subr.mxu0 %v481
      %1773 = vmatpush1.msra.mxu0 %v480
      %1774 = vmatprep.subr.mxu0 %v487
      %1775 = vmatpush1.msra.mxu0 %v486
      %1776 = vmatprep.subr.mxu0 %v493
      %1777 = vmatpush1.msra.mxu0 %v492
      %1778 = vmatprep.subr.mxu0 %v499
      %1779 = vmatpush1.msra.mxu0 %v498
      %1780 = vmatprep.subr.mxu0 %v505
      %1781 = vmatpush1.msra.mxu0 %v504
      %1782 = vmatprep.subr.mxu0 %v511
      %1783 = vmatpush1.msra.mxu0 %v510
      %1784 = vmatprep.subr.mxu0 %v517
      %1785 = vmatpush1.msra.mxu0 %v516
      %1786 = vmatprep.subr.mxu0 %v523
      %1787 = vmatpush1.msra.mxu0 %v522
      %1788 = vmatprep.subr.mxu0 %v529
      %1789 = vmatpush1.msra.mxu0 %v528
      %1790 = vmatprep.subr.mxu0 %v535
      %1791 = vmatpush1.msra.mxu0 %v534
      %1792 = vmatprep.subr.mxu0 %v541
      %1793 = vmatpush1.msra.mxu0 %v540
      %1794 = vmatprep.subr.mxu0 %v547
      %1795 = vmatpush1.msra.mxu0 %v546
      %1796 = vmatprep.subr.mxu0 %v553
      %1797 = vmatpush1.msra.mxu0 %v552
      %1798 = vmatprep.mubr.f32.mxu0 %v1342
      %1799 = vmatmul.mubr.f32.gmra.mrb[0].mxu0 %v1334
      %v1800 = vpop.f32.mrb[0].mxu0
      %v1801 = vadd.f32 0.0, %v1800
      %v1802 = vpop.f32.mrb[0].mxu0
      %v1803 = vadd.f32 0.0, %v1802
      %1804 = vdwg.mxu0
      %1805 = vmatprep.subr.mxu0 %v559
      %1806 = vmatpush1.msra.mxu0 %v558
      %1807 = vmatprep.subr.mxu0 %v565
      %1808 = vmatpush1.msra.mxu0 %v564
      %1809 = vmatprep.subr.mxu0 %v571
      %1810 = vmatpush1.msra.mxu0 %v570
      %1811 = vmatprep.subr.mxu0 %v577
      %1812 = vmatpush1.msra.mxu0 %v576
      %1813 = vmatprep.subr.mxu0 %v583
      %1814 = vmatpush1.msra.mxu0 %v582
      %1815 = vmatprep.subr.mxu0 %v589
      %1816 = vmatpush1.msra.mxu0 %v588
      %1817 = vmatprep.subr.mxu0 %v595
      %1818 = vmatpush1.msra.mxu0 %v594
      %1819 = vmatprep.subr.mxu0 %v601
      %1820 = vmatpush1.msra.mxu0 %v600
      %1821 = vmatprep.subr.mxu0 %v607
      %1822 = vmatpush1.msra.mxu0 %v606
      %1823 = vmatprep.subr.mxu0 %v613
      %1824 = vmatpush1.msra.mxu0 %v612
      %1825 = vmatprep.subr.mxu0 %v619
      %1826 = vmatpush1.msra.mxu0 %v618
      %1827 = vmatprep.subr.mxu0 %v625
      %1828 = vmatpush1.msra.mxu0 %v624
      %1829 = vmatprep.subr.mxu0 %v631
      %1830 = vmatpush1.msra.mxu0 %v630
      %1831 = vmatprep.subr.mxu0 %v637
      %1832 = vmatpush1.msra.mxu0 %v636
      %1833 = vmatprep.subr.mxu0 %v643
      %1834 = vmatpush1.msra.mxu0 %v642
      %1835 = vmatprep.subr.mxu0 %v649
      %1836 = vmatpush1.msra.mxu0 %v648
      %1837 = vmatprep.subr.mxu0 %v655
      %1838 = vmatpush1.msra.mxu0 %v654
      %1839 = vmatprep.subr.mxu0 %v661
      %1840 = vmatpush1.msra.mxu0 %v660
      %1841 = vmatprep.subr.mxu0 %v667
      %1842 = vmatpush1.msra.mxu0 %v666
      %1843 = vmatprep.subr.mxu0 %v673
      %1844 = vmatpush1.msra.mxu0 %v672
      %1845 = vmatprep.subr.mxu0 %v679
      %1846 = vmatpush1.msra.mxu0 %v678
      %1847 = vmatprep.subr.mxu0 %v685
      %1848 = vmatpush1.msra.mxu0 %v684
      %1849 = vmatprep.subr.mxu0 %v691
      %1850 = vmatpush1.msra.mxu0 %v690
      %1851 = vmatprep.subr.mxu0 %v697
      %1852 = vmatpush1.msra.mxu0 %v696
      %1853 = vmatprep.subr.mxu0 %v703
      %1854 = vmatpush1.msra.mxu0 %v702
      %1855 = vmatprep.subr.mxu0 %v709
      %1856 = vmatpush1.msra.mxu0 %v708
      %1857 = vmatprep.subr.mxu0 %v715
      %1858 = vmatpush1.msra.mxu0 %v714
      %1859 = vmatprep.subr.mxu0 %v721
      %1860 = vmatpush1.msra.mxu0 %v720
      %1861 = vmatprep.subr.mxu0 %v727
      %1862 = vmatpush1.msra.mxu0 %v726
      %1863 = vmatprep.subr.mxu0 %v733
      %1864 = vmatpush1.msra.mxu0 %v732
      %1865 = vmatprep.subr.mxu0 %v739
      %1866 = vmatpush1.msra.mxu0 %v738
      %1867 = vmatprep.subr.mxu0 %v745
      %1868 = vmatpush1.msra.mxu0 %v744
      %1869 = vmatprep.mubr.f32.mxu0 %v1343
      %1870 = vmatmul.mubr.f32.gmra.mrb[0].mxu0 %v1341
      %v1871 = vpop.f32.mrb[0].mxu0
      %v1872 = vadd.f32 %v1801, %v1871
      %v1873 = vpop.f32.mrb[0].mxu0
      %v1874 = vadd.f32 %v1803, %v1873
      %1875 = vdwg.mxu0
      %1876 = vmatprep.subr.mxu0 %v751
      %1877 = vmatpush1.msra.mxu0 %v750
      %1878 = vmatprep.subr.mxu0 %v757
      %1879 = vmatpush1.msra.mxu0 %v756
      %1880 = vmatprep.subr.mxu0 %v763
      %1881 = vmatpush1.msra.mxu0 %v762
      %1882 = vmatprep.subr.mxu0 %v769
      %1883 = vmatpush1.msra.mxu0 %v768
      %1884 = vmatprep.subr.mxu0 %v775
      %1885 = vmatpush1.msra.mxu0 %v774
      %1886 = vmatprep.subr.mxu0 %v781
      %1887 = vmatpush1.msra.mxu0 %v780
      %1888 = vmatprep.subr.mxu0 %v787
      %1889 = vmatpush1.msra.mxu0 %v786
      %1890 = vmatprep.subr.mxu0 %v793
      %1891 = vmatpush1.msra.mxu0 %v792
      %1892 = vmatprep.subr.mxu0 %v799
      %1893 = vmatpush1.msra.mxu0 %v798
      %1894 = vmatprep.subr.mxu0 %v805
      %1895 = vmatpush1.msra.mxu0 %v804
      %1896 = vmatprep.subr.mxu0 %v811
      %1897 = vmatpush1.msra.mxu0 %v810
      %1898 = vmatprep.subr.mxu0 %v817
      %1899 = vmatpush1.msra.mxu0 %v816
      %1900 = vmatprep.subr.mxu0 %v823
      %1901 = vmatpush1.msra.mxu0 %v822
      %1902 = vmatprep.subr.mxu0 %v829
      %1903 = vmatpush1.msra.mxu0 %v828
      %1904 = vmatprep.subr.mxu0 %v835
      %1905 = vmatpush1.msra.mxu0 %v834
      %1906 = vmatprep.subr.mxu0 %v841
      %1907 = vmatpush1.msra.mxu0 %v840
      %1908 = vmatprep.subr.mxu0 %v847
      %1909 = vmatpush1.msra.mxu0 %v846
      %1910 = vmatprep.subr.mxu0 %v853
      %1911 = vmatpush1.msra.mxu0 %v852
      %1912 = vmatprep.subr.mxu0 %v859
      %1913 = vmatpush1.msra.mxu0 %v858
      %1914 = vmatprep.subr.mxu0 %v865
      %1915 = vmatpush1.msra.mxu0 %v864
      %1916 = vmatprep.subr.mxu0 %v871
      %1917 = vmatpush1.msra.mxu0 %v870
      %1918 = vmatprep.subr.mxu0 %v877
      %1919 = vmatpush1.msra.mxu0 %v876
      %1920 = vmatprep.subr.mxu0 %v883
      %1921 = vmatpush1.msra.mxu0 %v882
      %1922 = vmatprep.subr.mxu0 %v889
      %1923 = vmatpush1.msra.mxu0 %v888
      %1924 = vmatprep.subr.mxu0 %v895
      %1925 = vmatpush1.msra.mxu0 %v894
      %1926 = vmatprep.subr.mxu0 %v901
      %1927 = vmatpush1.msra.mxu0 %v900
      %1928 = vmatprep.subr.mxu0 %v907
      %1929 = vmatpush1.msra.mxu0 %v906
      %1930 = vmatprep.subr.mxu0 %v913
      %1931 = vmatpush1.msra.mxu0 %v912
      %1932 = vmatprep.subr.mxu0 %v919
      %1933 = vmatpush1.msra.mxu0 %v918
      %1934 = vmatprep.subr.mxu0 %v925
      %1935 = vmatpush1.msra.mxu0 %v924
      %1936 = vmatprep.subr.mxu0 %v931
      %1937 = vmatpush1.msra.mxu0 %v930
      %1938 = vmatprep.subr.mxu0 %v937
      %1939 = vmatpush1.msra.mxu0 %v936
      %1940 = vmatprep.mubr.f32.mxu0 %v1359
      %1941 = vmatmul.mubr.f32.gmra.mrb[0].mxu0 %v1351
      %v1942 = vpop.f32.mrb[0].mxu0
      %v1943 = vadd.f32 %v1872, %v1942
      %v1944 = vpop.f32.mrb[0].mxu0
      %v1945 = vadd.f32 %v1874, %v1944
      %1946 = vdwg.mxu0
      %1947 = vmatprep.subr.mxu0 %v943
      %1948 = vmatpush1.msra.mxu0 %v942
      %1949 = vmatprep.subr.mxu0 %v949
      %1950 = vmatpush1.msra.mxu0 %v948
      %1951 = vmatprep.subr.mxu0 %v955
      %1952 = vmatpush1.msra.mxu0 %v954
      %1953 = vmatprep.subr.mxu0 %v961
      %1954 = vmatpush1.msra.mxu0 %v960
      %1955 = vmatprep.subr.mxu0 %v967
      %1956 = vmatpush1.msra.mxu0 %v966
      %1957 = vmatprep.subr.mxu0 %v973
      %1958 = vmatpush1.msra.mxu0 %v972
      %1959 = vmatprep.subr.mxu0 %v979
      %1960 = vmatpush1.msra.mxu0 %v978
      %1961 = vmatprep.subr.mxu0 %v985
      %1962 = vmatpush1.msra.mxu0 %v984
      %1963 = vmatprep.subr.mxu0 %v991
      %1964 = vmatpush1.msra.mxu0 %v990
      %1965 = vmatprep.subr.mxu0 %v997
      %1966 = vmatpush1.msra.mxu0 %v996
      %1967 = vmatprep.subr.mxu0 %v1003
      %1968 = vmatpush1.msra.mxu0 %v1002
      %1969 = vmatprep.subr.mxu0 %v1009
      %1970 = vmatpush1.msra.mxu0 %v1008
      %1971 = vmatprep.subr.mxu0 %v1015
      %1972 = vmatpush1.msra.mxu0 %v1014
      %1973 = vmatprep.subr.mxu0 %v1021
      %1974 = vmatpush1.msra.mxu0 %v1020
      %1975 = vmatprep.subr.mxu0 %v1027
      %1976 = vmatpush1.msra.mxu0 %v1026
      %1977 = vmatprep.subr.mxu0 %v1033
      %1978 = vmatpush1.msra.mxu0 %v1032
      %1979 = vmatprep.subr.mxu0 %v1039
      %1980 = vmatpush1.msra.mxu0 %v1038
      %1981 = vmatprep.subr.mxu0 %v1045
      %1982 = vmatpush1.msra.mxu0 %v1044
      %1983 = vmatprep.subr.mxu0 %v1051
      %1984 = vmatpush1.msra.mxu0 %v1050
      %1985 = vmatprep.subr.mxu0 %v1057
      %1986 = vmatpush1.msra.mxu0 %v1056
      %1987 = vmatprep.subr.mxu0 %v1063
      %1988 = vmatpush1.msra.mxu0 %v1062
      %1989 = vmatprep.subr.mxu0 %v1069
      %1990 = vmatpush1.msra.mxu0 %v1068
      %1991 = vmatprep.subr.mxu0 %v1075
      %1992 = vmatpush1.msra.mxu0 %v1074
      %1993 = vmatprep.subr.mxu0 %v1081
      %1994 = vmatpush1.msra.mxu0 %v1080
      %1995 = vmatprep.subr.mxu0 %v1087
      %1996 = vmatpush1.msra.mxu0 %v1086
      %1997 = vmatprep.subr.mxu0 %v1093
      %1998 = vmatpush1.msra.mxu0 %v1092
      %1999 = vmatprep.subr.mxu0 %v1099
      %2000 = vmatpush1.msra.mxu0 %v1098
      %2001 = vmatprep.subr.mxu0 %v1105
      %2002 = vmatpush1.msra.mxu0 %v1104
      %2003 = vmatprep.subr.mxu0 %v1111
      %2004 = vmatpush1.msra.mxu0 %v1110
      %2005 = vmatprep.subr.mxu0 %v1117
      %2006 = vmatpush1.msra.mxu0 %v1116
      %2007 = vmatprep.subr.mxu0 %v1123
      %2008 = vmatpush1.msra.mxu0 %v1122
      %2009 = vmatprep.subr.mxu0 %v1129
      %2010 = vmatpush1.msra.mxu0 %v1128
      %2011 = vmatprep.mubr.f32.mxu0 %v1360
      %2012 = vmatmul.mubr.f32.gmra.mrb[0].mxu0 %v1358
      %v2013 = vpop.f32.mrb[0].mxu0
      %v2014 = vadd.f32 %v1943, %v2013
      %v2015 = vpop.f32.mrb[0].mxu0
      %v2016 = vadd.f32 %v1945, %v2015
      %2017 = vdwg.mxu0
      %2018 = vmatprep.subr.mxu0 %v1135
      %2019 = vmatpush1.msra.mxu0 %v1134
      %2020 = vmatprep.subr.mxu0 %v1141
      %2021 = vmatpush1.msra.mxu0 %v1140
      %2022 = vmatprep.subr.mxu0 %v1147
      %2023 = vmatpush1.msra.mxu0 %v1146
      %2024 = vmatprep.subr.mxu0 %v1153
      %2025 = vmatpush1.msra.mxu0 %v1152
      %2026 = vmatprep.subr.mxu0 %v1159
      %2027 = vmatpush1.msra.mxu0 %v1158
      %2028 = vmatprep.subr.mxu0 %v1165
      %2029 = vmatpush1.msra.mxu0 %v1164
      %2030 = vmatprep.subr.mxu0 %v1171
      %2031 = vmatpush1.msra.mxu0 %v1170
      %2032 = vmatprep.subr.mxu0 %v1177
      %2033 = vmatpush1.msra.mxu0 %v1176
      %2034 = vmatprep.subr.mxu0 %v1183
      %2035 = vmatpush1.msra.mxu0 %v1182
      %2036 = vmatprep.subr.mxu0 %v1189
      %2037 = vmatpush1.msra.mxu0 %v1188
      %2038 = vmatprep.subr.mxu0 %v1195
      %2039 = vmatpush1.msra.mxu0 %v1194
      %2040 = vmatprep.subr.mxu0 %v1201
      %2041 = vmatpush1.msra.mxu0 %v1200
      %2042 = vmatprep.subr.mxu0 %v1207
      %2043 = vmatpush1.msra.mxu0 %v1206
      %2044 = vmatprep.subr.mxu0 %v1213
      %2045 = vmatpush1.msra.mxu0 %v1212
      %2046 = vmatprep.subr.mxu0 %v1219
      %2047 = vmatpush1.msra.mxu0 %v1218
      %2048 = vmatprep.subr.mxu0 %v1225
      %2049 = vmatpush1.msra.mxu0 %v1224
      %2050 = vmatprep.subr.mxu0 %v1231
      %2051 = vmatpush1.msra.mxu0 %v1230
      %2052 = vmatprep.subr.mxu0 %v1237
      %2053 = vmatpush1.msra.mxu0 %v1236
      %2054 = vmatprep.subr.mxu0 %v1243
      %2055 = vmatpush1.msra.mxu0 %v1242
      %2056 = vmatprep.subr.mxu0 %v1249
      %2057 = vmatpush1.msra.mxu0 %v1248
      %2058 = vmatprep.subr.mxu0 %v1255
      %2059 = vmatpush1.msra.mxu0 %v1254
      %2060 = vmatprep.subr.mxu0 %v1261
      %2061 = vmatpush1.msra.mxu0 %v1260
      %2062 = vmatprep.subr.mxu0 %v1267
      %2063 = vmatpush1.msra.mxu0 %v1266
      %2064 = vmatprep.subr.mxu0 %v1273
      %2065 = vmatpush1.msra.mxu0 %v1272
      %2066 = vmatprep.subr.mxu0 %v1279
      %2067 = vmatpush1.msra.mxu0 %v1278
      %2068 = vmatprep.subr.mxu0 %v1285
      %2069 = vmatpush1.msra.mxu0 %v1284
      %2070 = vmatprep.subr.mxu0 %v1291
      %2071 = vmatpush1.msra.mxu0 %v1290
      %2072 = vmatprep.subr.mxu0 %v1297
      %2073 = vmatpush1.msra.mxu0 %v1296
      %2074 = vmatprep.subr.mxu0 %v1303
      %2075 = vmatpush1.msra.mxu0 %v1302
      %2076 = vmatprep.subr.mxu0 %v1309
      %2077 = vmatpush1.msra.mxu0 %v1308
      %2078 = vmatprep.subr.mxu0 %v1315
      %2079 = vmatpush1.msra.mxu0 %v1314
      %2080 = vmatprep.subr.mxu0 %v1321
      %2081 = vmatpush1.msra.mxu0 %v1320
      %2082 = vmatprep.mubr.f32.mxu0 %v1368
      %2083 = vmatmul.mubr.f32.gmra.mrb[0].mxu0 %v1367
      %v2084 = vpop.f32.mrb[0].mxu0
      %v2085 = vadd.f32 %v2014, %v2084
      %v2086 = vpop.f32.mrb[0].mxu0
      %v2087 = vadd.f32 %v2016, %v2086
      %2088 = vdwg.mxu0
      %2089 = vmatprep.subr.mxu0 %v369
      %2090 = vmatpush1.msra.mxu0 %v368
      %2091 = vmatprep.subr.mxu0 %v375
      %2092 = vmatpush1.msra.mxu0 %v374
      %2093 = vmatprep.subr.mxu0 %v381
      %2094 = vmatpush1.msra.mxu0 %v380
      %2095 = vmatprep.subr.mxu0 %v387
      %2096 = vmatpush1.msra.mxu0 %v386
      %2097 = vmatprep.subr.mxu0 %v393
      %2098 = vmatpush1.msra.mxu0 %v392
      %2099 = vmatprep.subr.mxu0 %v399
      %2100 = vmatpush1.msra.mxu0 %v398
      %2101 = vmatprep.subr.mxu0 %v405
      %2102 = vmatpush1.msra.mxu0 %v404
      %2103 = vmatprep.subr.mxu0 %v411
      %2104 = vmatpush1.msra.mxu0 %v410
      %2105 = vmatprep.subr.mxu0 %v417
      %2106 = vmatpush1.msra.mxu0 %v416
      %2107 = vmatprep.subr.mxu0 %v423
      %2108 = vmatpush1.msra.mxu0 %v422
      %2109 = vmatprep.subr.mxu0 %v429
      %2110 = vmatpush1.msra.mxu0 %v428
      %2111 = vmatprep.subr.mxu0 %v435
      %2112 = vmatpush1.msra.mxu0 %v434
      %2113 = vmatprep.subr.mxu0 %v441
      %2114 = vmatpush1.msra.mxu0 %v440
      %2115 = vmatprep.subr.mxu0 %v447
      %2116 = vmatpush1.msra.mxu0 %v446
      %2117 = vmatprep.subr.mxu0 %v453
      %2118 = vmatpush1.msra.mxu0 %v452
      %2119 = vmatprep.subr.mxu0 %v459
      %2120 = vmatpush1.msra.mxu0 %v458
      %2121 = vmatprep.subr.mxu0 %v465
      %2122 = vmatpush1.msra.mxu0 %v464
      %2123 = vmatprep.subr.mxu0 %v471
      %2124 = vmatpush1.msra.mxu0 %v470
      %2125 = vmatprep.subr.mxu0 %v477
      %2126 = vmatpush1.msra.mxu0 %v476
      %2127 = vmatprep.subr.mxu0 %v483
      %2128 = vmatpush1.msra.mxu0 %v482
      %2129 = vmatprep.subr.mxu0 %v489
      %2130 = vmatpush1.msra.mxu0 %v488
      %2131 = vmatprep.subr.mxu0 %v495
      %2132 = vmatpush1.msra.mxu0 %v494
      %2133 = vmatprep.subr.mxu0 %v501
      %2134 = vmatpush1.msra.mxu0 %v500
      %2135 = vmatprep.subr.mxu0 %v507
      %2136 = vmatpush1.msra.mxu0 %v506
      %2137 = vmatprep.subr.mxu0 %v513
      %2138 = vmatpush1.msra.mxu0 %v512
      %2139 = vmatprep.subr.mxu0 %v519
      %2140 = vmatpush1.msra.mxu0 %v518
      %2141 = vmatprep.subr.mxu0 %v525
      %2142 = vmatpush1.msra.mxu0 %v524
      %2143 = vmatprep.subr.mxu0 %v531
      %2144 = vmatpush1.msra.mxu0 %v530
      %2145 = vmatprep.subr.mxu0 %v537
      %2146 = vmatpush1.msra.mxu0 %v536
      %2147 = vmatprep.subr.mxu0 %v543
      %2148 = vmatpush1.msra.mxu0 %v542
      %2149 = vmatprep.subr.mxu0 %v549
      %2150 = vmatpush1.msra.mxu0 %v548
      %2151 = vmatprep.subr.mxu0 %v555
      %2152 = vmatpush1.msra.mxu0 %v554
      %2153 = vmatprep.mubr.f32.mxu0 %v1342
      %2154 = vmatmul.mubr.f32.gmra.mrb[0].mxu0 %v1334
      %v2155 = vpop.f32.mrb[0].mxu0
      %v2156 = vadd.f32 0.0, %v2155
      %v2157 = vpop.f32.mrb[0].mxu0
      %v2158 = vadd.f32 0.0, %v2157
      %2159 = vdwg.mxu0
      %2160 = vmatprep.subr.mxu0 %v561
      %2161 = vmatpush1.msra.mxu0 %v560
      %2162 = vmatprep.subr.mxu0 %v567
      %2163 = vmatpush1.msra.mxu0 %v566
      %2164 = vmatprep.subr.mxu0 %v573
      %2165 = vmatpush1.msra.mxu0 %v572
      %2166 = vmatprep.subr.mxu0 %v579
      %2167 = vmatpush1.msra.mxu0 %v578
      %2168 = vmatprep.subr.mxu0 %v585
      %2169 = vmatpush1.msra.mxu0 %v584
      %2170 = vmatprep.subr.mxu0 %v591
      %2171 = vmatpush1.msra.mxu0 %v590
      %2172 = vmatprep.subr.mxu0 %v597
      %2173 = vmatpush1.msra.mxu0 %v596
      %2174 = vmatprep.subr.mxu0 %v603
      %2175 = vmatpush1.msra.mxu0 %v602
      %2176 = vmatprep.subr.mxu0 %v609
      %2177 = vmatpush1.msra.mxu0 %v608
      %2178 = vmatprep.subr.mxu0 %v615
      %2179 = vmatpush1.msra.mxu0 %v614
      %2180 = vmatprep.subr.mxu0 %v621
      %2181 = vmatpush1.msra.mxu0 %v620
      %2182 = vmatprep.subr.mxu0 %v627
      %2183 = vmatpush1.msra.mxu0 %v626
      %2184 = vmatprep.subr.mxu0 %v633
      %2185 = vmatpush1.msra.mxu0 %v632
      %2186 = vmatprep.subr.mxu0 %v639
      %2187 = vmatpush1.msra.mxu0 %v638
      %2188 = vmatprep.subr.mxu0 %v645
      %2189 = vmatpush1.msra.mxu0 %v644
      %2190 = vmatprep.subr.mxu0 %v651
      %2191 = vmatpush1.msra.mxu0 %v650
      %2192 = vmatprep.subr.mxu0 %v657
      %2193 = vmatpush1.msra.mxu0 %v656
      %2194 = vmatprep.subr.mxu0 %v663
      %2195 = vmatpush1.msra.mxu0 %v662
      %2196 = vmatprep.subr.mxu0 %v669
      %2197 = vmatpush1.msra.mxu0 %v668
      %2198 = vmatprep.subr.mxu0 %v675
      %2199 = vmatpush1.msra.mxu0 %v674
      %2200 = vmatprep.subr.mxu0 %v681
      %2201 = vmatpush1.msra.mxu0 %v680
      %2202 = vmatprep.subr.mxu0 %v687
      %2203 = vmatpush1.msra.mxu0 %v686
      %2204 = vmatprep.subr.mxu0 %v693
      %2205 = vmatpush1.msra.mxu0 %v692
      %2206 = vmatprep.subr.mxu0 %v699
      %2207 = vmatpush1.msra.mxu0 %v698
      %2208 = vmatprep.subr.mxu0 %v705
      %2209 = vmatpush1.msra.mxu0 %v704
      %2210 = vmatprep.subr.mxu0 %v711
      %2211 = vmatpush1.msra.mxu0 %v710
      %2212 = vmatprep.subr.mxu0 %v717
      %2213 = vmatpush1.msra.mxu0 %v716
      %2214 = vmatprep.subr.mxu0 %v723
      %2215 = vmatpush1.msra.mxu0 %v722
      %2216 = vmatprep.subr.mxu0 %v729
      %2217 = vmatpush1.msra.mxu0 %v728
      %2218 = vmatprep.subr.mxu0 %v735
      %2219 = vmatpush1.msra.mxu0 %v734
      %2220 = vmatprep.subr.mxu0 %v741
      %2221 = vmatpush1.msra.mxu0 %v740
      %2222 = vmatprep.subr.mxu0 %v747
      %2223 = vmatpush1.msra.mxu0 %v746
      %2224 = vmatprep.mubr.f32.mxu0 %v1343
      %2225 = vmatmul.mubr.f32.gmra.mrb[0].mxu0 %v1341
      %v2226 = vpop.f32.mrb[0].mxu0
      %v2227 = vadd.f32 %v2156, %v2226
      %v2228 = vpop.f32.mrb[0].mxu0
      %v2229 = vadd.f32 %v2158, %v2228
      %2230 = vdwg.mxu0
      %2231 = vmatprep.subr.mxu0 %v753
      %2232 = vmatpush1.msra.mxu0 %v752
      %2233 = vmatprep.subr.mxu0 %v759
      %2234 = vmatpush1.msra.mxu0 %v758
      %2235 = vmatprep.subr.mxu0 %v765
      %2236 = vmatpush1.msra.mxu0 %v764
      %2237 = vmatprep.subr.mxu0 %v771
      %2238 = vmatpush1.msra.mxu0 %v770
      %2239 = vmatprep.subr.mxu0 %v777
      %2240 = vmatpush1.msra.mxu0 %v776
      %2241 = vmatprep.subr.mxu0 %v783
      %2242 = vmatpush1.msra.mxu0 %v782
      %2243 = vmatprep.subr.mxu0 %v789
      %2244 = vmatpush1.msra.mxu0 %v788
      %2245 = vmatprep.subr.mxu0 %v795
      %2246 = vmatpush1.msra.mxu0 %v794
      %2247 = vmatprep.subr.mxu0 %v801
      %2248 = vmatpush1.msra.mxu0 %v800
      %2249 = vmatprep.subr.mxu0 %v807
      %2250 = vmatpush1.msra.mxu0 %v806
      %2251 = vmatprep.subr.mxu0 %v813
      %2252 = vmatpush1.msra.mxu0 %v812
      %2253 = vmatprep.subr.mxu0 %v819
      %2254 = vmatpush1.msra.mxu0 %v818
      %2255 = vmatprep.subr.mxu0 %v825
      %2256 = vmatpush1.msra.mxu0 %v824
      %2257 = vmatprep.subr.mxu0 %v831
      %2258 = vmatpush1.msra.mxu0 %v830
      %2259 = vmatprep.subr.mxu0 %v837
      %2260 = vmatpush1.msra.mxu0 %v836
      %2261 = vmatprep.subr.mxu0 %v843
      %2262 = vmatpush1.msra.mxu0 %v842
      %2263 = vmatprep.subr.mxu0 %v849
      %2264 = vmatpush1.msra.mxu0 %v848
      %2265 = vmatprep.subr.mxu0 %v855
      %2266 = vmatpush1.msra.mxu0 %v854
      %2267 = vmatprep.subr.mxu0 %v861
      %2268 = vmatpush1.msra.mxu0 %v860
      %2269 = vmatprep.subr.mxu0 %v867
      %2270 = vmatpush1.msra.mxu0 %v866
      %2271 = vmatprep.subr.mxu0 %v873
      %2272 = vmatpush1.msra.mxu0 %v872
      %2273 = vmatprep.subr.mxu0 %v879
      %2274 = vmatpush1.msra.mxu0 %v878
      %2275 = vmatprep.subr.mxu0 %v885
      %2276 = vmatpush1.msra.mxu0 %v884
      %2277 = vmatprep.subr.mxu0 %v891
      %2278 = vmatpush1.msra.mxu0 %v890
      %2279 = vmatprep.subr.mxu0 %v897
      %2280 = vmatpush1.msra.mxu0 %v896
      %2281 = vmatprep.subr.mxu0 %v903
      %2282 = vmatpush1.msra.mxu0 %v902
      %2283 = vmatprep.subr.mxu0 %v909
      %2284 = vmatpush1.msra.mxu0 %v908
      %2285 = vmatprep.subr.mxu0 %v915
      %2286 = vmatpush1.msra.mxu0 %v914
      %2287 = vmatprep.subr.mxu0 %v921
      %2288 = vmatpush1.msra.mxu0 %v920
      %2289 = vmatprep.subr.mxu0 %v927
      %2290 = vmatpush1.msra.mxu0 %v926
      %2291 = vmatprep.subr.mxu0 %v933
      %2292 = vmatpush1.msra.mxu0 %v932
      %2293 = vmatprep.subr.mxu0 %v939
      %2294 = vmatpush1.msra.mxu0 %v938
      %2295 = vmatprep.mubr.f32.mxu0 %v1359
      %2296 = vmatmul.mubr.f32.gmra.mrb[0].mxu0 %v1351
      %v2297 = vpop.f32.mrb[0].mxu0
      %v2298 = vadd.f32 %v2227, %v2297
      %v2299 = vpop.f32.mrb[0].mxu0
      %v2300 = vadd.f32 %v2229, %v2299
      %2301 = vdwg.mxu0
      %2302 = vmatprep.subr.mxu0 %v945
      %2303 = vmatpush1.msra.mxu0 %v944
      %2304 = vmatprep.subr.mxu0 %v951
      %2305 = vmatpush1.msra.mxu0 %v950
      %2306 = vmatprep.subr.mxu0 %v957
      %2307 = vmatpush1.msra.mxu0 %v956
      %2308 = vmatprep.subr.mxu0 %v963
      %2309 = vmatpush1.msra.mxu0 %v962
      %2310 = vmatprep.subr.mxu0 %v969
      %2311 = vmatpush1.msra.mxu0 %v968
      %2312 = vmatprep.subr.mxu0 %v975
      %2313 = vmatpush1.msra.mxu0 %v974
      %2314 = vmatprep.subr.mxu0 %v981
      %2315 = vmatpush1.msra.mxu0 %v980
      %2316 = vmatprep.subr.mxu0 %v987
      %2317 = vmatpush1.msra.mxu0 %v986
      %2318 = vmatprep.subr.mxu0 %v993
      %2319 = vmatpush1.msra.mxu0 %v992
      %2320 = vmatprep.subr.mxu0 %v999
      %2321 = vmatpush1.msra.mxu0 %v998
      %2322 = vmatprep.subr.mxu0 %v1005
      %2323 = vmatpush1.msra.mxu0 %v1004
      %2324 = vmatprep.subr.mxu0 %v1011
      %2325 = vmatpush1.msra.mxu0 %v1010
      %2326 = vmatprep.subr.mxu0 %v1017
      %2327 = vmatpush1.msra.mxu0 %v1016
      %2328 = vmatprep.subr.mxu0 %v1023
      %2329 = vmatpush1.msra.mxu0 %v1022
      %2330 = vmatprep.subr.mxu0 %v1029
      %2331 = vmatpush1.msra.mxu0 %v1028
      %2332 = vmatprep.subr.mxu0 %v1035
      %2333 = vmatpush1.msra.mxu0 %v1034
      %2334 = vmatprep.subr.mxu0 %v1041
      %2335 = vmatpush1.msra.mxu0 %v1040
      %2336 = vmatprep.subr.mxu0 %v1047
      %2337 = vmatpush1.msra.mxu0 %v1046
      %2338 = vmatprep.subr.mxu0 %v1053
      %2339 = vmatpush1.msra.mxu0 %v1052
      %2340 = vmatprep.subr.mxu0 %v1059
      %2341 = vmatpush1.msra.mxu0 %v1058
      %2342 = vmatprep.subr.mxu0 %v1065
      %2343 = vmatpush1.msra.mxu0 %v1064
      %2344 = vmatprep.subr.mxu0 %v1071
      %2345 = vmatpush1.msra.mxu0 %v1070
      %2346 = vmatprep.subr.mxu0 %v1077
      %2347 = vmatpush1.msra.mxu0 %v1076
      %2348 = vmatprep.subr.mxu0 %v1083
      %2349 = vmatpush1.msra.mxu0 %v1082
      %2350 = vmatprep.subr.mxu0 %v1089
      %2351 = vmatpush1.msra.mxu0 %v1088
      %2352 = vmatprep.subr.mxu0 %v1095
      %2353 = vmatpush1.msra.mxu0 %v1094
      %2354 = vmatprep.subr.mxu0 %v1101
      %2355 = vmatpush1.msra.mxu0 %v1100
      %2356 = vmatprep.subr.mxu0 %v1107
      %2357 = vmatpush1.msra.mxu0 %v1106
      %2358 = vmatprep.subr.mxu0 %v1113
      %2359 = vmatpush1.msra.mxu0 %v1112
      %2360 = vmatprep.subr.mxu0 %v1119
      %2361 = vmatpush1.msra.mxu0 %v1118
      %2362 = vmatprep.subr.mxu0 %v1125
      %2363 = vmatpush1.msra.mxu0 %v1124
      %2364 = vmatprep.subr.mxu0 %v1131
      %2365 = vmatpush1.msra.mxu0 %v1130
      %2366 = vmatprep.mubr.f32.mxu0 %v1360
      %2367 = vmatmul.mubr.f32.gmra.mrb[0].mxu0 %v1358
      %v2368 = vpop.f32.mrb[0].mxu0
      %v2369 = vadd.f32 %v2298, %v2368
      %v2370 = vpop.f32.mrb[0].mxu0
      %v2371 = vadd.f32 %v2300, %v2370
      %2372 = vdwg.mxu0
      %2373 = vmatprep.subr.mxu0 %v1137
      %2374 = vmatpush1.msra.mxu0 %v1136
      %2375 = vmatprep.subr.mxu0 %v1143
      %2376 = vmatpush1.msra.mxu0 %v1142
      %2377 = vmatprep.subr.mxu0 %v1149
      %2378 = vmatpush1.msra.mxu0 %v1148
      %2379 = vmatprep.subr.mxu0 %v1155
      %2380 = vmatpush1.msra.mxu0 %v1154
      %2381 = vmatprep.subr.mxu0 %v1161
      %2382 = vmatpush1.msra.mxu0 %v1160
      %2383 = vmatprep.subr.mxu0 %v1167
      %2384 = vmatpush1.msra.mxu0 %v1166
      %2385 = vmatprep.subr.mxu0 %v1173
      %2386 = vmatpush1.msra.mxu0 %v1172
      %2387 = vmatprep.subr.mxu0 %v1179
      %2388 = vmatpush1.msra.mxu0 %v1178
      %2389 = vmatprep.subr.mxu0 %v1185
      %2390 = vmatpush1.msra.mxu0 %v1184
      %2391 = vmatprep.subr.mxu0 %v1191
      %2392 = vmatpush1.msra.mxu0 %v1190
      %2393 = vmatprep.subr.mxu0 %v1197
      %2394 = vmatpush1.msra.mxu0 %v1196
      %2395 = vmatprep.subr.mxu0 %v1203
      %2396 = vmatpush1.msra.mxu0 %v1202
      %2397 = vmatprep.subr.mxu0 %v1209
      %2398 = vmatpush1.msra.mxu0 %v1208
      %2399 = vmatprep.subr.mxu0 %v1215
      %2400 = vmatpush1.msra.mxu0 %v1214
      %2401 = vmatprep.subr.mxu0 %v1221
      %2402 = vmatpush1.msra.mxu0 %v1220
      %2403 = vmatprep.subr.mxu0 %v1227
      %2404 = vmatpush1.msra.mxu0 %v1226
      %2405 = vmatprep.subr.mxu0 %v1233
      %2406 = vmatpush1.msra.mxu0 %v1232
      %2407 = vmatprep.subr.mxu0 %v1239
      %2408 = vmatpush1.msra.mxu0 %v1238
      %2409 = vmatprep.subr.mxu0 %v1245
      %2410 = vmatpush1.msra.mxu0 %v1244
      %2411 = vmatprep.subr.mxu0 %v1251
      %2412 = vmatpush1.msra.mxu0 %v1250
      %2413 = vmatprep.subr.mxu0 %v1257
      %2414 = vmatpush1.msra.mxu0 %v1256
      %2415 = vmatprep.subr.mxu0 %v1263
      %2416 = vmatpush1.msra.mxu0 %v1262
      %2417 = vmatprep.subr.mxu0 %v1269
      %2418 = vmatpush1.msra.mxu0 %v1268
      %2419 = vmatprep.subr.mxu0 %v1275
      %2420 = vmatpush1.msra.mxu0 %v1274
      %2421 = vmatprep.subr.mxu0 %v1281
      %2422 = vmatpush1.msra.mxu0 %v1280
      %2423 = vmatprep.subr.mxu0 %v1287
      %2424 = vmatpush1.msra.mxu0 %v1286
      %2425 = vmatprep.subr.mxu0 %v1293
      %2426 = vmatpush1.msra.mxu0 %v1292
      %2427 = vmatprep.subr.mxu0 %v1299
      %2428 = vmatpush1.msra.mxu0 %v1298
      %2429 = vmatprep.subr.mxu0 %v1305
      %2430 = vmatpush1.msra.mxu0 %v1304
      %2431 = vmatprep.subr.mxu0 %v1311
      %2432 = vmatpush1.msra.mxu0 %v1310
      %2433 = vmatprep.subr.mxu0 %v1317
      %2434 = vmatpush1.msra.mxu0 %v1316
      %2435 = vmatprep.subr.mxu0 %v1323
      %2436 = vmatpush1.msra.mxu0 %v1322
      %2437 = vmatprep.mubr.f32.mxu0 %v1368
      %2438 = vmatmul.mubr.f32.gmra.mrb[0].mxu0 %v1367
      %v2439 = vpop.f32.mrb[0].mxu0
      %v2440 = vadd.f32 %v2369, %v2439
      %v2441 = vpop.f32.mrb[0].mxu0
      %v2442 = vadd.f32 %v2371, %v2441
      %2443 = vdwg.mxu0
      %v2447 = vcombine.high %v361, %v361
      %v2448 = vcombine.high %v362, %v362
      %v2449 = vcombine.high %v363, %v363
      %vm2450 = vcmask 23552
      %v2452 = vsel %vm2450, %v357, 0
      %vm2454 = vcmask 1042432
      %v2455 = vsel %vm2454, %v361, 0
      %v2457 = vsel %vm2454, %v2447, 0
      %v2459 = vsel %vm2454, %v362, 0
      %v2461 = vsel %vm2454, %v2448, 0
      %v2463 = vsel %vm2454, %v363, 0
      %v2465 = vsel %vm2454, %v2449, 0
      %2467 = vmatprep.subr.mxu0 %v2457
      %2468 = vmatpush1.msra.mxu0 %v2455
      %2469 = vmatprep.subr.mxu0 0.0
      %2470 = vmatpush1.msra.mxu0 0.0
      %2471 = vmatprep.subr.mxu0 0.0
      %2472 = vmatpush1.msra.mxu0 0.0
      %2473 = vmatprep.subr.mxu0 0.0
      %2474 = vmatpush1.msra.mxu0 0.0
      %2475 = vmatprep.subr.mxu0 0.0
      %2476 = vmatpush1.msra.mxu0 0.0
      %2477 = vmatprep.subr.mxu0 0.0
      %2478 = vmatpush1.msra.mxu0 0.0
      %2479 = vmatprep.subr.mxu0 0.0
      %2480 = vmatpush1.msra.mxu0 0.0
      %2481 = vmatprep.subr.mxu0 0.0
      %2482 = vmatpush1.msra.mxu0 0.0
      %2483 = vmatprep.subr.mxu0 0.0
      %2484 = vmatpush1.msra.mxu0 0.0
      %2485 = vmatprep.subr.mxu0 0.0
      %2486 = vmatpush1.msra.mxu0 0.0
      %2487 = vmatprep.subr.mxu0 0.0
      %2488 = vmatpush1.msra.mxu0 0.0
      %2489 = vmatprep.subr.mxu0 0.0
      %2490 = vmatpush1.msra.mxu0 0.0
      %2491 = vmatprep.subr.mxu0 0.0
      %2492 = vmatpush1.msra.mxu0 0.0
      %2493 = vmatprep.subr.mxu0 0.0
      %2494 = vmatpush1.msra.mxu0 0.0
      %2495 = vmatprep.subr.mxu0 0.0
      %2496 = vmatpush1.msra.mxu0 0.0
      %2497 = vmatprep.subr.mxu0 0.0
      %2498 = vmatpush1.msra.mxu0 0.0
      %2499 = vmatprep.subr.mxu0 0.0
      %2500 = vmatpush1.msra.mxu0 0.0
      %2501 = vmatprep.subr.mxu0 0.0
      %2502 = vmatpush1.msra.mxu0 0.0
      %2503 = vmatprep.subr.mxu0 0.0
      %2504 = vmatpush1.msra.mxu0 0.0
      %2505 = vmatprep.subr.mxu0 0.0
      %2506 = vmatpush1.msra.mxu0 0.0
      %2507 = vmatprep.subr.mxu0 0.0
      %2508 = vmatpush1.msra.mxu0 0.0
      %2509 = vmatprep.subr.mxu0 0.0
      %2510 = vmatpush1.msra.mxu0 0.0
      %2511 = vmatprep.subr.mxu0 0.0
      %2512 = vmatpush1.msra.mxu0 0.0
      %2513 = vmatprep.subr.mxu0 0.0
      %2514 = vmatpush1.msra.mxu0 0.0
      %2515 = vmatprep.subr.mxu0 0.0
      %2516 = vmatpush1.msra.mxu0 0.0
      %2517 = vmatprep.subr.mxu0 0.0
      %2518 = vmatpush1.msra.mxu0 0.0
      %2519 = vmatprep.subr.mxu0 0.0
      %2520 = vmatpush1.msra.mxu0 0.0
      %2521 = vmatprep.subr.mxu0 0.0
      %2522 = vmatpush1.msra.mxu0 0.0
      %2523 = vmatprep.subr.mxu0 0.0
      %2524 = vmatpush1.msra.mxu0 0.0
      %2525 = vmatprep.subr.mxu0 0.0
      %2526 = vmatpush1.msra.mxu0 0.0
      %2527 = vmatprep.subr.mxu0 0.0
      %2528 = vmatpush1.msra.mxu0 0.0
      %2529 = vmatprep.subr.mxu0 0.0
      %2530 = vmatpush1.msra.mxu0 0.0
      %2531 = vmatprep.mubr.f32.mxu0 0.0
      %2532 = vmatmul.mubr.f32.gmra.mrb[0].mxu0 %v2452
      %v2533 = vpop.f32.mrb[0].mxu0
      %v2534 = vadd.f32 %v1730, %v2533
      %v2535 = vpop.f32.mrb[0].mxu0
      %v2536 = vadd.f32 %v1732, %v2535
      %2537 = vdwg.mxu0
      %2538 = vmatprep.subr.mxu0 %v2461
      %2539 = vmatpush1.msra.mxu0 %v2459
      %2540 = vmatprep.subr.mxu0 0.0
      %2541 = vmatpush1.msra.mxu0 0.0
      %2542 = vmatprep.subr.mxu0 0.0
      %2543 = vmatpush1.msra.mxu0 0.0
      %2544 = vmatprep.subr.mxu0 0.0
      %2545 = vmatpush1.msra.mxu0 0.0
      %2546 = vmatprep.subr.mxu0 0.0
      %2547 = vmatpush1.msra.mxu0 0.0
      %2548 = vmatprep.subr.mxu0 0.0
      %2549 = vmatpush1.msra.mxu0 0.0
      %2550 = vmatprep.subr.mxu0 0.0
      %2551 = vmatpush1.msra.mxu0 0.0
      %2552 = vmatprep.subr.mxu0 0.0
      %2553 = vmatpush1.msra.mxu0 0.0
      %2554 = vmatprep.subr.mxu0 0.0
      %2555 = vmatpush1.msra.mxu0 0.0
      %2556 = vmatprep.subr.mxu0 0.0
      %2557 = vmatpush1.msra.mxu0 0.0
      %2558 = vmatprep.subr.mxu0 0.0
      %2559 = vmatpush1.msra.mxu0 0.0
      %2560 = vmatprep.subr.mxu0 0.0
      %2561 = vmatpush1.msra.mxu0 0.0
      %2562 = vmatprep.subr.mxu0 0.0
      %2563 = vmatpush1.msra.mxu0 0.0
      %2564 = vmatprep.subr.mxu0 0.0
      %2565 = vmatpush1.msra.mxu0 0.0
      %2566 = vmatprep.subr.mxu0 0.0
      %2567 = vmatpush1.msra.mxu0 0.0
      %2568 = vmatprep.subr.mxu0 0.0
      %2569 = vmatpush1.msra.mxu0 0.0
      %2570 = vmatprep.subr.mxu0 0.0
      %2571 = vmatpush1.msra.mxu0 0.0
      %2572 = vmatprep.subr.mxu0 0.0
      %2573 = vmatpush1.msra.mxu0 0.0
      %2574 = vmatprep.subr.mxu0 0.0
      %2575 = vmatpush1.msra.mxu0 0.0
      %2576 = vmatprep.subr.mxu0 0.0
      %2577 = vmatpush1.msra.mxu0 0.0
      %2578 = vmatprep.subr.mxu0 0.0
      %2579 = vmatpush1.msra.mxu0 0.0
      %2580 = vmatprep.subr.mxu0 0.0
      %2581 = vmatpush1.msra.mxu0 0.0
      %2582 = vmatprep.subr.mxu0 0.0
      %2583 = vmatpush1.msra.mxu0 0.0
      %2584 = vmatprep.subr.mxu0 0.0
      %2585 = vmatpush1.msra.mxu0 0.0
      %2586 = vmatprep.subr.mxu0 0.0
      %2587 = vmatpush1.msra.mxu0 0.0
      %2588 = vmatprep.subr.mxu0 0.0
      %2589 = vmatpush1.msra.mxu0 0.0
      %2590 = vmatprep.subr.mxu0 0.0
      %2591 = vmatpush1.msra.mxu0 0.0
      %2592 = vmatprep.subr.mxu0 0.0
      %2593 = vmatpush1.msra.mxu0 0.0
      %2594 = vmatprep.subr.mxu0 0.0
      %2595 = vmatpush1.msra.mxu0 0.0
      %2596 = vmatprep.subr.mxu0 0.0
      %2597 = vmatpush1.msra.mxu0 0.0
      %2598 = vmatprep.subr.mxu0 0.0
      %2599 = vmatpush1.msra.mxu0 0.0
      %2600 = vmatprep.subr.mxu0 0.0
      %2601 = vmatpush1.msra.mxu0 0.0
      %2602 = vmatprep.mubr.f32.mxu0 0.0
      %2603 = vmatmul.mubr.f32.gmra.mrb[0].mxu0 %v2452
      %v2604 = vpop.f32.mrb[0].mxu0
      %v2605 = vadd.f32 %v2085, %v2604
      %v2606 = vpop.f32.mrb[0].mxu0
      %v2607 = vadd.f32 %v2087, %v2606
      %2608 = vdwg.mxu0
      %2609 = vmatprep.subr.mxu0 %v2465
      %2610 = vmatpush1.msra.mxu0 %v2463
      %2611 = vmatprep.subr.mxu0 0.0
      %2612 = vmatpush1.msra.mxu0 0.0
      %2613 = vmatprep.subr.mxu0 0.0
      %2614 = vmatpush1.msra.mxu0 0.0
      %2615 = vmatprep.subr.mxu0 0.0
      %2616 = vmatpush1.msra.mxu0 0.0
      %2617 = vmatprep.subr.mxu0 0.0
      %2618 = vmatpush1.msra.mxu0 0.0
      %2619 = vmatprep.subr.mxu0 0.0
      %2620 = vmatpush1.msra.mxu0 0.0
      %2621 = vmatprep.subr.mxu0 0.0
      %2622 = vmatpush1.msra.mxu0 0.0
      %2623 = vmatprep.subr.mxu0 0.0
      %2624 = vmatpush1.msra.mxu0 0.0
      %2625 = vmatprep.subr.mxu0 0.0
      %2626 = vmatpush1.msra.mxu0 0.0
      %2627 = vmatprep.subr.mxu0 0.0
      %2628 = vmatpush1.msra.mxu0 0.0
      %2629 = vmatprep.subr.mxu0 0.0
      %2630 = vmatpush1.msra.mxu0 0.0
      %2631 = vmatprep.subr.mxu0 0.0
      %2632 = vmatpush1.msra.mxu0 0.0
      %2633 = vmatprep.subr.mxu0 0.0
      %2634 = vmatpush1.msra.mxu0 0.0
      %2635 = vmatprep.subr.mxu0 0.0
      %2636 = vmatpush1.msra.mxu0 0.0
      %2637 = vmatprep.subr.mxu0 0.0
      %2638 = vmatpush1.msra.mxu0 0.0
      %2639 = vmatprep.subr.mxu0 0.0
      %2640 = vmatpush1.msra.mxu0 0.0
      %2641 = vmatprep.subr.mxu0 0.0
      %2642 = vmatpush1.msra.mxu0 0.0
      %2643 = vmatprep.subr.mxu0 0.0
      %2644 = vmatpush1.msra.mxu0 0.0
      %2645 = vmatprep.subr.mxu0 0.0
      %2646 = vmatpush1.msra.mxu0 0.0
      %2647 = vmatprep.subr.mxu0 0.0
      %2648 = vmatpush1.msra.mxu0 0.0
      %2649 = vmatprep.subr.mxu0 0.0
      %2650 = vmatpush1.msra.mxu0 0.0
      %2651 = vmatprep.subr.mxu0 0.0
      %2652 = vmatpush1.msra.mxu0 0.0
      %2653 = vmatprep.subr.mxu0 0.0
      %2654 = vmatpush1.msra.mxu0 0.0
      %2655 = vmatprep.subr.mxu0 0.0
      %2656 = vmatpush1.msra.mxu0 0.0
      %2657 = vmatprep.subr.mxu0 0.0
      %2658 = vmatpush1.msra.mxu0 0.0
      %2659 = vmatprep.subr.mxu0 0.0
      %2660 = vmatpush1.msra.mxu0 0.0
      %2661 = vmatprep.subr.mxu0 0.0
      %2662 = vmatpush1.msra.mxu0 0.0
      %2663 = vmatprep.subr.mxu0 0.0
      %2664 = vmatpush1.msra.mxu0 0.0
      %2665 = vmatprep.subr.mxu0 0.0
      %2666 = vmatpush1.msra.mxu0 0.0
      %2667 = vmatprep.subr.mxu0 0.0
      %2668 = vmatpush1.msra.mxu0 0.0
      %2669 = vmatprep.subr.mxu0 0.0
      %2670 = vmatpush1.msra.mxu0 0.0
      %2671 = vmatprep.subr.mxu0 0.0
      %2672 = vmatpush1.msra.mxu0 0.0
      %2673 = vmatprep.mubr.f32.mxu0 0.0
      %2674 = vmatmul.mubr.f32.gmra.mrb[0].mxu0 %v2452
      %v2675 = vpop.f32.mrb[0].mxu0
      %v2676 = vadd.f32 %v2440, %v2675
      %v2677 = vpop.f32.mrb[0].mxu0
      %v2678 = vadd.f32 %v2442, %v2677
      %2679 = vdwg.mxu0
      %v2686 = vcombine.low %v2534, %v2536
      %v2687 = vcombine.low %v2605, %v2607
      %v2689 = vunpack.c.l.s4 1983009808
      %v2690 = vunpack.c.0.s8 %v2689
      %v2691 = vlaneseq
      %v2692 = vshrl.u32 %v2691, 7
      %v2693 = vsub.s32 %v2690, %v2692
      %v2694 = vrot.slane %v2686, %v2693
      %v2696 = vunpack.c.l.s4 1983009808
      %v2697 = vunpack.c.0.s8 %v2696
      %v2698 = vlaneseq
      %v2699 = vshrl.u32 %v2698, 7
      %v2700 = vsub.s32 %v2697, %v2699
      %v2701 = vrot.slane %v2687, %v2700
      %v2702 = vcombine.low %v2694, %v2701
      %v2703 = vcombine.low %v2676, %v2678
      %v2705 = vunpack.c.l.s4 1983009808
      %v2706 = vunpack.c.0.s8 %v2705
      %v2707 = vlaneseq
      %v2708 = vshrl.u32 %v2707, 7
      %v2709 = vsub.s32 %v2706, %v2708
      %v2710 = vrot.slane %v2703, %v2709
      %2713 = vst [vmem:[%s342] sm:$0xff] %v2702
      %2714 = vst [vmem:[%s342 + $0x8] sm:$0xf] %v2710
      %v2715 = vld [vmem:[%s5] sm:$0x7]
      %v2716 = vld [vmem:[%s3] sm:$0xff]
      %v2717 = vld [vmem:[%s3 + $0x8] sm:$0xff]
      %v2718 = vld [vmem:[%s3 + $0x10] sm:$0xff]
      %v2719 = vld [vmem:[%s3 + $0x18] sm:$0xff]
      %v2720 = vld [vmem:[%s3 + $0x20] sm:$0xff]
      %v2721 = vld [vmem:[%s3 + $0x28] sm:$0xff]
      %v2722 = vld [vmem:[%s3 + $0x30] sm:$0xff]
      %v2723 = vld [vmem:[%s3 + $0x38] sm:$0xff]
      %v2724 = vld [vmem:[%s3 + $0x40] sm:$0xff]
      %v2725 = vld [vmem:[%s3 + $0x48] sm:$0xff]
      %v2726 = vld [vmem:[%s3 + $0x50] sm:$0xff]
      %v2727 = vld [vmem:[%s3 + $0x58] sm:$0xff]
      %v2728 = vld [vmem:[%s3 + $0x60] sm:$0xff]
      %v2729 = vld [vmem:[%s3 + $0x68] sm:$0xff]
      %v2730 = vld [vmem:[%s3 + $0x70] sm:$0xff]
      %v2731 = vld [vmem:[%s3 + $0x78] sm:$0xff]
      %v2732 = vld [vmem:[%s3 + $0x80] sm:$0xff]
      %v2733 = vld [vmem:[%s3 + $0x88] sm:$0xff]
      %v2734 = vld [vmem:[%s3 + $0x90] sm:$0xff]
      %v2735 = vld [vmem:[%s3 + $0x98] sm:$0xff]
      %v2736 = vld [vmem:[%s3 + $0xa0] sm:$0xff]
      %v2737 = vld [vmem:[%s3 + $0xa8] sm:$0xff]
      %v2738 = vld [vmem:[%s3 + $0xb0] sm:$0xff]
      %v2739 = vld [vmem:[%s3 + $0xb8] sm:$0xff]
      %v2740 = vld [vmem:[%s3 + $0xc0] sm:$0xff]
      %v2741 = vld [vmem:[%s3 + $0xc8] sm:$0xff]
      %v2742 = vld [vmem:[%s3 + $0xd0] sm:$0xff]
      %v2743 = vld [vmem:[%s3 + $0xd8] sm:$0xff]
      %v2744 = vld [vmem:[%s3 + $0xe0] sm:$0xff]
      %v2745 = vld [vmem:[%s3 + $0xe8] sm:$0xff]
      %v2746 = vld [vmem:[%s3 + $0xf0] sm:$0xff]
      %v2747 = vld [vmem:[%s3 + $0xf8] sm:$0xff]
      %v2748 = vld [vmem:[%s3 + $0x100] sm:$0xff]
      %v2749 = vld [vmem:[%s3 + $0x108] sm:$0xff]
      %v2750 = vld [vmem:[%s3 + $0x110] sm:$0xff]
      %v2751 = vld [vmem:[%s3 + $0x118] sm:$0xff]
      %v2752 = vld [vmem:[%s3 + $0x120] sm:$0xff]
      %v2753 = vld [vmem:[%s3 + $0x128] sm:$0xff]
      %v2754 = vld [vmem:[%s3 + $0x130] sm:$0xff]
      %v2755 = vld [vmem:[%s3 + $0x138] sm:$0xff]
      %v2756 = vld [vmem:[%s3 + $0x140] sm:$0xff]
      %v2757 = vld [vmem:[%s3 + $0x148] sm:$0xff]
      %v2758 = vld [vmem:[%s3 + $0x150] sm:$0xff]
      %v2759 = vld [vmem:[%s3 + $0x158] sm:$0xff]
      %v2760 = vld [vmem:[%s3 + $0x160] sm:$0xff]
      %v2761 = vld [vmem:[%s3 + $0x168] sm:$0xff]
      %v2762 = vld [vmem:[%s3 + $0x170] sm:$0xff]
      %v2763 = vld [vmem:[%s3 + $0x178] sm:$0xff]
      %v2764 = vld [vmem:[%s3 + $0x180] sm:$0xff]
      %v2765 = vld [vmem:[%s3 + $0x188] sm:$0xff]
      %v2766 = vld [vmem:[%s3 + $0x190] sm:$0xff]
      %v2767 = vld [vmem:[%s3 + $0x198] sm:$0xff]
      %v2768 = vld [vmem:[%s3 + $0x1a0] sm:$0xff]
      %v2769 = vld [vmem:[%s3 + $0x1a8] sm:$0xff]
      %v2770 = vld [vmem:[%s3 + $0x1b0] sm:$0xff]
      %v2771 = vld [vmem:[%s3 + $0x1b8] sm:$0xff]
      %v2772 = vld [vmem:[%s3 + $0x1c0] sm:$0xff]
      %v2773 = vld [vmem:[%s3 + $0x1c8] sm:$0xff]
      %v2774 = vld [vmem:[%s3 + $0x1d0] sm:$0xff]
      %v2775 = vld [vmem:[%s3 + $0x1d8] sm:$0xff]
      %v2776 = vld [vmem:[%s3 + $0x1e0] sm:$0xff]
      %v2777 = vld [vmem:[%s3 + $0x1e8] sm:$0xff]
      %v2778 = vld [vmem:[%s3 + $0x1f0] sm:$0xff]
      %v2779 = vld [vmem:[%s3 + $0x1f8] sm:$0xff]
      %v2780 = vld [vmem:[%s3 + $0x200] sm:$0xff]
      %v2781 = vld [vmem:[%s3 + $0x208] sm:$0xff]
      %v2782 = vld [vmem:[%s3 + $0x210] sm:$0xff]
      %v2783 = vld [vmem:[%s3 + $0x218] sm:$0xff]
      %v2784 = vld [vmem:[%s3 + $0x220] sm:$0xff]
      %v2785 = vld [vmem:[%s3 + $0x228] sm:$0xff]
      %v2786 = vld [vmem:[%s3 + $0x230] sm:$0xff]
      %v2787 = vld [vmem:[%s3 + $0x238] sm:$0xff]
      %v2788 = vld [vmem:[%s3 + $0x240] sm:$0xff]
      %v2789 = vld [vmem:[%s3 + $0x248] sm:$0xff]
      %v2790 = vld [vmem:[%s3 + $0x250] sm:$0xff]
      %v2791 = vld [vmem:[%s3 + $0x258] sm:$0xff]
      %v2792 = vld [vmem:[%s3 + $0x260] sm:$0xff]
      %v2793 = vld [vmem:[%s3 + $0x268] sm:$0xff]
      %v2794 = vld [vmem:[%s3 + $0x270] sm:$0xff]
      %v2795 = vld [vmem:[%s3 + $0x278] sm:$0xff]
      %v2796 = vld [vmem:[%s3 + $0x280] sm:$0xff]
      %v2797 = vld [vmem:[%s3 + $0x288] sm:$0xff]
      %v2798 = vld [vmem:[%s3 + $0x290] sm:$0xff]
      %v2799 = vld [vmem:[%s3 + $0x298] sm:$0xff]
      %v2800 = vld [vmem:[%s3 + $0x2a0] sm:$0xff]
      %v2801 = vld [vmem:[%s3 + $0x2a8] sm:$0xff]
      %v2802 = vld [vmem:[%s3 + $0x2b0] sm:$0xff]
      %v2803 = vld [vmem:[%s3 + $0x2b8] sm:$0xff]
      %v2804 = vld [vmem:[%s3 + $0x2c0] sm:$0xff]
      %v2805 = vld [vmem:[%s3 + $0x2c8] sm:$0xff]
      %v2806 = vld [vmem:[%s3 + $0x2d0] sm:$0xff]
      %v2807 = vld [vmem:[%s3 + $0x2d8] sm:$0xff]
      %v2808 = vld [vmem:[%s3 + $0x2e0] sm:$0xff]
      %v2809 = vld [vmem:[%s3 + $0x2e8] sm:$0xff]
      %v2810 = vld [vmem:[%s3 + $0x2f0] sm:$0xff]
      %v2811 = vld [vmem:[%s3 + $0x2f8] sm:$0xff]
      %v2812 = vld [vmem:[%s3 + $0x300] sm:$0xff]
      %v2813 = vld [vmem:[%s3 + $0x308] sm:$0xff]
      %v2814 = vld [vmem:[%s3 + $0x310] sm:$0xff]
      %v2815 = vld [vmem:[%s3 + $0x318] sm:$0xff]
      %v2816 = vld [vmem:[%s3 + $0x320] sm:$0xff]
      %v2817 = vld [vmem:[%s3 + $0x328] sm:$0xff]
      %v2818 = vld [vmem:[%s3 + $0x330] sm:$0xff]
      %v2819 = vld [vmem:[%s3 + $0x338] sm:$0xff]
      %v2820 = vld [vmem:[%s3 + $0x340] sm:$0xff]
      %v2821 = vld [vmem:[%s3 + $0x348] sm:$0xff]
      %v2822 = vld [vmem:[%s3 + $0x350] sm:$0xff]
      %v2823 = vld [vmem:[%s3 + $0x358] sm:$0xff]
      %v2824 = vld [vmem:[%s3 + $0x360] sm:$0xff]
      %v2825 = vld [vmem:[%s3 + $0x368] sm:$0xff]
      %v2826 = vld [vmem:[%s3 + $0x370] sm:$0xff]
      %v2827 = vld [vmem:[%s3 + $0x378] sm:$0xff]
      %v2828 = vld [vmem:[%s3 + $0x380] sm:$0xff]
      %v2829 = vld [vmem:[%s3 + $0x388] sm:$0xff]
      %v2830 = vld [vmem:[%s3 + $0x390] sm:$0xff]
      %v2831 = vld [vmem:[%s3 + $0x398] sm:$0xff]
      %v2832 = vld [vmem:[%s3 + $0x3a0] sm:$0xff]
      %v2833 = vld [vmem:[%s3 + $0x3a8] sm:$0xff]
      %v2834 = vld [vmem:[%s3 + $0x3b0] sm:$0xff]
      %v2835 = vld [vmem:[%s3 + $0x3b8] sm:$0xff]
      %v2836 = vld [vmem:[%s3 + $0x3c0] sm:$0xff]
      %v2837 = vld [vmem:[%s3 + $0x3c8] sm:$0xff]
      %v2838 = vld [vmem:[%s3 + $0x3d0] sm:$0xff]
      %v2839 = vld [vmem:[%s3 + $0x3d8] sm:$0xff]
      %v2840 = vld [vmem:[%s3 + $0x3e0] sm:$0xff]
      %v2841 = vld [vmem:[%s3 + $0x3e8] sm:$0xff]
      %v2842 = vld [vmem:[%s3 + $0x3f0] sm:$0xff]
      %v2843 = vld [vmem:[%s3 + $0x3f8] sm:$0xff]
      %v2844 = vld [vmem:[%s3 + $0x400] sm:$0xff]
      %v2845 = vld [vmem:[%s3 + $0x408] sm:$0xff]
      %v2846 = vld [vmem:[%s3 + $0x410] sm:$0xff]
      %v2847 = vld [vmem:[%s3 + $0x418] sm:$0xff]
      %v2848 = vld [vmem:[%s3 + $0x420] sm:$0xff]
      %v2849 = vld [vmem:[%s3 + $0x428] sm:$0xff]
      %v2850 = vld [vmem:[%s3 + $0x430] sm:$0xff]
      %v2851 = vld [vmem:[%s3 + $0x438] sm:$0xff]
      %v2852 = vld [vmem:[%s3 + $0x440] sm:$0xff]
      %v2853 = vld [vmem:[%s3 + $0x448] sm:$0xff]
      %v2854 = vld [vmem:[%s3 + $0x450] sm:$0xff]
      %v2855 = vld [vmem:[%s3 + $0x458] sm:$0xff]
      %v2856 = vld [vmem:[%s3 + $0x460] sm:$0xff]
      %v2857 = vld [vmem:[%s3 + $0x468] sm:$0xff]
      %v2858 = vld [vmem:[%s3 + $0x470] sm:$0xff]
      %v2859 = vld [vmem:[%s3 + $0x478] sm:$0xff]
      %v2860 = vld [vmem:[%s3 + $0x480] sm:$0xff]
      %v2861 = vld [vmem:[%s3 + $0x488] sm:$0xff]
      %v2862 = vld [vmem:[%s3 + $0x490] sm:$0xff]
      %v2863 = vld [vmem:[%s3 + $0x498] sm:$0xff]
      %v2864 = vld [vmem:[%s3 + $0x4a0] sm:$0xff]
      %v2865 = vld [vmem:[%s3 + $0x4a8] sm:$0xff]
      %v2866 = vld [vmem:[%s3 + $0x4b0] sm:$0xff]
      %v2867 = vld [vmem:[%s3 + $0x4b8] sm:$0xff]
      %v2868 = vld [vmem:[%s3 + $0x4c0] sm:$0xff]
      %v2869 = vld [vmem:[%s3 + $0x4c8] sm:$0xff]
      %v2870 = vld [vmem:[%s3 + $0x4d0] sm:$0xff]
      %v2871 = vld [vmem:[%s3 + $0x4d8] sm:$0xff]
      %v2872 = vld [vmem:[%s3 + $0x4e0] sm:$0xff]
      %v2873 = vld [vmem:[%s3 + $0x4e8] sm:$0xff]
      %v2874 = vld [vmem:[%s3 + $0x4f0] sm:$0xff]
      %v2875 = vld [vmem:[%s3 + $0x4f8] sm:$0xff]
      %2876 = vmatprep.subr.mxu0 0.0
      %2877 = vmatpush1.msra.mxu0 %v2716
      %2878 = vmatprep.subr.mxu0 0.0
      %2879 = vmatpush1.msra.mxu0 %v2717
      %2880 = vmatprep.subr.mxu0 0.0
      %2881 = vmatpush1.msra.mxu0 %v2718
      %2882 = vmatprep.subr.mxu0 0.0
      %2883 = vmatpush1.msra.mxu0 %v2719
      %2884 = vmatprep.subr.mxu0 0.0
      %2885 = vmatpush1.msra.mxu0 %v2720
      %2886 = vmatprep.subr.mxu0 0.0
      %2887 = vmatpush1.msra.mxu0 %v2721
      %2888 = vmatprep.subr.mxu0 0.0
      %2889 = vmatpush1.msra.mxu0 %v2722
      %2890 = vmatprep.subr.mxu0 0.0
      %2891 = vmatpush1.msra.mxu0 %v2723
      %2892 = vmatprep.subr.mxu0 0.0
      %2893 = vmatpush1.msra.mxu0 %v2724
      %2894 = vmatprep.subr.mxu0 0.0
      %2895 = vmatpush1.msra.mxu0 %v2725
      %2896 = vmatprep.subr.mxu0 0.0
      %2897 = vmatpush1.msra.mxu0 %v2726
      %2898 = vmatprep.subr.mxu0 0.0
      %2899 = vmatpush1.msra.mxu0 %v2727
      %2900 = vmatprep.subr.mxu0 0.0
      %2901 = vmatpush1.msra.mxu0 %v2728
      %2902 = vmatprep.subr.mxu0 0.0
      %2903 = vmatpush1.msra.mxu0 %v2729
      %2904 = vmatprep.subr.mxu0 0.0
      %2905 = vmatpush1.msra.mxu0 %v2730
      %2906 = vmatprep.subr.mxu0 0.0
      %2907 = vmatpush1.msra.mxu0 %v2731
      %2908 = vmatprep.subr.mxu0 0.0
      %2909 = vmatpush1.msra.mxu0 %v2732
      %2910 = vmatprep.subr.mxu0 0.0
      %2911 = vmatpush1.msra.mxu0 %v2733
      %2912 = vmatprep.subr.mxu0 0.0
      %2913 = vmatpush1.msra.mxu0 %v2734
      %2914 = vmatprep.subr.mxu0 0.0
      %2915 = vmatpush1.msra.mxu0 %v2735
      %2916 = vmatprep.subr.mxu0 0.0
      %2917 = vmatpush1.msra.mxu0 %v2736
      %2918 = vmatprep.subr.mxu0 0.0
      %2919 = vmatpush1.msra.mxu0 %v2737
      %2920 = vmatprep.subr.mxu0 0.0
      %2921 = vmatpush1.msra.mxu0 %v2738
      %2922 = vmatprep.subr.mxu0 0.0
      %2923 = vmatpush1.msra.mxu0 %v2739
      %2924 = vmatprep.subr.mxu0 0.0
      %2925 = vmatpush1.msra.mxu0 %v2740
      %2926 = vmatprep.subr.mxu0 0.0
      %2927 = vmatpush1.msra.mxu0 %v2741
      %2928 = vmatprep.subr.mxu0 0.0
      %2929 = vmatpush1.msra.mxu0 %v2742
      %2930 = vmatprep.subr.mxu0 0.0
      %2931 = vmatpush1.msra.mxu0 %v2743
      %2932 = vmatprep.subr.mxu0 0.0
      %2933 = vmatpush1.msra.mxu0 %v2744
      %2934 = vmatprep.subr.mxu0 0.0
      %2935 = vmatpush1.msra.mxu0 %v2745
      %2936 = vmatprep.subr.mxu0 0.0
      %2937 = vmatpush1.msra.mxu0 %v2746
      %2938 = vmatprep.subr.mxu0 0.0
      %2939 = vmatpush1.msra.mxu0 %v2747
      %2940 = vmatprep.mubr.f32.mxu0 %v1342
      %2941 = vmatmul.mubr.f32.gmra.mrb[0].mxu0 %v1334
      %v2942 = vpop.f32.mrb[0].mxu0
      %v2943 = vadd.f32 0.0, %v2942
      %v2944 = vpop.f32.mrb[0].mxu0
      %2945 = vdwg.mxu0
      %2946 = vmatprep.subr.mxu0 0.0
      %2947 = vmatpush1.msra.mxu0 %v2748
      %2948 = vmatprep.subr.mxu0 0.0
      %2949 = vmatpush1.msra.mxu0 %v2749
      %2950 = vmatprep.subr.mxu0 0.0
      %2951 = vmatpush1.msra.mxu0 %v2750
      %2952 = vmatprep.subr.mxu0 0.0
      %2953 = vmatpush1.msra.mxu0 %v2751
      %2954 = vmatprep.subr.mxu0 0.0
      %2955 = vmatpush1.msra.mxu0 %v2752
      %2956 = vmatprep.subr.mxu0 0.0
      %2957 = vmatpush1.msra.mxu0 %v2753
      %2958 = vmatprep.subr.mxu0 0.0
      %2959 = vmatpush1.msra.mxu0 %v2754
      %2960 = vmatprep.subr.mxu0 0.0
      %2961 = vmatpush1.msra.mxu0 %v2755
      %2962 = vmatprep.subr.mxu0 0.0
      %2963 = vmatpush1.msra.mxu0 %v2756
      %2964 = vmatprep.subr.mxu0 0.0
      %2965 = vmatpush1.msra.mxu0 %v2757
      %2966 = vmatprep.subr.mxu0 0.0
      %2967 = vmatpush1.msra.mxu0 %v2758
      %2968 = vmatprep.subr.mxu0 0.0
      %2969 = vmatpush1.msra.mxu0 %v2759
      %2970 = vmatprep.subr.mxu0 0.0
      %2971 = vmatpush1.msra.mxu0 %v2760
      %2972 = vmatprep.subr.mxu0 0.0
      %2973 = vmatpush1.msra.mxu0 %v2761
      %2974 = vmatprep.subr.mxu0 0.0
      %2975 = vmatpush1.msra.mxu0 %v2762
      %2976 = vmatprep.subr.mxu0 0.0
      %2977 = vmatpush1.msra.mxu0 %v2763
      %2978 = vmatprep.subr.mxu0 0.0
      %2979 = vmatpush1.msra.mxu0 %v2764
      %2980 = vmatprep.subr.mxu0 0.0
      %2981 = vmatpush1.msra.mxu0 %v2765
      %2982 = vmatprep.subr.mxu0 0.0
      %2983 = vmatpush1.msra.mxu0 %v2766
      %2984 = vmatprep.subr.mxu0 0.0
      %2985 = vmatpush1.msra.mxu0 %v2767
      %2986 = vmatprep.subr.mxu0 0.0
      %2987 = vmatpush1.msra.mxu0 %v2768
      %2988 = vmatprep.subr.mxu0 0.0
      %2989 = vmatpush1.msra.mxu0 %v2769
      %2990 = vmatprep.subr.mxu0 0.0
      %2991 = vmatpush1.msra.mxu0 %v2770
      %2992 = vmatprep.subr.mxu0 0.0
      %2993 = vmatpush1.msra.mxu0 %v2771
      %2994 = vmatprep.subr.mxu0 0.0
      %2995 = vmatpush1.msra.mxu0 %v2772
      %2996 = vmatprep.subr.mxu0 0.0
      %2997 = vmatpush1.msra.mxu0 %v2773
      %2998 = vmatprep.subr.mxu0 0.0
      %2999 = vmatpush1.msra.mxu0 %v2774
      %3000 = vmatprep.subr.mxu0 0.0
      %3001 = vmatpush1.msra.mxu0 %v2775
      %3002 = vmatprep.subr.mxu0 0.0
      %3003 = vmatpush1.msra.mxu0 %v2776
      %3004 = vmatprep.subr.mxu0 0.0
      %3005 = vmatpush1.msra.mxu0 %v2777
      %3006 = vmatprep.subr.mxu0 0.0
      %3007 = vmatpush1.msra.mxu0 %v2778
      %3008 = vmatprep.subr.mxu0 0.0
      %3009 = vmatpush1.msra.mxu0 %v2779
      %3010 = vmatprep.mubr.f32.mxu0 %v1343
      %3011 = vmatmul.mubr.f32.gmra.mrb[0].mxu0 %v1341
      %v3012 = vpop.f32.mrb[0].mxu0
      %v3013 = vadd.f32 %v2943, %v3012
      %v3014 = vpop.f32.mrb[0].mxu0
      %3015 = vdwg.mxu0
      %3016 = vmatprep.subr.mxu0 0.0
      %3017 = vmatpush1.msra.mxu0 %v2780
      %3018 = vmatprep.subr.mxu0 0.0
      %3019 = vmatpush1.msra.mxu0 %v2781
      %3020 = vmatprep.subr.mxu0 0.0
      %3021 = vmatpush1.msra.mxu0 %v2782
      %3022 = vmatprep.subr.mxu0 0.0
      %3023 = vmatpush1.msra.mxu0 %v2783
      %3024 = vmatprep.subr.mxu0 0.0
      %3025 = vmatpush1.msra.mxu0 %v2784
      %3026 = vmatprep.subr.mxu0 0.0
      %3027 = vmatpush1.msra.mxu0 %v2785
      %3028 = vmatprep.subr.mxu0 0.0
      %3029 = vmatpush1.msra.mxu0 %v2786
      %3030 = vmatprep.subr.mxu0 0.0
      %3031 = vmatpush1.msra.mxu0 %v2787
      %3032 = vmatprep.subr.mxu0 0.0
      %3033 = vmatpush1.msra.mxu0 %v2788
      %3034 = vmatprep.subr.mxu0 0.0
      %3035 = vmatpush1.msra.mxu0 %v2789
      %3036 = vmatprep.subr.mxu0 0.0
      %3037 = vmatpush1.msra.mxu0 %v2790
      %3038 = vmatprep.subr.mxu0 0.0
      %3039 = vmatpush1.msra.mxu0 %v2791
      %3040 = vmatprep.subr.mxu0 0.0
      %3041 = vmatpush1.msra.mxu0 %v2792
      %3042 = vmatprep.subr.mxu0 0.0
      %3043 = vmatpush1.msra.mxu0 %v2793
      %3044 = vmatprep.subr.mxu0 0.0
      %3045 = vmatpush1.msra.mxu0 %v2794
      %3046 = vmatprep.subr.mxu0 0.0
      %3047 = vmatpush1.msra.mxu0 %v2795
      %3048 = vmatprep.subr.mxu0 0.0
      %3049 = vmatpush1.msra.mxu0 %v2796
      %3050 = vmatprep.subr.mxu0 0.0
      %3051 = vmatpush1.msra.mxu0 %v2797
      %3052 = vmatprep.subr.mxu0 0.0
      %3053 = vmatpush1.msra.mxu0 %v2798
      %3054 = vmatprep.subr.mxu0 0.0
      %3055 = vmatpush1.msra.mxu0 %v2799
      %3056 = vmatprep.subr.mxu0 0.0
      %3057 = vmatpush1.msra.mxu0 %v2800
      %3058 = vmatprep.subr.mxu0 0.0
      %3059 = vmatpush1.msra.mxu0 %v2801
      %3060 = vmatprep.subr.mxu0 0.0
      %3061 = vmatpush1.msra.mxu0 %v2802
      %3062 = vmatprep.subr.mxu0 0.0
      %3063 = vmatpush1.msra.mxu0 %v2803
      %3064 = vmatprep.subr.mxu0 0.0
      %3065 = vmatpush1.msra.mxu0 %v2804
      %3066 = vmatprep.subr.mxu0 0.0
      %3067 = vmatpush1.msra.mxu0 %v2805
      %3068 = vmatprep.subr.mxu0 0.0
      %3069 = vmatpush1.msra.mxu0 %v2806
      %3070 = vmatprep.subr.mxu0 0.0
      %3071 = vmatpush1.msra.mxu0 %v2807
      %3072 = vmatprep.subr.mxu0 0.0
      %3073 = vmatpush1.msra.mxu0 %v2808
      %3074 = vmatprep.subr.mxu0 0.0
      %3075 = vmatpush1.msra.mxu0 %v2809
      %3076 = vmatprep.subr.mxu0 0.0
      %3077 = vmatpush1.msra.mxu0 %v2810
      %3078 = vmatprep.subr.mxu0 0.0
      %3079 = vmatpush1.msra.mxu0 %v2811
      %3080 = vmatprep.mubr.f32.mxu0 %v1359
      %3081 = vmatmul.mubr.f32.gmra.mrb[0].mxu0 %v1351
      %v3082 = vpop.f32.mrb[0].mxu0
      %v3083 = vadd.f32 %v3013, %v3082
      %v3084 = vpop.f32.mrb[0].mxu0
      %3085 = vdwg.mxu0
      %3086 = vmatprep.subr.mxu0 0.0
      %3087 = vmatpush1.msra.mxu0 %v2812
      %3088 = vmatprep.subr.mxu0 0.0
      %3089 = vmatpush1.msra.mxu0 %v2813
      %3090 = vmatprep.subr.mxu0 0.0
      %3091 = vmatpush1.msra.mxu0 %v2814
      %3092 = vmatprep.subr.mxu0 0.0
      %3093 = vmatpush1.msra.mxu0 %v2815
      %3094 = vmatprep.subr.mxu0 0.0
      %3095 = vmatpush1.msra.mxu0 %v2816
      %3096 = vmatprep.subr.mxu0 0.0
      %3097 = vmatpush1.msra.mxu0 %v2817
      %3098 = vmatprep.subr.mxu0 0.0
      %3099 = vmatpush1.msra.mxu0 %v2818
      %3100 = vmatprep.subr.mxu0 0.0
      %3101 = vmatpush1.msra.mxu0 %v2819
      %3102 = vmatprep.subr.mxu0 0.0
      %3103 = vmatpush1.msra.mxu0 %v2820
      %3104 = vmatprep.subr.mxu0 0.0
      %3105 = vmatpush1.msra.mxu0 %v2821
      %3106 = vmatprep.subr.mxu0 0.0
      %3107 = vmatpush1.msra.mxu0 %v2822
      %3108 = vmatprep.subr.mxu0 0.0
      %3109 = vmatpush1.msra.mxu0 %v2823
      %3110 = vmatprep.subr.mxu0 0.0
      %3111 = vmatpush1.msra.mxu0 %v2824
      %3112 = vmatprep.subr.mxu0 0.0
      %3113 = vmatpush1.msra.mxu0 %v2825
      %3114 = vmatprep.subr.mxu0 0.0
      %3115 = vmatpush1.msra.mxu0 %v2826
      %3116 = vmatprep.subr.mxu0 0.0
      %3117 = vmatpush1.msra.mxu0 %v2827
      %3118 = vmatprep.subr.mxu0 0.0
      %3119 = vmatpush1.msra.mxu0 %v2828
      %3120 = vmatprep.subr.mxu0 0.0
      %3121 = vmatpush1.msra.mxu0 %v2829
      %3122 = vmatprep.subr.mxu0 0.0
      %3123 = vmatpush1.msra.mxu0 %v2830
      %3124 = vmatprep.subr.mxu0 0.0
      %3125 = vmatpush1.msra.mxu0 %v2831
      %3126 = vmatprep.subr.mxu0 0.0
      %3127 = vmatpush1.msra.mxu0 %v2832
      %3128 = vmatprep.subr.mxu0 0.0
      %3129 = vmatpush1.msra.mxu0 %v2833
      %3130 = vmatprep.subr.mxu0 0.0
      %3131 = vmatpush1.msra.mxu0 %v2834
      %3132 = vmatprep.subr.mxu0 0.0
      %3133 = vmatpush1.msra.mxu0 %v2835
      %3134 = vmatprep.subr.mxu0 0.0
      %3135 = vmatpush1.msra.mxu0 %v2836
      %3136 = vmatprep.subr.mxu0 0.0
      %3137 = vmatpush1.msra.mxu0 %v2837
      %3138 = vmatprep.subr.mxu0 0.0
      %3139 = vmatpush1.msra.mxu0 %v2838
      %3140 = vmatprep.subr.mxu0 0.0
      %3141 = vmatpush1.msra.mxu0 %v2839
      %3142 = vmatprep.subr.mxu0 0.0
      %3143 = vmatpush1.msra.mxu0 %v2840
      %3144 = vmatprep.subr.mxu0 0.0
      %3145 = vmatpush1.msra.mxu0 %v2841
      %3146 = vmatprep.subr.mxu0 0.0
      %3147 = vmatpush1.msra.mxu0 %v2842
      %3148 = vmatprep.subr.mxu0 0.0
      %3149 = vmatpush1.msra.mxu0 %v2843
      %3150 = vmatprep.mubr.f32.mxu0 %v1360
      %3151 = vmatmul.mubr.f32.gmra.mrb[0].mxu0 %v1358
      %v3152 = vpop.f32.mrb[0].mxu0
      %v3153 = vadd.f32 %v3083, %v3152
      %v3154 = vpop.f32.mrb[0].mxu0
      %3155 = vdwg.mxu0
      %3156 = vmatprep.subr.mxu0 0.0
      %3157 = vmatpush1.msra.mxu0 %v2844
      %3158 = vmatprep.subr.mxu0 0.0
      %3159 = vmatpush1.msra.mxu0 %v2845
      %3160 = vmatprep.subr.mxu0 0.0
      %3161 = vmatpush1.msra.mxu0 %v2846
      %3162 = vmatprep.subr.mxu0 0.0
      %3163 = vmatpush1.msra.mxu0 %v2847
      %3164 = vmatprep.subr.mxu0 0.0
      %3165 = vmatpush1.msra.mxu0 %v2848
      %3166 = vmatprep.subr.mxu0 0.0
      %3167 = vmatpush1.msra.mxu0 %v2849
      %3168 = vmatprep.subr.mxu0 0.0
      %3169 = vmatpush1.msra.mxu0 %v2850
      %3170 = vmatprep.subr.mxu0 0.0
      %3171 = vmatpush1.msra.mxu0 %v2851
      %3172 = vmatprep.subr.mxu0 0.0
      %3173 = vmatpush1.msra.mxu0 %v2852
      %3174 = vmatprep.subr.mxu0 0.0
      %3175 = vmatpush1.msra.mxu0 %v2853
      %3176 = vmatprep.subr.mxu0 0.0
      %3177 = vmatpush1.msra.mxu0 %v2854
      %3178 = vmatprep.subr.mxu0 0.0
      %3179 = vmatpush1.msra.mxu0 %v2855
      %3180 = vmatprep.subr.mxu0 0.0
      %3181 = vmatpush1.msra.mxu0 %v2856
      %3182 = vmatprep.subr.mxu0 0.0
      %3183 = vmatpush1.msra.mxu0 %v2857
      %3184 = vmatprep.subr.mxu0 0.0
      %3185 = vmatpush1.msra.mxu0 %v2858
      %3186 = vmatprep.subr.mxu0 0.0
      %3187 = vmatpush1.msra.mxu0 %v2859
      %3188 = vmatprep.subr.mxu0 0.0
      %3189 = vmatpush1.msra.mxu0 %v2860
      %3190 = vmatprep.subr.mxu0 0.0
      %3191 = vmatpush1.msra.mxu0 %v2861
      %3192 = vmatprep.subr.mxu0 0.0
      %3193 = vmatpush1.msra.mxu0 %v2862
      %3194 = vmatprep.subr.mxu0 0.0
      %3195 = vmatpush1.msra.mxu0 %v2863
      %3196 = vmatprep.subr.mxu0 0.0
      %3197 = vmatpush1.msra.mxu0 %v2864
      %3198 = vmatprep.subr.mxu0 0.0
      %3199 = vmatpush1.msra.mxu0 %v2865
      %3200 = vmatprep.subr.mxu0 0.0
      %3201 = vmatpush1.msra.mxu0 %v2866
      %3202 = vmatprep.subr.mxu0 0.0
      %3203 = vmatpush1.msra.mxu0 %v2867
      %3204 = vmatprep.subr.mxu0 0.0
      %3205 = vmatpush1.msra.mxu0 %v2868
      %3206 = vmatprep.subr.mxu0 0.0
      %3207 = vmatpush1.msra.mxu0 %v2869
      %3208 = vmatprep.subr.mxu0 0.0
      %3209 = vmatpush1.msra.mxu0 %v2870
      %3210 = vmatprep.subr.mxu0 0.0
      %3211 = vmatpush1.msra.mxu0 %v2871
      %3212 = vmatprep.subr.mxu0 0.0
      %3213 = vmatpush1.msra.mxu0 %v2872
      %3214 = vmatprep.subr.mxu0 0.0
      %3215 = vmatpush1.msra.mxu0 %v2873
      %3216 = vmatprep.subr.mxu0 0.0
      %3217 = vmatpush1.msra.mxu0 %v2874
      %3218 = vmatprep.subr.mxu0 0.0
      %3219 = vmatpush1.msra.mxu0 %v2875
      %3220 = vmatprep.mubr.f32.mxu0 %v1368
      %3221 = vmatmul.mubr.f32.gmra.mrb[0].mxu0 %v1367
      %v3222 = vpop.f32.mrb[0].mxu0
      %v3223 = vadd.f32 %v3153, %v3222
      %v3224 = vpop.f32.mrb[0].mxu0
      %3225 = vdwg.mxu0
      %v3227 = vsel %vm2454, %v2715, 0
      %3229 = vmatprep.subr.mxu0 0.0
      %3230 = vmatpush1.msra.mxu0 %v3227
      %3231 = vmatprep.subr.mxu0 0.0
      %3232 = vmatpush1.msra.mxu0 0.0
      %3233 = vmatprep.subr.mxu0 0.0
      %3234 = vmatpush1.msra.mxu0 0.0
      %3235 = vmatprep.subr.mxu0 0.0
      %3236 = vmatpush1.msra.mxu0 0.0
      %3237 = vmatprep.subr.mxu0 0.0
      %3238 = vmatpush1.msra.mxu0 0.0
      %3239 = vmatprep.subr.mxu0 0.0
      %3240 = vmatpush1.msra.mxu0 0.0
      %3241 = vmatprep.subr.mxu0 0.0
      %3242 = vmatpush1.msra.mxu0 0.0
      %3243 = vmatprep.subr.mxu0 0.0
      %3244 = vmatpush1.msra.mxu0 0.0
      %3245 = vmatprep.subr.mxu0 0.0
      %3246 = vmatpush1.msra.mxu0 0.0
      %3247 = vmatprep.subr.mxu0 0.0
      %3248 = vmatpush1.msra.mxu0 0.0
      %3249 = vmatprep.subr.mxu0 0.0
      %3250 = vmatpush1.msra.mxu0 0.0
      %3251 = vmatprep.subr.mxu0 0.0
      %3252 = vmatpush1.msra.mxu0 0.0
      %3253 = vmatprep.subr.mxu0 0.0
      %3254 = vmatpush1.msra.mxu0 0.0
      %3255 = vmatprep.subr.mxu0 0.0
      %3256 = vmatpush1.msra.mxu0 0.0
      %3257 = vmatprep.subr.mxu0 0.0
      %3258 = vmatpush1.msra.mxu0 0.0
      %3259 = vmatprep.subr.mxu0 0.0
      %3260 = vmatpush1.msra.mxu0 0.0
      %3261 = vmatprep.subr.mxu0 0.0
      %3262 = vmatpush1.msra.mxu0 0.0
      %3263 = vmatprep.subr.mxu0 0.0
      %3264 = vmatpush1.msra.mxu0 0.0
      %3265 = vmatprep.subr.mxu0 0.0
      %3266 = vmatpush1.msra.mxu0 0.0
      %3267 = vmatprep.subr.mxu0 0.0
      %3268 = vmatpush1.msra.mxu0 0.0
      %3269 = vmatprep.subr.mxu0 0.0
      %3270 = vmatpush1.msra.mxu0 0.0
      %3271 = vmatprep.subr.mxu0 0.0
      %3272 = vmatpush1.msra.mxu0 0.0
      %3273 = vmatprep.subr.mxu0 0.0
      %3274 = vmatpush1.msra.mxu0 0.0
      %3275 = vmatprep.subr.mxu0 0.0
      %3276 = vmatpush1.msra.mxu0 0.0
      %3277 = vmatprep.subr.mxu0 0.0
      %3278 = vmatpush1.msra.mxu0 0.0
      %3279 = vmatprep.subr.mxu0 0.0
      %3280 = vmatpush1.msra.mxu0 0.0
      %3281 = vmatprep.subr.mxu0 0.0
      %3282 = vmatpush1.msra.mxu0 0.0
      %3283 = vmatprep.subr.mxu0 0.0
      %3284 = vmatpush1.msra.mxu0 0.0
      %3285 = vmatprep.subr.mxu0 0.0
      %3286 = vmatpush1.msra.mxu0 0.0
      %3287 = vmatprep.subr.mxu0 0.0
      %3288 = vmatpush1.msra.mxu0 0.0
      %3289 = vmatprep.subr.mxu0 0.0
      %3290 = vmatpush1.msra.mxu0 0.0
      %3291 = vmatprep.subr.mxu0 0.0
      %3292 = vmatpush1.msra.mxu0 0.0
      %3293 = vmatprep.mubr.f32.mxu0 0.0
      %3294 = vmatmul.mubr.f32.gmra.mrb[0].mxu0 %v2452
      %v3295 = vpop.f32.mrb[0].mxu0
      %v3296 = vadd.f32 %v3223, %v3295
      %v3297 = vpop.f32.mrb[0].mxu0
      %3298 = vdwg.mxu0
      %vm3299 = vcmask 17408
      %3300 = vst.msk [vmem:[#allocation2] sm:$0x3] %vm3299, %v3296
      %v3301 = vld [vmem:[%s6] sm:$0xff]
      %v3302 = vld [vmem:[%s6 + $0x8] sm:$0xff]
      %v3303 = vld [vmem:[%s6 + $0x10] sm:$0xff]
      %v3304 = vld [vmem:[%s6 + $0x18] sm:$0xff]
      %v3305 = vld [vmem:[%s6 + $0x20] sm:$0xff]
      %v3306 = vld [vmem:[%s6 + $0x28] sm:$0xff]
      %v3307 = vld [vmem:[%s6 + $0x30] sm:$0xff]
      %v3308 = vld [vmem:[%s6 + $0x38] sm:$0xff]
      %v3309 = vld [vmem:[%s6 + $0x40] sm:$0xff]
      %v3310 = vld [vmem:[%s6 + $0x48] sm:$0xff]
      %v3311 = vld [vmem:[%s6 + $0x50] sm:$0xff]
      %v3312 = vld [vmem:[%s6 + $0x58] sm:$0xff]
      %v3313 = vld [vmem:[%s6 + $0x60] sm:$0xff]
      %v3314 = vld [vmem:[%s6 + $0x68] sm:$0xff]
      %v3315 = vld [vmem:[%s6 + $0x70] sm:$0xff]
      %v3316 = vld [vmem:[%s6 + $0x78] sm:$0xff]
      %v3317 = vld [vmem:[%s6 + $0x80] sm:$0xff]
      %v3318 = vld [vmem:[%s6 + $0x88] sm:$0xff]
      %v3319 = vld [vmem:[%s6 + $0x90] sm:$0xff]
      %v3320 = vld [vmem:[%s6 + $0x98] sm:$0xff]
      %v3321 = vld [vmem:[%s6 + $0xa0] sm:$0xff]
      %v3322 = vld [vmem:[%s6 + $0xa8] sm:$0xff]
      %v3323 = vld [vmem:[%s6 + $0xb0] sm:$0xff]
      %v3324 = vld [vmem:[%s6 + $0xb8] sm:$0xff]
      %v3325 = vld [vmem:[%s6 + $0xc0] sm:$0xff]
      %v3326 = vld [vmem:[%s6 + $0xc8] sm:$0xff]
      %v3327 = vld [vmem:[%s6 + $0xd0] sm:$0xff]
      %v3328 = vld [vmem:[%s6 + $0xd8] sm:$0xff]
      %v3329 = vld [vmem:[%s6 + $0xe0] sm:$0xff]
      %v3330 = vld [vmem:[%s6 + $0xe8] sm:$0xff]
      %v3331 = vld [vmem:[%s6 + $0xf0] sm:$0xff]
      %v3332 = vld [vmem:[%s6 + $0xf8] sm:$0xff]
      %v3333 = vld [vmem:[%s6 + $0x100] sm:$0xff]
      %v3334 = vld [vmem:[%s6 + $0x108] sm:$0xff]
      %v3335 = vld [vmem:[%s6 + $0x110] sm:$0xff]
      %v3336 = vld [vmem:[%s6 + $0x118] sm:$0xff]
      %v3337 = vld [vmem:[%s6 + $0x120] sm:$0xff]
      %v3338 = vld [vmem:[%s6 + $0x128] sm:$0xff]
      %v3339 = vld [vmem:[%s6 + $0x130] sm:$0xff]
      %v3340 = vld [vmem:[%s6 + $0x138] sm:$0xff]
      %v3341 = vld [vmem:[%s6 + $0x140] sm:$0xff]
      %v3342 = vld [vmem:[%s6 + $0x148] sm:$0xff]
      %v3343 = vld [vmem:[%s6 + $0x150] sm:$0xff]
      %v3344 = vld [vmem:[%s6 + $0x158] sm:$0xff]
      %v3345 = vld [vmem:[%s6 + $0x160] sm:$0xff]
      %v3346 = vld [vmem:[%s6 + $0x168] sm:$0xff]
      %v3347 = vld [vmem:[%s6 + $0x170] sm:$0xff]
      %v3348 = vld [vmem:[%s6 + $0x178] sm:$0xff]
      %v3349 = vld [vmem:[%s6 + $0x180] sm:$0xff]
      %v3350 = vld [vmem:[%s6 + $0x188] sm:$0xff]
      %v3351 = vld [vmem:[%s6 + $0x190] sm:$0xff]
      %v3352 = vld [vmem:[%s6 + $0x198] sm:$0xff]
      %v3353 = vld [vmem:[%s6 + $0x1a0] sm:$0xff]
      %v3354 = vld [vmem:[%s6 + $0x1a8] sm:$0xff]
      %v3355 = vld [vmem:[%s6 + $0x1b0] sm:$0xff]
      %v3356 = vld [vmem:[%s6 + $0x1b8] sm:$0xff]
      %v3357 = vld [vmem:[%s6 + $0x1c0] sm:$0xff]
      %v3358 = vld [vmem:[%s6 + $0x1c8] sm:$0xff]
      %v3359 = vld [vmem:[%s6 + $0x1d0] sm:$0xff]
      %v3360 = vld [vmem:[%s6 + $0x1d8] sm:$0xff]
      %v3361 = vld [vmem:[%s6 + $0x1e0] sm:$0xff]
      %v3362 = vld [vmem:[%s6 + $0x1e8] sm:$0xff]
      %v3363 = vld [vmem:[%s6 + $0x1f0] sm:$0xff]
      %v3364 = vld [vmem:[%s6 + $0x1f8] sm:$0xff]
      %v3365 = vld [vmem:[%s6 + $0x200] sm:$0xff]
      %v3366 = vld [vmem:[%s6 + $0x208] sm:$0xff]
      %v3367 = vld [vmem:[%s6 + $0x210] sm:$0xff]
      %v3368 = vld [vmem:[%s6 + $0x218] sm:$0xff]
      %v3369 = vld [vmem:[%s6 + $0x220] sm:$0xff]
      %v3370 = vld [vmem:[%s6 + $0x228] sm:$0xff]
      %v3371 = vld [vmem:[%s6 + $0x230] sm:$0xff]
      %v3372 = vld [vmem:[%s6 + $0x238] sm:$0xff]
      %v3373 = vld [vmem:[%s6 + $0x240] sm:$0xff]
      %v3374 = vld [vmem:[%s6 + $0x248] sm:$0xff]
      %v3375 = vld [vmem:[%s6 + $0x250] sm:$0xff]
      %v3376 = vld [vmem:[%s6 + $0x258] sm:$0xff]
      %v3377 = vld [vmem:[%s6 + $0x260] sm:$0xff]
      %v3378 = vld [vmem:[%s6 + $0x268] sm:$0xff]
      %v3379 = vld [vmem:[%s6 + $0x270] sm:$0xff]
      %v3380 = vld [vmem:[%s6 + $0x278] sm:$0xff]
      %v3381 = vld [vmem:[%s6 + $0x280] sm:$0xff]
      %v3382 = vld [vmem:[%s6 + $0x288] sm:$0xff]
      %v3383 = vld [vmem:[%s6 + $0x290] sm:$0xff]
      %v3384 = vld [vmem:[%s6 + $0x298] sm:$0xff]
      %v3385 = vld [vmem:[%s6 + $0x2a0] sm:$0xff]
      %v3386 = vld [vmem:[%s6 + $0x2a8] sm:$0xff]
      %v3387 = vld [vmem:[%s6 + $0x2b0] sm:$0xff]
      %v3388 = vld [vmem:[%s6 + $0x2b8] sm:$0xff]
      %v3389 = vld [vmem:[%s6 + $0x2c0] sm:$0xff]
      %v3390 = vld [vmem:[%s6 + $0x2c8] sm:$0xff]
      %v3391 = vld [vmem:[%s6 + $0x2d0] sm:$0xff]
      %v3392 = vld [vmem:[%s6 + $0x2d8] sm:$0xff]
      %v3393 = vld [vmem:[%s6 + $0x2e0] sm:$0xff]
      %v3394 = vld [vmem:[%s6 + $0x2e8] sm:$0xff]
      %v3395 = vld [vmem:[%s6 + $0x2f0] sm:$0xff]
      %v3396 = vld [vmem:[%s6 + $0x2f8] sm:$0xff]
      %v3397 = vld [vmem:[%s6 + $0x300] sm:$0xff]
      %v3398 = vld [vmem:[%s6 + $0x308] sm:$0xff]
      %v3399 = vld [vmem:[%s6 + $0x310] sm:$0xff]
      %v3400 = vld [vmem:[%s6 + $0x318] sm:$0xff]
      %v3401 = vld [vmem:[%s6 + $0x320] sm:$0xff]
      %v3402 = vld [vmem:[%s6 + $0x328] sm:$0xff]
      %v3403 = vld [vmem:[%s6 + $0x330] sm:$0xff]
      %v3404 = vld [vmem:[%s6 + $0x338] sm:$0xff]
      %v3405 = vld [vmem:[%s6 + $0x340] sm:$0xff]
      %v3406 = vld [vmem:[%s6 + $0x348] sm:$0xff]
      %v3407 = vld [vmem:[%s6 + $0x350] sm:$0xff]
      %v3408 = vld [vmem:[%s6 + $0x358] sm:$0xff]
      %v3409 = vld [vmem:[%s6 + $0x360] sm:$0xff]
      %v3410 = vld [vmem:[%s6 + $0x368] sm:$0xff]
      %v3411 = vld [vmem:[%s6 + $0x370] sm:$0xff]
      %v3412 = vld [vmem:[%s6 + $0x378] sm:$0xff]
      %v3413 = vld [vmem:[%s6 + $0x380] sm:$0xff]
      %v3414 = vld [vmem:[%s6 + $0x388] sm:$0xff]
      %v3415 = vld [vmem:[%s6 + $0x390] sm:$0xff]
      %v3416 = vld [vmem:[%s6 + $0x398] sm:$0xff]
      %v3417 = vld [vmem:[%s6 + $0x3a0] sm:$0xff]
      %v3418 = vld [vmem:[%s6 + $0x3a8] sm:$0xff]
      %v3419 = vld [vmem:[%s6 + $0x3b0] sm:$0xff]
      %v3420 = vld [vmem:[%s6 + $0x3b8] sm:$0xff]
      %v3421 = vld [vmem:[%s6 + $0x3c0] sm:$0xff]
      %v3422 = vld [vmem:[%s6 + $0x3c8] sm:$0xff]
      %v3423 = vld [vmem:[%s6 + $0x3d0] sm:$0xff]
      %v3424 = vld [vmem:[%s6 + $0x3d8] sm:$0xff]
      %v3425 = vld [vmem:[%s6 + $0x3e0] sm:$0xff]
      %v3426 = vld [vmem:[%s6 + $0x3e8] sm:$0xff]
      %v3427 = vld [vmem:[%s6 + $0x3f0] sm:$0xff]
      %v3428 = vld [vmem:[%s6 + $0x3f8] sm:$0xff]
      %v3429 = vld [vmem:[%s6 + $0x400] sm:$0xff]
      %v3430 = vld [vmem:[%s6 + $0x408] sm:$0xff]
      %v3431 = vld [vmem:[%s6 + $0x410] sm:$0xff]
      %v3432 = vld [vmem:[%s6 + $0x418] sm:$0xff]
      %v3433 = vld [vmem:[%s6 + $0x420] sm:$0xff]
      %v3434 = vld [vmem:[%s6 + $0x428] sm:$0xff]
      %v3435 = vld [vmem:[%s6 + $0x430] sm:$0xff]
      %v3436 = vld [vmem:[%s6 + $0x438] sm:$0xff]
      %v3437 = vld [vmem:[%s6 + $0x440] sm:$0xff]
      %v3438 = vld [vmem:[%s6 + $0x448] sm:$0xff]
      %v3439 = vld [vmem:[%s6 + $0x450] sm:$0xff]
      %v3440 = vld [vmem:[%s6 + $0x458] sm:$0xff]
      %v3441 = vld [vmem:[%s6 + $0x460] sm:$0xff]
      %v3442 = vld [vmem:[%s6 + $0x468] sm:$0xff]
      %v3443 = vld [vmem:[%s6 + $0x470] sm:$0xff]
      %v3444 = vld [vmem:[%s6 + $0x478] sm:$0xff]
      %v3445 = vld [vmem:[%s6 + $0x480] sm:$0xff]
      %v3446 = vld [vmem:[%s6 + $0x488] sm:$0xff]
      %v3447 = vld [vmem:[%s6 + $0x490] sm:$0xff]
      %v3448 = vld [vmem:[%s6 + $0x498] sm:$0xff]
      %v3449 = vld [vmem:[%s6 + $0x4a0] sm:$0xff]
      %v3450 = vld [vmem:[%s6 + $0x4a8] sm:$0xff]
      %v3451 = vld [vmem:[%s6 + $0x4b0] sm:$0xff]
      %v3452 = vld [vmem:[%s6 + $0x4b8] sm:$0xff]
      %v3453 = vld [vmem:[%s6 + $0x4c0] sm:$0xff]
      %v3454 = vld [vmem:[%s6 + $0x4c8] sm:$0xff]
      %v3455 = vld [vmem:[%s6 + $0x4d0] sm:$0xff]
      %v3456 = vld [vmem:[%s6 + $0x4d8] sm:$0xff]
      %v3457 = vld [vmem:[%s6 + $0x4e0] sm:$0xff]
      %v3458 = vld [vmem:[%s6 + $0x4e8] sm:$0xff]
      %v3459 = vld [vmem:[%s6 + $0x4f0] sm:$0xff]
      %v3460 = vld [vmem:[%s6 + $0x4f8] sm:$0xff]
      %v3461 = vld [vmem:[%s6 + $0x500] sm:$0xff]
      %v3462 = vld [vmem:[%s6 + $0x508] sm:$0xff]
      %v3463 = vld [vmem:[%s6 + $0x510] sm:$0xff]
      %v3464 = vld [vmem:[%s6 + $0x518] sm:$0xff]
      %v3465 = vld [vmem:[%s6 + $0x520] sm:$0xff]
      %v3466 = vld [vmem:[%s6 + $0x528] sm:$0xff]
      %v3467 = vld [vmem:[%s6 + $0x530] sm:$0xff]
      %v3468 = vld [vmem:[%s6 + $0x538] sm:$0xff]
      %v3469 = vld [vmem:[%s6 + $0x540] sm:$0xff]
      %v3470 = vld [vmem:[%s6 + $0x548] sm:$0xff]
      %v3471 = vld [vmem:[%s6 + $0x550] sm:$0xff]
      %v3472 = vld [vmem:[%s6 + $0x558] sm:$0xff]
      %v3473 = vld [vmem:[%s6 + $0x560] sm:$0xff]
      %v3474 = vld [vmem:[%s6 + $0x568] sm:$0xff]
      %v3475 = vld [vmem:[%s6 + $0x570] sm:$0xff]
      %v3476 = vld [vmem:[%s6 + $0x578] sm:$0xff]
      %v3477 = vld [vmem:[%s6 + $0x580] sm:$0xff]
      %v3478 = vld [vmem:[%s6 + $0x588] sm:$0xff]
      %v3479 = vld [vmem:[%s6 + $0x590] sm:$0xff]
      %v3480 = vld [vmem:[%s6 + $0x598] sm:$0xff]
      %v3481 = vld [vmem:[%s6 + $0x5a0] sm:$0xff]
      %v3482 = vld [vmem:[%s6 + $0x5a8] sm:$0xff]
      %v3483 = vld [vmem:[%s6 + $0x5b0] sm:$0xff]
      %v3484 = vld [vmem:[%s6 + $0x5b8] sm:$0xff]
      %v3485 = vld [vmem:[%s6 + $0x5c0] sm:$0xff]
      %v3486 = vld [vmem:[%s6 + $0x5c8] sm:$0xff]
      %v3487 = vld [vmem:[%s6 + $0x5d0] sm:$0xff]
      %v3488 = vld [vmem:[%s6 + $0x5d8] sm:$0xff]
      %v3489 = vld [vmem:[%s6 + $0x5e0] sm:$0xff]
      %v3490 = vld [vmem:[%s6 + $0x5e8] sm:$0xff]
      %v3491 = vld [vmem:[%s6 + $0x5f0] sm:$0xff]
      %v3492 = vld [vmem:[%s6 + $0x5f8] sm:$0xff]
      %v3493 = vld [vmem:[%s6 + $0x600] sm:$0xff]
      %v3494 = vld [vmem:[%s6 + $0x608] sm:$0xff]
      %v3495 = vld [vmem:[%s6 + $0x610] sm:$0xff]
      %v3496 = vld [vmem:[%s6 + $0x618] sm:$0xff]
      %v3497 = vld [vmem:[%s6 + $0x620] sm:$0xff]
      %v3498 = vld [vmem:[%s6 + $0x628] sm:$0xff]
      %v3499 = vld [vmem:[%s6 + $0x630] sm:$0xff]
      %v3500 = vld [vmem:[%s6 + $0x638] sm:$0xff]
      %v3501 = vld [vmem:[%s6 + $0x640] sm:$0xff]
      %v3502 = vld [vmem:[%s6 + $0x648] sm:$0xff]
      %v3503 = vld [vmem:[%s6 + $0x650] sm:$0xff]
      %v3504 = vld [vmem:[%s6 + $0x658] sm:$0xff]
      %v3505 = vld [vmem:[%s6 + $0x660] sm:$0xff]
      %v3506 = vld [vmem:[%s6 + $0x668] sm:$0xff]
      %v3507 = vld [vmem:[%s6 + $0x670] sm:$0xff]
      %v3508 = vld [vmem:[%s6 + $0x678] sm:$0xff]
      %v3509 = vld [vmem:[%s6 + $0x680] sm:$0xff]
      %v3510 = vld [vmem:[%s6 + $0x688] sm:$0xff]
      %v3511 = vld [vmem:[%s6 + $0x690] sm:$0xff]
      %v3512 = vld [vmem:[%s6 + $0x698] sm:$0xff]
      %v3513 = vld [vmem:[%s6 + $0x6a0] sm:$0xff]
      %v3514 = vld [vmem:[%s6 + $0x6a8] sm:$0xff]
      %v3515 = vld [vmem:[%s6 + $0x6b0] sm:$0xff]
      %v3516 = vld [vmem:[%s6 + $0x6b8] sm:$0xff]
      %v3517 = vld [vmem:[%s6 + $0x6c0] sm:$0xff]
      %v3518 = vld [vmem:[%s6 + $0x6c8] sm:$0xff]
      %v3519 = vld [vmem:[%s6 + $0x6d0] sm:$0xff]
      %v3520 = vld [vmem:[%s6 + $0x6d8] sm:$0xff]
      %v3521 = vld [vmem:[%s6 + $0x6e0] sm:$0xff]
      %v3522 = vld [vmem:[%s6 + $0x6e8] sm:$0xff]
      %v3523 = vld [vmem:[%s6 + $0x6f0] sm:$0xff]
      %v3524 = vld [vmem:[%s6 + $0x6f8] sm:$0xff]
      %v3525 = vld [vmem:[%s6 + $0x700] sm:$0xff]
      %v3526 = vld [vmem:[%s6 + $0x708] sm:$0xff]
      %v3527 = vld [vmem:[%s6 + $0x710] sm:$0xff]
      %v3528 = vld [vmem:[%s6 + $0x718] sm:$0xff]
      %v3529 = vld [vmem:[%s6 + $0x720] sm:$0xff]
      %v3530 = vld [vmem:[%s6 + $0x728] sm:$0xff]
      %v3531 = vld [vmem:[%s6 + $0x730] sm:$0xff]
      %v3532 = vld [vmem:[%s6 + $0x738] sm:$0xff]
      %v3533 = vld [vmem:[%s6 + $0x740] sm:$0xff]
      %v3534 = vld [vmem:[%s6 + $0x748] sm:$0xff]
      %v3535 = vld [vmem:[%s6 + $0x750] sm:$0xff]
      %v3536 = vld [vmem:[%s6 + $0x758] sm:$0xff]
      %v3537 = vld [vmem:[%s6 + $0x760] sm:$0xff]
      %v3538 = vld [vmem:[%s6 + $0x768] sm:$0xff]
      %v3539 = vld [vmem:[%s6 + $0x770] sm:$0xff]
      %v3540 = vld [vmem:[%s6 + $0x778] sm:$0xff]
      %v3541 = vld [vmem:[%s6 + $0x780] sm:$0xff]
      %v3542 = vld [vmem:[%s6 + $0x788] sm:$0xff]
      %v3543 = vld [vmem:[%s6 + $0x790] sm:$0xff]
      %v3544 = vld [vmem:[%s6 + $0x798] sm:$0xff]
      %v3545 = vld [vmem:[%s6 + $0x7a0] sm:$0xff]
      %v3546 = vld [vmem:[%s6 + $0x7a8] sm:$0xff]
      %v3547 = vld [vmem:[%s6 + $0x7b0] sm:$0xff]
      %v3548 = vld [vmem:[%s6 + $0x7b8] sm:$0xff]
      %v3549 = vld [vmem:[%s6 + $0x7c0] sm:$0xff]
      %v3550 = vld [vmem:[%s6 + $0x7c8] sm:$0xff]
      %v3551 = vld [vmem:[%s6 + $0x7d0] sm:$0xff]
      %v3552 = vld [vmem:[%s6 + $0x7d8] sm:$0xff]
      %v3553 = vld [vmem:[%s6 + $0x7e0] sm:$0xff]
      %v3554 = vld [vmem:[%s6 + $0x7e8] sm:$0xff]
      %v3555 = vld [vmem:[%s6 + $0x7f0] sm:$0xff]
      %v3556 = vld [vmem:[%s6 + $0x7f8] sm:$0xff]
      %v3557 = vld [vmem:[%s6 + $0x800] sm:$0xff]
      %v3558 = vld [vmem:[%s6 + $0x808] sm:$0xff]
      %v3559 = vld [vmem:[%s6 + $0x810] sm:$0xff]
      %v3560 = vld [vmem:[%s6 + $0x818] sm:$0xff]
      %v3561 = vld [vmem:[%s6 + $0x820] sm:$0xff]
      %v3562 = vld [vmem:[%s6 + $0x828] sm:$0xff]
      %v3563 = vld [vmem:[%s6 + $0x830] sm:$0xff]
      %v3564 = vld [vmem:[%s6 + $0x838] sm:$0xff]
      %v3565 = vld [vmem:[%s6 + $0x840] sm:$0xff]
      %v3566 = vld [vmem:[%s6 + $0x848] sm:$0xff]
      %v3567 = vld [vmem:[%s6 + $0x850] sm:$0xff]
      %v3568 = vld [vmem:[%s6 + $0x858] sm:$0xff]
      %v3569 = vld [vmem:[%s6 + $0x860] sm:$0xff]
      %v3570 = vld [vmem:[%s6 + $0x868] sm:$0xff]
      %v3571 = vld [vmem:[%s6 + $0x870] sm:$0xff]
      %v3572 = vld [vmem:[%s6 + $0x878] sm:$0xff]
      %v3573 = vld [vmem:[%s6 + $0x880] sm:$0xff]
      %v3574 = vld [vmem:[%s6 + $0x888] sm:$0xff]
      %v3575 = vld [vmem:[%s6 + $0x890] sm:$0xff]
      %v3576 = vld [vmem:[%s6 + $0x898] sm:$0xff]
      %v3577 = vld [vmem:[%s6 + $0x8a0] sm:$0xff]
      %v3578 = vld [vmem:[%s6 + $0x8a8] sm:$0xff]
      %v3579 = vld [vmem:[%s6 + $0x8b0] sm:$0xff]
      %v3580 = vld [vmem:[%s6 + $0x8b8] sm:$0xff]
      %v3581 = vld [vmem:[%s6 + $0x8c0] sm:$0xff]
      %v3582 = vld [vmem:[%s6 + $0x8c8] sm:$0xff]
      %v3583 = vld [vmem:[%s6 + $0x8d0] sm:$0xff]
      %v3584 = vld [vmem:[%s6 + $0x8d8] sm:$0xff]
      %v3585 = vld [vmem:[%s6 + $0x8e0] sm:$0xff]
      %v3586 = vld [vmem:[%s6 + $0x8e8] sm:$0xff]
      %v3587 = vld [vmem:[%s6 + $0x8f0] sm:$0xff]
      %v3588 = vld [vmem:[%s6 + $0x8f8] sm:$0xff]
      %v3589 = vld [vmem:[%s6 + $0x900] sm:$0xff]
      %v3590 = vld [vmem:[%s6 + $0x908] sm:$0xff]
      %v3591 = vld [vmem:[%s6 + $0x910] sm:$0xff]
      %v3592 = vld [vmem:[%s6 + $0x918] sm:$0xff]
      %v3593 = vld [vmem:[%s6 + $0x920] sm:$0xff]
      %v3594 = vld [vmem:[%s6 + $0x928] sm:$0xff]
      %v3595 = vld [vmem:[%s6 + $0x930] sm:$0xff]
      %v3596 = vld [vmem:[%s6 + $0x938] sm:$0xff]
      %v3597 = vld [vmem:[%s6 + $0x940] sm:$0xff]
      %v3598 = vld [vmem:[%s6 + $0x948] sm:$0xff]
      %v3599 = vld [vmem:[%s6 + $0x950] sm:$0xff]
      %v3600 = vld [vmem:[%s6 + $0x958] sm:$0xff]
      %v3601 = vld [vmem:[%s6 + $0x960] sm:$0xff]
      %v3602 = vld [vmem:[%s6 + $0x968] sm:$0xff]
      %v3603 = vld [vmem:[%s6 + $0x970] sm:$0xff]
      %v3604 = vld [vmem:[%s6 + $0x978] sm:$0xff]
      %v3605 = vld [vmem:[%s6 + $0x980] sm:$0xff]
      %v3606 = vld [vmem:[%s6 + $0x988] sm:$0xff]
      %v3607 = vld [vmem:[%s6 + $0x990] sm:$0xff]
      %v3608 = vld [vmem:[%s6 + $0x998] sm:$0xff]
      %v3609 = vld [vmem:[%s6 + $0x9a0] sm:$0xff]
      %v3610 = vld [vmem:[%s6 + $0x9a8] sm:$0xff]
      %v3611 = vld [vmem:[%s6 + $0x9b0] sm:$0xff]
      %v3612 = vld [vmem:[%s6 + $0x9b8] sm:$0xff]
      %v3613 = vld [vmem:[%s6 + $0x9c0] sm:$0xff]
      %v3614 = vld [vmem:[%s6 + $0x9c8] sm:$0xff]
      %v3615 = vld [vmem:[%s6 + $0x9d0] sm:$0xff]
      %v3616 = vld [vmem:[%s6 + $0x9d8] sm:$0xff]
      %v3617 = vld [vmem:[%s6 + $0x9e0] sm:$0xff]
      %v3618 = vld [vmem:[%s6 + $0x9e8] sm:$0xff]
      %v3619 = vld [vmem:[%s6 + $0x9f0] sm:$0xff]
      %v3620 = vld [vmem:[%s6 + $0x9f8] sm:$0xff]
      %v3621 = vld [vmem:[%s6 + $0xa00] sm:$0xff]
      %v3622 = vld [vmem:[%s6 + $0xa08] sm:$0xff]
      %v3623 = vld [vmem:[%s6 + $0xa10] sm:$0xff]
      %v3624 = vld [vmem:[%s6 + $0xa18] sm:$0xff]
      %v3625 = vld [vmem:[%s6 + $0xa20] sm:$0xff]
      %v3626 = vld [vmem:[%s6 + $0xa28] sm:$0xff]
      %v3627 = vld [vmem:[%s6 + $0xa30] sm:$0xff]
      %v3628 = vld [vmem:[%s6 + $0xa38] sm:$0xff]
      %v3629 = vld [vmem:[%s6 + $0xa40] sm:$0xff]
      %v3630 = vld [vmem:[%s6 + $0xa48] sm:$0xff]
      %v3631 = vld [vmem:[%s6 + $0xa50] sm:$0xff]
      %v3632 = vld [vmem:[%s6 + $0xa58] sm:$0xff]
      %v3633 = vld [vmem:[%s6 + $0xa60] sm:$0xff]
      %v3634 = vld [vmem:[%s6 + $0xa68] sm:$0xff]
      %v3635 = vld [vmem:[%s6 + $0xa70] sm:$0xff]
      %v3636 = vld [vmem:[%s6 + $0xa78] sm:$0xff]
      %v3637 = vld [vmem:[%s6 + $0xa80] sm:$0xff]
      %v3638 = vld [vmem:[%s6 + $0xa88] sm:$0xff]
      %v3639 = vld [vmem:[%s6 + $0xa90] sm:$0xff]
      %v3640 = vld [vmem:[%s6 + $0xa98] sm:$0xff]
      %v3641 = vld [vmem:[%s6 + $0xaa0] sm:$0xff]
      %v3642 = vld [vmem:[%s6 + $0xaa8] sm:$0xff]
      %v3643 = vld [vmem:[%s6 + $0xab0] sm:$0xff]
      %v3644 = vld [vmem:[%s6 + $0xab8] sm:$0xff]
      %v3645 = vld [vmem:[%s6 + $0xac0] sm:$0xff]
      %v3646 = vld [vmem:[%s6 + $0xac8] sm:$0xff]
      %v3647 = vld [vmem:[%s6 + $0xad0] sm:$0xff]
      %v3648 = vld [vmem:[%s6 + $0xad8] sm:$0xff]
      %v3649 = vld [vmem:[%s6 + $0xae0] sm:$0xff]
      %v3650 = vld [vmem:[%s6 + $0xae8] sm:$0xff]
      %v3651 = vld [vmem:[%s6 + $0xaf0] sm:$0xff]
      %v3652 = vld [vmem:[%s6 + $0xaf8] sm:$0xff]
      %v3653 = vld [vmem:[%s6 + $0xb00] sm:$0xff]
      %v3654 = vld [vmem:[%s6 + $0xb08] sm:$0xff]
      %v3655 = vld [vmem:[%s6 + $0xb10] sm:$0xff]
      %v3656 = vld [vmem:[%s6 + $0xb18] sm:$0xff]
      %v3657 = vld [vmem:[%s6 + $0xb20] sm:$0xff]
      %v3658 = vld [vmem:[%s6 + $0xb28] sm:$0xff]
      %v3659 = vld [vmem:[%s6 + $0xb30] sm:$0xff]
      %v3660 = vld [vmem:[%s6 + $0xb38] sm:$0xff]
      %v3661 = vld [vmem:[%s6 + $0xb40] sm:$0xff]
      %v3662 = vld [vmem:[%s6 + $0xb48] sm:$0xff]
      %v3663 = vld [vmem:[%s6 + $0xb50] sm:$0xff]
      %v3664 = vld [vmem:[%s6 + $0xb58] sm:$0xff]
      %v3665 = vld [vmem:[%s6 + $0xb60] sm:$0xff]
      %v3666 = vld [vmem:[%s6 + $0xb68] sm:$0xff]
      %v3667 = vld [vmem:[%s6 + $0xb70] sm:$0xff]
      %v3668 = vld [vmem:[%s6 + $0xb78] sm:$0xff]
      %v3669 = vld [vmem:[%s6 + $0xb80] sm:$0xff]
      %v3670 = vld [vmem:[%s6 + $0xb88] sm:$0xff]
      %v3671 = vld [vmem:[%s6 + $0xb90] sm:$0xff]
      %v3672 = vld [vmem:[%s6 + $0xb98] sm:$0xff]
      %v3673 = vld [vmem:[%s6 + $0xba0] sm:$0xff]
      %v3674 = vld [vmem:[%s6 + $0xba8] sm:$0xff]
      %v3675 = vld [vmem:[%s6 + $0xbb0] sm:$0xff]
      %v3676 = vld [vmem:[%s6 + $0xbb8] sm:$0xff]
      %v3677 = vld [vmem:[%s6 + $0xbc0] sm:$0xff]
      %v3678 = vld [vmem:[%s6 + $0xbc8] sm:$0xff]
      %v3679 = vld [vmem:[%s6 + $0xbd0] sm:$0xff]
      %v3680 = vld [vmem:[%s6 + $0xbd8] sm:$0xff]
      %v3681 = vld [vmem:[%s6 + $0xbe0] sm:$0xff]
      %v3682 = vld [vmem:[%s6 + $0xbe8] sm:$0xff]
      %v3683 = vld [vmem:[%s6 + $0xbf0] sm:$0xff]
      %v3684 = vld [vmem:[%s6 + $0xbf8] sm:$0xff]
      %v3685 = vld [vmem:[%s6 + $0xc00] sm:$0xff]
      %v3686 = vld [vmem:[%s6 + $0xc08] sm:$0xff]
      %v3687 = vld [vmem:[%s6 + $0xc10] sm:$0xff]
      %v3688 = vld [vmem:[%s6 + $0xc18] sm:$0xff]
      %v3689 = vld [vmem:[%s6 + $0xc20] sm:$0xff]
      %v3690 = vld [vmem:[%s6 + $0xc28] sm:$0xff]
      %v3691 = vld [vmem:[%s6 + $0xc30] sm:$0xff]
      %v3692 = vld [vmem:[%s6 + $0xc38] sm:$0xff]
      %v3693 = vld [vmem:[%s6 + $0xc40] sm:$0xff]
      %v3694 = vld [vmem:[%s6 + $0xc48] sm:$0xff]
      %v3695 = vld [vmem:[%s6 + $0xc50] sm:$0xff]
      %v3696 = vld [vmem:[%s6 + $0xc58] sm:$0xff]
      %v3697 = vld [vmem:[%s6 + $0xc60] sm:$0xff]
      %v3698 = vld [vmem:[%s6 + $0xc68] sm:$0xff]
      %v3699 = vld [vmem:[%s6 + $0xc70] sm:$0xff]
      %v3700 = vld [vmem:[%s6 + $0xc78] sm:$0xff]
      %v3701 = vld [vmem:[%s6 + $0xc80] sm:$0xff]
      %v3702 = vld [vmem:[%s6 + $0xc88] sm:$0xff]
      %v3703 = vld [vmem:[%s6 + $0xc90] sm:$0xff]
      %v3704 = vld [vmem:[%s6 + $0xc98] sm:$0xff]
      %v3705 = vld [vmem:[%s6 + $0xca0] sm:$0xff]
      %v3706 = vld [vmem:[%s6 + $0xca8] sm:$0xff]
      %v3707 = vld [vmem:[%s6 + $0xcb0] sm:$0xff]
      %v3708 = vld [vmem:[%s6 + $0xcb8] sm:$0xff]
      %v3709 = vld [vmem:[%s6 + $0xcc0] sm:$0xff]
      %v3710 = vld [vmem:[%s6 + $0xcc8] sm:$0xff]
      %v3711 = vld [vmem:[%s6 + $0xcd0] sm:$0xff]
      %v3712 = vld [vmem:[%s6 + $0xcd8] sm:$0xff]
      %v3713 = vld [vmem:[%s6 + $0xce0] sm:$0xff]
      %v3714 = vld [vmem:[%s6 + $0xce8] sm:$0xff]
      %v3715 = vld [vmem:[%s6 + $0xcf0] sm:$0xff]
      %v3716 = vld [vmem:[%s6 + $0xcf8] sm:$0xff]
      %v3717 = vld [vmem:[%s6 + $0xd00] sm:$0xff]
      %v3718 = vld [vmem:[%s6 + $0xd08] sm:$0xff]
      %v3719 = vld [vmem:[%s6 + $0xd10] sm:$0xff]
      %v3720 = vld [vmem:[%s6 + $0xd18] sm:$0xff]
      %v3721 = vld [vmem:[%s6 + $0xd20] sm:$0xff]
      %v3722 = vld [vmem:[%s6 + $0xd28] sm:$0xff]
      %v3723 = vld [vmem:[%s6 + $0xd30] sm:$0xff]
      %v3724 = vld [vmem:[%s6 + $0xd38] sm:$0xff]
      %v3725 = vld [vmem:[%s6 + $0xd40] sm:$0xff]
      %v3726 = vld [vmem:[%s6 + $0xd48] sm:$0xff]
      %v3727 = vld [vmem:[%s6 + $0xd50] sm:$0xff]
      %v3728 = vld [vmem:[%s6 + $0xd58] sm:$0xff]
      %v3729 = vld [vmem:[%s6 + $0xd60] sm:$0xff]
      %v3730 = vld [vmem:[%s6 + $0xd68] sm:$0xff]
      %v3731 = vld [vmem:[%s6 + $0xd70] sm:$0xff]
      %v3732 = vld [vmem:[%s6 + $0xd78] sm:$0xff]
      %v3733 = vld [vmem:[%s6 + $0xd80] sm:$0xff]
      %v3734 = vld [vmem:[%s6 + $0xd88] sm:$0xff]
      %v3735 = vld [vmem:[%s6 + $0xd90] sm:$0xff]
      %v3736 = vld [vmem:[%s6 + $0xd98] sm:$0xff]
      %v3737 = vld [vmem:[%s6 + $0xda0] sm:$0xff]
      %v3738 = vld [vmem:[%s6 + $0xda8] sm:$0xff]
      %v3739 = vld [vmem:[%s6 + $0xdb0] sm:$0xff]
      %v3740 = vld [vmem:[%s6 + $0xdb8] sm:$0xff]
      %v3741 = vld [vmem:[%s6 + $0xdc0] sm:$0xff]
      %v3742 = vld [vmem:[%s6 + $0xdc8] sm:$0xff]
      %v3743 = vld [vmem:[%s6 + $0xdd0] sm:$0xff]
      %v3744 = vld [vmem:[%s6 + $0xdd8] sm:$0xff]
      %v3745 = vld [vmem:[%s6 + $0xde0] sm:$0xff]
      %v3746 = vld [vmem:[%s6 + $0xde8] sm:$0xff]
      %v3747 = vld [vmem:[%s6 + $0xdf0] sm:$0xff]
      %v3748 = vld [vmem:[%s6 + $0xdf8] sm:$0xff]
      %v3749 = vld [vmem:[%s6 + $0xe00] sm:$0xff]
      %v3750 = vld [vmem:[%s6 + $0xe08] sm:$0xff]
      %v3751 = vld [vmem:[%s6 + $0xe10] sm:$0xff]
      %v3752 = vld [vmem:[%s6 + $0xe18] sm:$0xff]
      %v3753 = vld [vmem:[%s6 + $0xe20] sm:$0xff]
      %v3754 = vld [vmem:[%s6 + $0xe28] sm:$0xff]
      %v3755 = vld [vmem:[%s6 + $0xe30] sm:$0xff]
      %v3756 = vld [vmem:[%s6 + $0xe38] sm:$0xff]
      %v3757 = vld [vmem:[%s6 + $0xe40] sm:$0xff]
      %v3758 = vld [vmem:[%s6 + $0xe48] sm:$0xff]
      %v3759 = vld [vmem:[%s6 + $0xe50] sm:$0xff]
      %v3760 = vld [vmem:[%s6 + $0xe58] sm:$0xff]
      %v3761 = vld [vmem:[%s6 + $0xe60] sm:$0xff]
      %v3762 = vld [vmem:[%s6 + $0xe68] sm:$0xff]
      %v3763 = vld [vmem:[%s6 + $0xe70] sm:$0xff]
      %v3764 = vld [vmem:[%s6 + $0xe78] sm:$0xff]
      %v3765 = vld [vmem:[%s6 + $0xe80] sm:$0xff]
      %v3766 = vld [vmem:[%s6 + $0xe88] sm:$0xff]
      %v3767 = vld [vmem:[%s6 + $0xe90] sm:$0xff]
      %v3768 = vld [vmem:[%s6 + $0xe98] sm:$0xff]
      %v3769 = vld [vmem:[%s6 + $0xea0] sm:$0xff]
      %v3770 = vld [vmem:[%s6 + $0xea8] sm:$0xff]
      %v3771 = vld [vmem:[%s6 + $0xeb0] sm:$0xff]
      %v3772 = vld [vmem:[%s6 + $0xeb8] sm:$0xff]
      %v3773 = vld [vmem:[%s6 + $0xec0] sm:$0xff]
      %v3774 = vld [vmem:[%s6 + $0xec8] sm:$0xff]
      %v3775 = vld [vmem:[%s6 + $0xed0] sm:$0xff]
      %v3776 = vld [vmem:[%s6 + $0xed8] sm:$0xff]
      %v3777 = vld [vmem:[%s6 + $0xee0] sm:$0xff]
      %v3778 = vld [vmem:[%s6 + $0xee8] sm:$0xff]
      %v3779 = vld [vmem:[%s6 + $0xef0] sm:$0xff]
      %v3780 = vld [vmem:[%s6 + $0xef8] sm:$0xff]
      %v3781 = vld [vmem:[%s6 + $0xf00] sm:$0xff]
      %v3782 = vld [vmem:[%s6 + $0xf08] sm:$0xff]
      %v3783 = vld [vmem:[%s6 + $0xf10] sm:$0xff]
      %v3784 = vld [vmem:[%s6 + $0xf18] sm:$0xff]
      %v3785 = vld [vmem:[%s6 + $0xf20] sm:$0xff]
      %v3786 = vld [vmem:[%s6 + $0xf28] sm:$0xff]
      %v3787 = vld [vmem:[%s6 + $0xf30] sm:$0xff]
      %v3788 = vld [vmem:[%s6 + $0xf38] sm:$0xff]
      %v3789 = vld [vmem:[%s6 + $0xf40] sm:$0xff]
      %v3790 = vld [vmem:[%s6 + $0xf48] sm:$0xff]
      %v3791 = vld [vmem:[%s6 + $0xf50] sm:$0xff]
      %v3792 = vld [vmem:[%s6 + $0xf58] sm:$0xff]
      %v3793 = vld [vmem:[%s6 + $0xf60] sm:$0xff]
      %v3794 = vld [vmem:[%s6 + $0xf68] sm:$0xff]
      %v3795 = vld [vmem:[%s6 + $0xf70] sm:$0xff]
      %v3796 = vld [vmem:[%s6 + $0xf78] sm:$0xff]
      %v3797 = vld [vmem:[%s6 + $0xf80] sm:$0xff]
      %v3798 = vld [vmem:[%s6 + $0xf88] sm:$0xff]
      %v3799 = vld [vmem:[%s6 + $0xf90] sm:$0xff]
      %v3800 = vld [vmem:[%s6 + $0xf98] sm:$0xff]
      %v3801 = vld [vmem:[%s6 + $0xfa0] sm:$0xff]
      %v3802 = vld [vmem:[%s6 + $0xfa8] sm:$0xff]
      %v3803 = vld [vmem:[%s6 + $0xfb0] sm:$0xff]
      %v3804 = vld [vmem:[%s6 + $0xfb8] sm:$0xff]
      %v3805 = vld [vmem:[%s6 + $0xfc0] sm:$0xff]
      %v3806 = vld [vmem:[%s6 + $0xfc8] sm:$0xff]
      %v3807 = vld [vmem:[%s6 + $0xfd0] sm:$0xff]
      %v3808 = vld [vmem:[%s6 + $0xfd8] sm:$0xff]
      %v3809 = vld [vmem:[%s6 + $0xfe0] sm:$0xff]
      %v3810 = vld [vmem:[%s6 + $0xfe8] sm:$0xff]
      %v3811 = vld [vmem:[%s6 + $0xff0] sm:$0xff]
      %v3812 = vld [vmem:[%s6 + $0xff8] sm:$0xff]
      %v3813 = vld [vmem:[%s6 + $0x1000] sm:$0xff]
      %v3814 = vld [vmem:[%s6 + $0x1008] sm:$0xff]
      %v3815 = vld [vmem:[%s6 + $0x1010] sm:$0xff]
      %v3816 = vld [vmem:[%s6 + $0x1018] sm:$0xff]
      %v3817 = vld [vmem:[%s6 + $0x1020] sm:$0xff]
      %v3818 = vld [vmem:[%s6 + $0x1028] sm:$0xff]
      %v3819 = vld [vmem:[%s6 + $0x1030] sm:$0xff]
      %v3820 = vld [vmem:[%s6 + $0x1038] sm:$0xff]
      %v3821 = vld [vmem:[%s6 + $0x1040] sm:$0xff]
      %v3822 = vld [vmem:[%s6 + $0x1048] sm:$0xff]
      %v3823 = vld [vmem:[%s6 + $0x1050] sm:$0xff]
      %v3824 = vld [vmem:[%s6 + $0x1058] sm:$0xff]
      %v3825 = vld [vmem:[%s6 + $0x1060] sm:$0xff]
      %v3826 = vld [vmem:[%s6 + $0x1068] sm:$0xff]
      %v3827 = vld [vmem:[%s6 + $0x1070] sm:$0xff]
      %v3828 = vld [vmem:[%s6 + $0x1078] sm:$0xff]
      %v3829 = vld [vmem:[%s6 + $0x1080] sm:$0xff]
      %v3830 = vld [vmem:[%s6 + $0x1088] sm:$0xff]
      %v3831 = vld [vmem:[%s6 + $0x1090] sm:$0xff]
      %v3832 = vld [vmem:[%s6 + $0x1098] sm:$0xff]
      %v3833 = vld [vmem:[%s6 + $0x10a0] sm:$0xff]
      %v3834 = vld [vmem:[%s6 + $0x10a8] sm:$0xff]
      %v3835 = vld [vmem:[%s6 + $0x10b0] sm:$0xff]
      %v3836 = vld [vmem:[%s6 + $0x10b8] sm:$0xff]
      %v3837 = vld [vmem:[%s6 + $0x10c0] sm:$0xff]
      %v3838 = vld [vmem:[%s6 + $0x10c8] sm:$0xff]
      %v3839 = vld [vmem:[%s6 + $0x10d0] sm:$0xff]
      %v3840 = vld [vmem:[%s6 + $0x10d8] sm:$0xff]
      %v3841 = vld [vmem:[%s6 + $0x10e0] sm:$0xff]
      %v3842 = vld [vmem:[%s6 + $0x10e8] sm:$0xff]
      %v3843 = vld [vmem:[%s6 + $0x10f0] sm:$0xff]
      %v3844 = vld [vmem:[%s6 + $0x10f8] sm:$0xff]
      %v3845 = vld [vmem:[%s6 + $0x1100] sm:$0xff]
      %v3846 = vld [vmem:[%s6 + $0x1108] sm:$0xff]
      %v3847 = vld [vmem:[%s6 + $0x1110] sm:$0xff]
      %v3848 = vld [vmem:[%s6 + $0x1118] sm:$0xff]
      %v3849 = vld [vmem:[%s6 + $0x1120] sm:$0xff]
      %v3850 = vld [vmem:[%s6 + $0x1128] sm:$0xff]
      %v3851 = vld [vmem:[%s6 + $0x1130] sm:$0xff]
      %v3852 = vld [vmem:[%s6 + $0x1138] sm:$0xff]
      %v3853 = vld [vmem:[%s6 + $0x1140] sm:$0xff]
      %v3854 = vld [vmem:[%s6 + $0x1148] sm:$0xff]
      %v3855 = vld [vmem:[%s6 + $0x1150] sm:$0xff]
      %v3856 = vld [vmem:[%s6 + $0x1158] sm:$0xff]
      %v3857 = vld [vmem:[%s6 + $0x1160] sm:$0xff]
      %v3858 = vld [vmem:[%s6 + $0x1168] sm:$0xff]
      %v3859 = vld [vmem:[%s6 + $0x1170] sm:$0xff]
      %v3860 = vld [vmem:[%s6 + $0x1178] sm:$0xff]
      %v3861 = vld [vmem:[%s6 + $0x1180] sm:$0xff]
      %v3862 = vld [vmem:[%s6 + $0x1188] sm:$0xff]
      %v3863 = vld [vmem:[%s6 + $0x1190] sm:$0xff]
      %v3864 = vld [vmem:[%s6 + $0x1198] sm:$0xff]
      %v3865 = vld [vmem:[%s6 + $0x11a0] sm:$0xff]
      %v3866 = vld [vmem:[%s6 + $0x11a8] sm:$0xff]
      %v3867 = vld [vmem:[%s6 + $0x11b0] sm:$0xff]
      %v3868 = vld [vmem:[%s6 + $0x11b8] sm:$0xff]
      %v3869 = vld [vmem:[%s6 + $0x11c0] sm:$0xff]
      %v3870 = vld [vmem:[%s6 + $0x11c8] sm:$0xff]
      %v3871 = vld [vmem:[%s6 + $0x11d0] sm:$0xff]
      %v3872 = vld [vmem:[%s6 + $0x11d8] sm:$0xff]
      %v3873 = vld [vmem:[%s6 + $0x11e0] sm:$0xff]
      %v3874 = vld [vmem:[%s6 + $0x11e8] sm:$0xff]
      %v3875 = vld [vmem:[%s6 + $0x11f0] sm:$0xff]
      %v3876 = vld [vmem:[%s6 + $0x11f8] sm:$0xff]
      %v3877 = vld [vmem:[%s7] sm:$0x3f]
      %v3879 = vlaneseq
      %v3880 = vshrl.u32 %v3879, 7
      %v3881 = vsub.s32 0, %v3880
      %v3882 = vrot.slane %v3877, %v3881
      %v3883 = vlaneseq
      %v3884 = vshrl.u32 %v3883, 7
      %v3885 = vsub.s32 1, %v3884
      %v3886 = vrot.slane %v3877, %v3885
      %v3887 = vlaneseq
      %v3888 = vshrl.u32 %v3887, 7
      %v3889 = vsub.s32 2, %v3888
      %v3890 = vrot.slane %v3877, %v3889
      %v3891 = vlaneseq
      %v3892 = vshrl.u32 %v3891, 7
      %v3893 = vsub.s32 3, %v3892
      %v3894 = vrot.slane %v3877, %v3893
      %v3895 = vlaneseq
      %v3896 = vshrl.u32 %v3895, 7
      %v3897 = vsub.s32 4, %v3896
      %v3898 = vrot.slane %v3877, %v3897
      %v3899 = vlaneseq
      %v3900 = vshrl.u32 %v3899, 7
      %v3901 = vsub.s32 5, %v3900
      %v3902 = vrot.slane %v3877, %v3901
      %3909 = vmatprep.subr.mxu0 %v3302
      %3910 = vmatpush1.msra.mxu0 %v3301
      %3911 = vmatprep.subr.mxu0 %v3308
      %3912 = vmatpush1.msra.mxu0 %v3307
      %3913 = vmatprep.subr.mxu0 %v3314
      %3914 = vmatpush1.msra.mxu0 %v3313
      %3915 = vmatprep.subr.mxu0 %v3320
      %3916 = vmatpush1.msra.mxu0 %v3319
      %3917 = vmatprep.subr.mxu0 %v3326
      %3918 = vmatpush1.msra.mxu0 %v3325
      %3919 = vmatprep.subr.mxu0 %v3332
      %3920 = vmatpush1.msra.mxu0 %v3331
      %3921 = vmatprep.subr.mxu0 %v3338
      %3922 = vmatpush1.msra.mxu0 %v3337
      %3923 = vmatprep.subr.mxu0 %v3344
      %3924 = vmatpush1.msra.mxu0 %v3343
      %3925 = vmatprep.subr.mxu0 %v3350
      %3926 = vmatpush1.msra.mxu0 %v3349
      %3927 = vmatprep.subr.mxu0 %v3356
      %3928 = vmatpush1.msra.mxu0 %v3355
      %3929 = vmatprep.subr.mxu0 %v3362
      %3930 = vmatpush1.msra.mxu0 %v3361
      %3931 = vmatprep.subr.mxu0 %v3368
      %3932 = vmatpush1.msra.mxu0 %v3367
      %3933 = vmatprep.subr.mxu0 %v3374
      %3934 = vmatpush1.msra.mxu0 %v3373
      %3935 = vmatprep.subr.mxu0 %v3380
      %3936 = vmatpush1.msra.mxu0 %v3379
      %3937 = vmatprep.subr.mxu0 %v3386
      %3938 = vmatpush1.msra.mxu0 %v3385
      %3939 = vmatprep.subr.mxu0 %v3392
      %3940 = vmatpush1.msra.mxu0 %v3391
      %3941 = vmatprep.subr.mxu0 %v3398
      %3942 = vmatpush1.msra.mxu0 %v3397
      %3943 = vmatprep.subr.mxu0 %v3404
      %3944 = vmatpush1.msra.mxu0 %v3403
      %3945 = vmatprep.subr.mxu0 %v3410
      %3946 = vmatpush1.msra.mxu0 %v3409
      %3947 = vmatprep.subr.mxu0 %v3416
      %3948 = vmatpush1.msra.mxu0 %v3415
      %3949 = vmatprep.subr.mxu0 %v3422
      %3950 = vmatpush1.msra.mxu0 %v3421
      %3951 = vmatprep.subr.mxu0 %v3428
      %3952 = vmatpush1.msra.mxu0 %v3427
      %3953 = vmatprep.subr.mxu0 %v3434
      %3954 = vmatpush1.msra.mxu0 %v3433
      %3955 = vmatprep.subr.mxu0 %v3440
      %3956 = vmatpush1.msra.mxu0 %v3439
      %3957 = vmatprep.subr.mxu0 %v3446
      %3958 = vmatpush1.msra.mxu0 %v3445
      %3959 = vmatprep.subr.mxu0 %v3452
      %3960 = vmatpush1.msra.mxu0 %v3451
      %3961 = vmatprep.subr.mxu0 %v3458
      %3962 = vmatpush1.msra.mxu0 %v3457
      %3963 = vmatprep.subr.mxu0 %v3464
      %3964 = vmatpush1.msra.mxu0 %v3463
      %3965 = vmatprep.subr.mxu0 %v3470
      %3966 = vmatpush1.msra.mxu0 %v3469
      %3967 = vmatprep.subr.mxu0 %v3476
      %3968 = vmatpush1.msra.mxu0 %v3475
      %3969 = vmatprep.subr.mxu0 %v3482
      %3970 = vmatpush1.msra.mxu0 %v3481
      %3971 = vmatprep.subr.mxu0 %v3488
      %3972 = vmatpush1.msra.mxu0 %v3487
      %3973 = vmatprep.mubr.f32.mxu0 %v2536
      %3974 = vmatmul.mubr.f32.gmra.mrb[0].mxu0 %v2534
      %v3975 = vpop.f32.mrb[0].mxu0
      %v3976 = vadd.f32 %v3882, %v3975
      %v3977 = vpop.f32.mrb[0].mxu0
      %v3978 = vadd.f32 %v3886, %v3977
      %3979 = vdwg.mxu0
      %3980 = vmatprep.subr.mxu0 %v3494
      %3981 = vmatpush1.msra.mxu0 %v3493
      %3982 = vmatprep.subr.mxu0 %v3500
      %3983 = vmatpush1.msra.mxu0 %v3499
      %3984 = vmatprep.subr.mxu0 %v3506
      %3985 = vmatpush1.msra.mxu0 %v3505
      %3986 = vmatprep.subr.mxu0 %v3512
      %3987 = vmatpush1.msra.mxu0 %v3511
      %3988 = vmatprep.subr.mxu0 %v3518
      %3989 = vmatpush1.msra.mxu0 %v3517
      %3990 = vmatprep.subr.mxu0 %v3524
      %3991 = vmatpush1.msra.mxu0 %v3523
      %3992 = vmatprep.subr.mxu0 %v3530
      %3993 = vmatpush1.msra.mxu0 %v3529
      %3994 = vmatprep.subr.mxu0 %v3536
      %3995 = vmatpush1.msra.mxu0 %v3535
      %3996 = vmatprep.subr.mxu0 %v3542
      %3997 = vmatpush1.msra.mxu0 %v3541
      %3998 = vmatprep.subr.mxu0 %v3548
      %3999 = vmatpush1.msra.mxu0 %v3547
      %4000 = vmatprep.subr.mxu0 %v3554
      %4001 = vmatpush1.msra.mxu0 %v3553
      %4002 = vmatprep.subr.mxu0 %v3560
      %4003 = vmatpush1.msra.mxu0 %v3559
      %4004 = vmatprep.subr.mxu0 %v3566
      %4005 = vmatpush1.msra.mxu0 %v3565
      %4006 = vmatprep.subr.mxu0 %v3572
      %4007 = vmatpush1.msra.mxu0 %v3571
      %4008 = vmatprep.subr.mxu0 %v3578
      %4009 = vmatpush1.msra.mxu0 %v3577
      %4010 = vmatprep.subr.mxu0 %v3584
      %4011 = vmatpush1.msra.mxu0 %v3583
      %4012 = vmatprep.subr.mxu0 %v3590
      %4013 = vmatpush1.msra.mxu0 %v3589
      %4014 = vmatprep.subr.mxu0 %v3596
      %4015 = vmatpush1.msra.mxu0 %v3595
      %4016 = vmatprep.subr.mxu0 %v3602
      %4017 = vmatpush1.msra.mxu0 %v3601
      %4018 = vmatprep.subr.mxu0 %v3608
      %4019 = vmatpush1.msra.mxu0 %v3607
      %4020 = vmatprep.subr.mxu0 %v3614
      %4021 = vmatpush1.msra.mxu0 %v3613
      %4022 = vmatprep.subr.mxu0 %v3620
      %4023 = vmatpush1.msra.mxu0 %v3619
      %4024 = vmatprep.subr.mxu0 %v3626
      %4025 = vmatpush1.msra.mxu0 %v3625
      %4026 = vmatprep.subr.mxu0 %v3632
      %4027 = vmatpush1.msra.mxu0 %v3631
      %4028 = vmatprep.subr.mxu0 %v3638
      %4029 = vmatpush1.msra.mxu0 %v3637
      %4030 = vmatprep.subr.mxu0 %v3644
      %4031 = vmatpush1.msra.mxu0 %v3643
      %4032 = vmatprep.subr.mxu0 %v3650
      %4033 = vmatpush1.msra.mxu0 %v3649
      %4034 = vmatprep.subr.mxu0 %v3656
      %4035 = vmatpush1.msra.mxu0 %v3655
      %4036 = vmatprep.subr.mxu0 %v3662
      %4037 = vmatpush1.msra.mxu0 %v3661
      %4038 = vmatprep.subr.mxu0 %v3668
      %4039 = vmatpush1.msra.mxu0 %v3667
      %4040 = vmatprep.subr.mxu0 %v3674
      %4041 = vmatpush1.msra.mxu0 %v3673
      %4042 = vmatprep.subr.mxu0 %v3680
      %4043 = vmatpush1.msra.mxu0 %v3679
      %4044 = vmatprep.mubr.f32.mxu0 %v2607
      %4045 = vmatmul.mubr.f32.gmra.mrb[0].mxu0 %v2605
      %v4046 = vpop.f32.mrb[0].mxu0
      %v4047 = vadd.f32 %v3976, %v4046
      %v4048 = vpop.f32.mrb[0].mxu0
      %v4049 = vadd.f32 %v3978, %v4048
      %4050 = vdwg.mxu0
      %4051 = vmatprep.subr.mxu0 %v3686
      %4052 = vmatpush1.msra.mxu0 %v3685
      %4053 = vmatprep.subr.mxu0 %v3692
      %4054 = vmatpush1.msra.mxu0 %v3691
      %4055 = vmatprep.subr.mxu0 %v3698
      %4056 = vmatpush1.msra.mxu0 %v3697
      %4057 = vmatprep.subr.mxu0 %v3704
      %4058 = vmatpush1.msra.mxu0 %v3703
      %4059 = vmatprep.subr.mxu0 %v3710
      %4060 = vmatpush1.msra.mxu0 %v3709
      %4061 = vmatprep.subr.mxu0 %v3716
      %4062 = vmatpush1.msra.mxu0 %v3715
      %4063 = vmatprep.subr.mxu0 %v3722
      %4064 = vmatpush1.msra.mxu0 %v3721
      %4065 = vmatprep.subr.mxu0 %v3728
      %4066 = vmatpush1.msra.mxu0 %v3727
      %4067 = vmatprep.subr.mxu0 %v3734
      %4068 = vmatpush1.msra.mxu0 %v3733
      %4069 = vmatprep.subr.mxu0 %v3740
      %4070 = vmatpush1.msra.mxu0 %v3739
      %4071 = vmatprep.subr.mxu0 %v3746
      %4072 = vmatpush1.msra.mxu0 %v3745
      %4073 = vmatprep.subr.mxu0 %v3752
      %4074 = vmatpush1.msra.mxu0 %v3751
      %4075 = vmatprep.subr.mxu0 %v3758
      %4076 = vmatpush1.msra.mxu0 %v3757
      %4077 = vmatprep.subr.mxu0 %v3764
      %4078 = vmatpush1.msra.mxu0 %v3763
      %4079 = vmatprep.subr.mxu0 %v3770
      %4080 = vmatpush1.msra.mxu0 %v3769
      %4081 = vmatprep.subr.mxu0 %v3776
      %4082 = vmatpush1.msra.mxu0 %v3775
      %4083 = vmatprep.subr.mxu0 %v3782
      %4084 = vmatpush1.msra.mxu0 %v3781
      %4085 = vmatprep.subr.mxu0 %v3788
      %4086 = vmatpush1.msra.mxu0 %v3787
      %4087 = vmatprep.subr.mxu0 %v3794
      %4088 = vmatpush1.msra.mxu0 %v3793
      %4089 = vmatprep.subr.mxu0 %v3800
      %4090 = vmatpush1.msra.mxu0 %v3799
      %4091 = vmatprep.subr.mxu0 %v3806
      %4092 = vmatpush1.msra.mxu0 %v3805
      %4093 = vmatprep.subr.mxu0 %v3812
      %4094 = vmatpush1.msra.mxu0 %v3811
      %4095 = vmatprep.subr.mxu0 %v3818
      %4096 = vmatpush1.msra.mxu0 %v3817
      %4097 = vmatprep.subr.mxu0 %v3824
      %4098 = vmatpush1.msra.mxu0 %v3823
      %4099 = vmatprep.subr.mxu0 %v3830
      %4100 = vmatpush1.msra.mxu0 %v3829
      %4101 = vmatprep.subr.mxu0 %v3836
      %4102 = vmatpush1.msra.mxu0 %v3835
      %4103 = vmatprep.subr.mxu0 %v3842
      %4104 = vmatpush1.msra.mxu0 %v3841
      %4105 = vmatprep.subr.mxu0 %v3848
      %4106 = vmatpush1.msra.mxu0 %v3847
      %4107 = vmatprep.subr.mxu0 %v3854
      %4108 = vmatpush1.msra.mxu0 %v3853
      %4109 = vmatprep.subr.mxu0 %v3860
      %4110 = vmatpush1.msra.mxu0 %v3859
      %4111 = vmatprep.subr.mxu0 %v3866
      %4112 = vmatpush1.msra.mxu0 %v3865
      %4113 = vmatprep.subr.mxu0 %v3872
      %4114 = vmatpush1.msra.mxu0 %v3871
      %4115 = vmatprep.mubr.f32.mxu0 %v2678
      %4116 = vmatmul.mubr.f32.gmra.mrb[0].mxu0 %v2676
      %v4117 = vpop.f32.mrb[0].mxu0
      %v4118 = vadd.f32 %v4047, %v4117
      %v4119 = vpop.f32.mrb[0].mxu0
      %v4120 = vadd.f32 %v4049, %v4119
      %4121 = vdwg.mxu0
      %4122 = vmatprep.subr.mxu0 %v3304
      %4123 = vmatpush1.msra.mxu0 %v3303
      %4124 = vmatprep.subr.mxu0 %v3310
      %4125 = vmatpush1.msra.mxu0 %v3309
      %4126 = vmatprep.subr.mxu0 %v3316
      %4127 = vmatpush1.msra.mxu0 %v3315
      %4128 = vmatprep.subr.mxu0 %v3322
      %4129 = vmatpush1.msra.mxu0 %v3321
      %4130 = vmatprep.subr.mxu0 %v3328
      %4131 = vmatpush1.msra.mxu0 %v3327
      %4132 = vmatprep.subr.mxu0 %v3334
      %4133 = vmatpush1.msra.mxu0 %v3333
      %4134 = vmatprep.subr.mxu0 %v3340
      %4135 = vmatpush1.msra.mxu0 %v3339
      %4136 = vmatprep.subr.mxu0 %v3346
      %4137 = vmatpush1.msra.mxu0 %v3345
      %4138 = vmatprep.subr.mxu0 %v3352
      %4139 = vmatpush1.msra.mxu0 %v3351
      %4140 = vmatprep.subr.mxu0 %v3358
      %4141 = vmatpush1.msra.mxu0 %v3357
      %4142 = vmatprep.subr.mxu0 %v3364
      %4143 = vmatpush1.msra.mxu0 %v3363
      %4144 = vmatprep.subr.mxu0 %v3370
      %4145 = vmatpush1.msra.mxu0 %v3369
      %4146 = vmatprep.subr.mxu0 %v3376
      %4147 = vmatpush1.msra.mxu0 %v3375
      %4148 = vmatprep.subr.mxu0 %v3382
      %4149 = vmatpush1.msra.mxu0 %v3381
      %4150 = vmatprep.subr.mxu0 %v3388
      %4151 = vmatpush1.msra.mxu0 %v3387
      %4152 = vmatprep.subr.mxu0 %v3394
      %4153 = vmatpush1.msra.mxu0 %v3393
      %4154 = vmatprep.subr.mxu0 %v3400
      %4155 = vmatpush1.msra.mxu0 %v3399
      %4156 = vmatprep.subr.mxu0 %v3406
      %4157 = vmatpush1.msra.mxu0 %v3405
      %4158 = vmatprep.subr.mxu0 %v3412
      %4159 = vmatpush1.msra.mxu0 %v3411
      %4160 = vmatprep.subr.mxu0 %v3418
      %4161 = vmatpush1.msra.mxu0 %v3417
      %4162 = vmatprep.subr.mxu0 %v3424
      %4163 = vmatpush1.msra.mxu0 %v3423
      %4164 = vmatprep.subr.mxu0 %v3430
      %4165 = vmatpush1.msra.mxu0 %v3429
      %4166 = vmatprep.subr.mxu0 %v3436
      %4167 = vmatpush1.msra.mxu0 %v3435
      %4168 = vmatprep.subr.mxu0 %v3442
      %4169 = vmatpush1.msra.mxu0 %v3441
      %4170 = vmatprep.subr.mxu0 %v3448
      %4171 = vmatpush1.msra.mxu0 %v3447
      %4172 = vmatprep.subr.mxu0 %v3454
      %4173 = vmatpush1.msra.mxu0 %v3453
      %4174 = vmatprep.subr.mxu0 %v3460
      %4175 = vmatpush1.msra.mxu0 %v3459
      %4176 = vmatprep.subr.mxu0 %v3466
      %4177 = vmatpush1.msra.mxu0 %v3465
      %4178 = vmatprep.subr.mxu0 %v3472
      %4179 = vmatpush1.msra.mxu0 %v3471
      %4180 = vmatprep.subr.mxu0 %v3478
      %4181 = vmatpush1.msra.mxu0 %v3477
      %4182 = vmatprep.subr.mxu0 %v3484
      %4183 = vmatpush1.msra.mxu0 %v3483
      %4184 = vmatprep.subr.mxu0 %v3490
      %4185 = vmatpush1.msra.mxu0 %v3489
      %4186 = vmatprep.mubr.f32.mxu0 %v2536
      %4187 = vmatmul.mubr.f32.gmra.mrb[0].mxu0 %v2534
      %v4188 = vpop.f32.mrb[0].mxu0
      %v4189 = vadd.f32 %v3890, %v4188
      %v4190 = vpop.f32.mrb[0].mxu0
      %v4191 = vadd.f32 %v3894, %v4190
      %4192 = vdwg.mxu0
      %4193 = vmatprep.subr.mxu0 %v3496
      %4194 = vmatpush1.msra.mxu0 %v3495
      %4195 = vmatprep.subr.mxu0 %v3502
      %4196 = vmatpush1.msra.mxu0 %v3501
      %4197 = vmatprep.subr.mxu0 %v3508
      %4198 = vmatpush1.msra.mxu0 %v3507
      %4199 = vmatprep.subr.mxu0 %v3514
      %4200 = vmatpush1.msra.mxu0 %v3513
      %4201 = vmatprep.subr.mxu0 %v3520
      %4202 = vmatpush1.msra.mxu0 %v3519
      %4203 = vmatprep.subr.mxu0 %v3526
      %4204 = vmatpush1.msra.mxu0 %v3525
      %4205 = vmatprep.subr.mxu0 %v3532
      %4206 = vmatpush1.msra.mxu0 %v3531
      %4207 = vmatprep.subr.mxu0 %v3538
      %4208 = vmatpush1.msra.mxu0 %v3537
      %4209 = vmatprep.subr.mxu0 %v3544
      %4210 = vmatpush1.msra.mxu0 %v3543
      %4211 = vmatprep.subr.mxu0 %v3550
      %4212 = vmatpush1.msra.mxu0 %v3549
      %4213 = vmatprep.subr.mxu0 %v3556
      %4214 = vmatpush1.msra.mxu0 %v3555
      %4215 = vmatprep.subr.mxu0 %v3562
      %4216 = vmatpush1.msra.mxu0 %v3561
      %4217 = vmatprep.subr.mxu0 %v3568
      %4218 = vmatpush1.msra.mxu0 %v3567
      %4219 = vmatprep.subr.mxu0 %v3574
      %4220 = vmatpush1.msra.mxu0 %v3573
      %4221 = vmatprep.subr.mxu0 %v3580
      %4222 = vmatpush1.msra.mxu0 %v3579
      %4223 = vmatprep.subr.mxu0 %v3586
      %4224 = vmatpush1.msra.mxu0 %v3585
      %4225 = vmatprep.subr.mxu0 %v3592
      %4226 = vmatpush1.msra.mxu0 %v3591
      %4227 = vmatprep.subr.mxu0 %v3598
      %4228 = vmatpush1.msra.mxu0 %v3597
      %4229 = vmatprep.subr.mxu0 %v3604
      %4230 = vmatpush1.msra.mxu0 %v3603
      %4231 = vmatprep.subr.mxu0 %v3610
      %4232 = vmatpush1.msra.mxu0 %v3609
      %4233 = vmatprep.subr.mxu0 %v3616
      %4234 = vmatpush1.msra.mxu0 %v3615
      %4235 = vmatprep.subr.mxu0 %v3622
      %4236 = vmatpush1.msra.mxu0 %v3621
      %4237 = vmatprep.subr.mxu0 %v3628
      %4238 = vmatpush1.msra.mxu0 %v3627
      %4239 = vmatprep.subr.mxu0 %v3634
      %4240 = vmatpush1.msra.mxu0 %v3633
      %4241 = vmatprep.subr.mxu0 %v3640
      %4242 = vmatpush1.msra.mxu0 %v3639
      %4243 = vmatprep.subr.mxu0 %v3646
      %4244 = vmatpush1.msra.mxu0 %v3645
      %4245 = vmatprep.subr.mxu0 %v3652
      %4246 = vmatpush1.msra.mxu0 %v3651
      %4247 = vmatprep.subr.mxu0 %v3658
      %4248 = vmatpush1.msra.mxu0 %v3657
      %4249 = vmatprep.subr.mxu0 %v3664
      %4250 = vmatpush1.msra.mxu0 %v3663
      %4251 = vmatprep.subr.mxu0 %v3670
      %4252 = vmatpush1.msra.mxu0 %v3669
      %4253 = vmatprep.subr.mxu0 %v3676
      %4254 = vmatpush1.msra.mxu0 %v3675
      %4255 = vmatprep.subr.mxu0 %v3682
      %4256 = vmatpush1.msra.mxu0 %v3681
      %4257 = vmatprep.mubr.f32.mxu0 %v2607
      %4258 = vmatmul.mubr.f32.gmra.mrb[0].mxu0 %v2605
      %v4259 = vpop.f32.mrb[0].mxu0
      %v4260 = vadd.f32 %v4189, %v4259
      %v4261 = vpop.f32.mrb[0].mxu0
      %v4262 = vadd.f32 %v4191, %v4261
      %4263 = vdwg.mxu0
      %4264 = vmatprep.subr.mxu0 %v3688
      %4265 = vmatpush1.msra.mxu0 %v3687
      %4266 = vmatprep.subr.mxu0 %v3694
      %4267 = vmatpush1.msra.mxu0 %v3693
      %4268 = vmatprep.subr.mxu0 %v3700
      %4269 = vmatpush1.msra.mxu0 %v3699
      %4270 = vmatprep.subr.mxu0 %v3706
      %4271 = vmatpush1.msra.mxu0 %v3705
      %4272 = vmatprep.subr.mxu0 %v3712
      %4273 = vmatpush1.msra.mxu0 %v3711
      %4274 = vmatprep.subr.mxu0 %v3718
      %4275 = vmatpush1.msra.mxu0 %v3717
      %4276 = vmatprep.subr.mxu0 %v3724
      %4277 = vmatpush1.msra.mxu0 %v3723
      %4278 = vmatprep.subr.mxu0 %v3730
      %4279 = vmatpush1.msra.mxu0 %v3729
      %4280 = vmatprep.subr.mxu0 %v3736
      %4281 = vmatpush1.msra.mxu0 %v3735
      %4282 = vmatprep.subr.mxu0 %v3742
      %4283 = vmatpush1.msra.mxu0 %v3741
      %4284 = vmatprep.subr.mxu0 %v3748
      %4285 = vmatpush1.msra.mxu0 %v3747
      %4286 = vmatprep.subr.mxu0 %v3754
      %4287 = vmatpush1.msra.mxu0 %v3753
      %4288 = vmatprep.subr.mxu0 %v3760
      %4289 = vmatpush1.msra.mxu0 %v3759
      %4290 = vmatprep.subr.mxu0 %v3766
      %4291 = vmatpush1.msra.mxu0 %v3765
      %4292 = vmatprep.subr.mxu0 %v3772
      %4293 = vmatpush1.msra.mxu0 %v3771
      %4294 = vmatprep.subr.mxu0 %v3778
      %4295 = vmatpush1.msra.mxu0 %v3777
      %4296 = vmatprep.subr.mxu0 %v3784
      %4297 = vmatpush1.msra.mxu0 %v3783
      %4298 = vmatprep.subr.mxu0 %v3790
      %4299 = vmatpush1.msra.mxu0 %v3789
      %4300 = vmatprep.subr.mxu0 %v3796
      %4301 = vmatpush1.msra.mxu0 %v3795
      %4302 = vmatprep.subr.mxu0 %v3802
      %4303 = vmatpush1.msra.mxu0 %v3801
      %4304 = vmatprep.subr.mxu0 %v3808
      %4305 = vmatpush1.msra.mxu0 %v3807
      %4306 = vmatprep.subr.mxu0 %v3814
      %4307 = vmatpush1.msra.mxu0 %v3813
      %4308 = vmatprep.subr.mxu0 %v3820
      %4309 = vmatpush1.msra.mxu0 %v3819
      %4310 = vmatprep.subr.mxu0 %v3826
      %4311 = vmatpush1.msra.mxu0 %v3825
      %4312 = vmatprep.subr.mxu0 %v3832
      %4313 = vmatpush1.msra.mxu0 %v3831
      %4314 = vmatprep.subr.mxu0 %v3838
      %4315 = vmatpush1.msra.mxu0 %v3837
      %4316 = vmatprep.subr.mxu0 %v3844
      %4317 = vmatpush1.msra.mxu0 %v3843
      %4318 = vmatprep.subr.mxu0 %v3850
      %4319 = vmatpush1.msra.mxu0 %v3849
      %4320 = vmatprep.subr.mxu0 %v3856
      %4321 = vmatpush1.msra.mxu0 %v3855
      %4322 = vmatprep.subr.mxu0 %v3862
      %4323 = vmatpush1.msra.mxu0 %v3861
      %4324 = vmatprep.subr.mxu0 %v3868
      %4325 = vmatpush1.msra.mxu0 %v3867
      %4326 = vmatprep.subr.mxu0 %v3874
      %4327 = vmatpush1.msra.mxu0 %v3873
      %4328 = vmatprep.mubr.f32.mxu0 %v2678
      %4329 = vmatmul.mubr.f32.gmra.mrb[0].mxu0 %v2676
      %v4330 = vpop.f32.mrb[0].mxu0
      %v4331 = vadd.f32 %v4260, %v4330
      %v4332 = vpop.f32.mrb[0].mxu0
      %v4333 = vadd.f32 %v4262, %v4332
      %4334 = vdwg.mxu0
      %4335 = vmatprep.subr.mxu0 %v3306
      %4336 = vmatpush1.msra.mxu0 %v3305
      %4337 = vmatprep.subr.mxu0 %v3312
      %4338 = vmatpush1.msra.mxu0 %v3311
      %4339 = vmatprep.subr.mxu0 %v3318
      %4340 = vmatpush1.msra.mxu0 %v3317
      %4341 = vmatprep.subr.mxu0 %v3324
      %4342 = vmatpush1.msra.mxu0 %v3323
      %4343 = vmatprep.subr.mxu0 %v3330
      %4344 = vmatpush1.msra.mxu0 %v3329
      %4345 = vmatprep.subr.mxu0 %v3336
      %4346 = vmatpush1.msra.mxu0 %v3335
      %4347 = vmatprep.subr.mxu0 %v3342
      %4348 = vmatpush1.msra.mxu0 %v3341
      %4349 = vmatprep.subr.mxu0 %v3348
      %4350 = vmatpush1.msra.mxu0 %v3347
      %4351 = vmatprep.subr.mxu0 %v3354
      %4352 = vmatpush1.msra.mxu0 %v3353
      %4353 = vmatprep.subr.mxu0 %v3360
      %4354 = vmatpush1.msra.mxu0 %v3359
      %4355 = vmatprep.subr.mxu0 %v3366
      %4356 = vmatpush1.msra.mxu0 %v3365
      %4357 = vmatprep.subr.mxu0 %v3372
      %4358 = vmatpush1.msra.mxu0 %v3371
      %4359 = vmatprep.subr.mxu0 %v3378
      %4360 = vmatpush1.msra.mxu0 %v3377
      %4361 = vmatprep.subr.mxu0 %v3384
      %4362 = vmatpush1.msra.mxu0 %v3383
      %4363 = vmatprep.subr.mxu0 %v3390
      %4364 = vmatpush1.msra.mxu0 %v3389
      %4365 = vmatprep.subr.mxu0 %v3396
      %4366 = vmatpush1.msra.mxu0 %v3395
      %4367 = vmatprep.subr.mxu0 %v3402
      %4368 = vmatpush1.msra.mxu0 %v3401
      %4369 = vmatprep.subr.mxu0 %v3408
      %4370 = vmatpush1.msra.mxu0 %v3407
      %4371 = vmatprep.subr.mxu0 %v3414
      %4372 = vmatpush1.msra.mxu0 %v3413
      %4373 = vmatprep.subr.mxu0 %v3420
      %4374 = vmatpush1.msra.mxu0 %v3419
      %4375 = vmatprep.subr.mxu0 %v3426
      %4376 = vmatpush1.msra.mxu0 %v3425
      %4377 = vmatprep.subr.mxu0 %v3432
      %4378 = vmatpush1.msra.mxu0 %v3431
      %4379 = vmatprep.subr.mxu0 %v3438
      %4380 = vmatpush1.msra.mxu0 %v3437
      %4381 = vmatprep.subr.mxu0 %v3444
      %4382 = vmatpush1.msra.mxu0 %v3443
      %4383 = vmatprep.subr.mxu0 %v3450
      %4384 = vmatpush1.msra.mxu0 %v3449
      %4385 = vmatprep.subr.mxu0 %v3456
      %4386 = vmatpush1.msra.mxu0 %v3455
      %4387 = vmatprep.subr.mxu0 %v3462
      %4388 = vmatpush1.msra.mxu0 %v3461
      %4389 = vmatprep.subr.mxu0 %v3468
      %4390 = vmatpush1.msra.mxu0 %v3467
      %4391 = vmatprep.subr.mxu0 %v3474
      %4392 = vmatpush1.msra.mxu0 %v3473
      %4393 = vmatprep.subr.mxu0 %v3480
      %4394 = vmatpush1.msra.mxu0 %v3479
      %4395 = vmatprep.subr.mxu0 %v3486
      %4396 = vmatpush1.msra.mxu0 %v3485
      %4397 = vmatprep.subr.mxu0 %v3492
      %4398 = vmatpush1.msra.mxu0 %v3491
      %4399 = vmatprep.mubr.f32.mxu0 %v2536
      %4400 = vmatmul.mubr.f32.gmra.mrb[0].mxu0 %v2534
      %v4401 = vpop.f32.mrb[0].mxu0
      %v4402 = vadd.f32 %v3898, %v4401
      %v4403 = vpop.f32.mrb[0].mxu0
      %v4404 = vadd.f32 %v3902, %v4403
      %4405 = vdwg.mxu0
      %4406 = vmatprep.subr.mxu0 %v3498
      %4407 = vmatpush1.msra.mxu0 %v3497
      %4408 = vmatprep.subr.mxu0 %v3504
      %4409 = vmatpush1.msra.mxu0 %v3503
      %4410 = vmatprep.subr.mxu0 %v3510
      %4411 = vmatpush1.msra.mxu0 %v3509
      %4412 = vmatprep.subr.mxu0 %v3516
      %4413 = vmatpush1.msra.mxu0 %v3515
      %4414 = vmatprep.subr.mxu0 %v3522
      %4415 = vmatpush1.msra.mxu0 %v3521
      %4416 = vmatprep.subr.mxu0 %v3528
      %4417 = vmatpush1.msra.mxu0 %v3527
      %4418 = vmatprep.subr.mxu0 %v3534
      %4419 = vmatpush1.msra.mxu0 %v3533
      %4420 = vmatprep.subr.mxu0 %v3540
      %4421 = vmatpush1.msra.mxu0 %v3539
      %4422 = vmatprep.subr.mxu0 %v3546
      %4423 = vmatpush1.msra.mxu0 %v3545
      %4424 = vmatprep.subr.mxu0 %v3552
      %4425 = vmatpush1.msra.mxu0 %v3551
      %4426 = vmatprep.subr.mxu0 %v3558
      %4427 = vmatpush1.msra.mxu0 %v3557
      %4428 = vmatprep.subr.mxu0 %v3564
      %4429 = vmatpush1.msra.mxu0 %v3563
      %4430 = vmatprep.subr.mxu0 %v3570
      %4431 = vmatpush1.msra.mxu0 %v3569
      %4432 = vmatprep.subr.mxu0 %v3576
      %4433 = vmatpush1.msra.mxu0 %v3575
      %4434 = vmatprep.subr.mxu0 %v3582
      %4435 = vmatpush1.msra.mxu0 %v3581
      %4436 = vmatprep.subr.mxu0 %v3588
      %4437 = vmatpush1.msra.mxu0 %v3587
      %4438 = vmatprep.subr.mxu0 %v3594
      %4439 = vmatpush1.msra.mxu0 %v3593
      %4440 = vmatprep.subr.mxu0 %v3600
      %4441 = vmatpush1.msra.mxu0 %v3599
      %4442 = vmatprep.subr.mxu0 %v3606
      %4443 = vmatpush1.msra.mxu0 %v3605
      %4444 = vmatprep.subr.mxu0 %v3612
      %4445 = vmatpush1.msra.mxu0 %v3611
      %4446 = vmatprep.subr.mxu0 %v3618
      %4447 = vmatpush1.msra.mxu0 %v3617
      %4448 = vmatprep.subr.mxu0 %v3624
      %4449 = vmatpush1.msra.mxu0 %v3623
      %4450 = vmatprep.subr.mxu0 %v3630
      %4451 = vmatpush1.msra.mxu0 %v3629
      %4452 = vmatprep.subr.mxu0 %v3636
      %4453 = vmatpush1.msra.mxu0 %v3635
      %4454 = vmatprep.subr.mxu0 %v3642
      %4455 = vmatpush1.msra.mxu0 %v3641
      %4456 = vmatprep.subr.mxu0 %v3648
      %4457 = vmatpush1.msra.mxu0 %v3647
      %4458 = vmatprep.subr.mxu0 %v3654
      %4459 = vmatpush1.msra.mxu0 %v3653
      %4460 = vmatprep.subr.mxu0 %v3660
      %4461 = vmatpush1.msra.mxu0 %v3659
      %4462 = vmatprep.subr.mxu0 %v3666
      %4463 = vmatpush1.msra.mxu0 %v3665
      %4464 = vmatprep.subr.mxu0 %v3672
      %4465 = vmatpush1.msra.mxu0 %v3671
      %4466 = vmatprep.subr.mxu0 %v3678
      %4467 = vmatpush1.msra.mxu0 %v3677
      %4468 = vmatprep.subr.mxu0 %v3684
      %4469 = vmatpush1.msra.mxu0 %v3683
      %4470 = vmatprep.mubr.f32.mxu0 %v2607
      %4471 = vmatmul.mubr.f32.gmra.mrb[0].mxu0 %v2605
      %v4472 = vpop.f32.mrb[0].mxu0
      %v4473 = vadd.f32 %v4402, %v4472
      %v4474 = vpop.f32.mrb[0].mxu0
      %v4475 = vadd.f32 %v4404, %v4474
      %4476 = vdwg.mxu0
      %4477 = vmatprep.subr.mxu0 %v3690
      %4478 = vmatpush1.msra.mxu0 %v3689
      %4479 = vmatprep.subr.mxu0 %v3696
      %4480 = vmatpush1.msra.mxu0 %v3695
      %4481 = vmatprep.subr.mxu0 %v3702
      %4482 = vmatpush1.msra.mxu0 %v3701
      %4483 = vmatprep.subr.mxu0 %v3708
      %4484 = vmatpush1.msra.mxu0 %v3707
      %4485 = vmatprep.subr.mxu0 %v3714
      %4486 = vmatpush1.msra.mxu0 %v3713
      %4487 = vmatprep.subr.mxu0 %v3720
      %4488 = vmatpush1.msra.mxu0 %v3719
      %4489 = vmatprep.subr.mxu0 %v3726
      %4490 = vmatpush1.msra.mxu0 %v3725
      %4491 = vmatprep.subr.mxu0 %v3732
      %4492 = vmatpush1.msra.mxu0 %v3731
      %4493 = vmatprep.subr.mxu0 %v3738
      %4494 = vmatpush1.msra.mxu0 %v3737
      %4495 = vmatprep.subr.mxu0 %v3744
      %4496 = vmatpush1.msra.mxu0 %v3743
      %4497 = vmatprep.subr.mxu0 %v3750
      %4498 = vmatpush1.msra.mxu0 %v3749
      %4499 = vmatprep.subr.mxu0 %v3756
      %4500 = vmatpush1.msra.mxu0 %v3755
      %4501 = vmatprep.subr.mxu0 %v3762
      %4502 = vmatpush1.msra.mxu0 %v3761
      %4503 = vmatprep.subr.mxu0 %v3768
      %4504 = vmatpush1.msra.mxu0 %v3767
      %4505 = vmatprep.subr.mxu0 %v3774
      %4506 = vmatpush1.msra.mxu0 %v3773
      %4507 = vmatprep.subr.mxu0 %v3780
      %4508 = vmatpush1.msra.mxu0 %v3779
      %4509 = vmatprep.subr.mxu0 %v3786
      %4510 = vmatpush1.msra.mxu0 %v3785
      %4511 = vmatprep.subr.mxu0 %v3792
      %4512 = vmatpush1.msra.mxu0 %v3791
      %4513 = vmatprep.subr.mxu0 %v3798
      %4514 = vmatpush1.msra.mxu0 %v3797
      %4515 = vmatprep.subr.mxu0 %v3804
      %4516 = vmatpush1.msra.mxu0 %v3803
      %4517 = vmatprep.subr.mxu0 %v3810
      %4518 = vmatpush1.msra.mxu0 %v3809
      %4519 = vmatprep.subr.mxu0 %v3816
      %4520 = vmatpush1.msra.mxu0 %v3815
      %4521 = vmatprep.subr.mxu0 %v3822
      %4522 = vmatpush1.msra.mxu0 %v3821
      %4523 = vmatprep.subr.mxu0 %v3828
      %4524 = vmatpush1.msra.mxu0 %v3827
      %4525 = vmatprep.subr.mxu0 %v3834
      %4526 = vmatpush1.msra.mxu0 %v3833
      %4527 = vmatprep.subr.mxu0 %v3840
      %4528 = vmatpush1.msra.mxu0 %v3839
      %4529 = vmatprep.subr.mxu0 %v3846
      %4530 = vmatpush1.msra.mxu0 %v3845
      %4531 = vmatprep.subr.mxu0 %v3852
      %4532 = vmatpush1.msra.mxu0 %v3851
      %4533 = vmatprep.subr.mxu0 %v3858
      %4534 = vmatpush1.msra.mxu0 %v3857
      %4535 = vmatprep.subr.mxu0 %v3864
      %4536 = vmatpush1.msra.mxu0 %v3863
      %4537 = vmatprep.subr.mxu0 %v3870
      %4538 = vmatpush1.msra.mxu0 %v3869
      %4539 = vmatprep.subr.mxu0 %v3876
      %4540 = vmatpush1.msra.mxu0 %v3875
      %4541 = vmatprep.mubr.f32.mxu0 %v2678
      %4542 = vmatmul.mubr.f32.gmra.mrb[0].mxu0 %v2676
      %v4543 = vpop.f32.mrb[0].mxu0
      %v4544 = vadd.f32 %v4473, %v4543
      %v4545 = vpop.f32.mrb[0].mxu0
      %v4546 = vadd.f32 %v4475, %v4545
      %4547 = vdwg.mxu0
      %v4554 = vcombine.low %v4118, %v4120
      %v4555 = vcombine.low %v4331, %v4333
      %v4557 = vunpack.c.l.s4 1983009808
      %v4558 = vunpack.c.0.s8 %v4557
      %v4559 = vlaneseq
      %v4560 = vshrl.u32 %v4559, 7
      %v4561 = vsub.s32 %v4558, %v4560
      %v4562 = vrot.slane %v4554, %v4561
      %v4564 = vunpack.c.l.s4 1983009808
      %v4565 = vunpack.c.0.s8 %v4564
      %v4566 = vlaneseq
      %v4567 = vshrl.u32 %v4566, 7
      %v4568 = vsub.s32 %v4565, %v4567
      %v4569 = vrot.slane %v4555, %v4568
      %v4570 = vcombine.low %v4562, %v4569
      %v4571 = vcombine.low %v4544, %v4546
      %v4573 = vunpack.c.l.s4 1983009808
      %v4574 = vunpack.c.0.s8 %v4573
      %v4575 = vlaneseq
      %v4576 = vshrl.u32 %v4575, 7
      %v4577 = vsub.s32 %v4574, %v4576
      %v4578 = vrot.slane %v4571, %v4577
      %4581 = vst [vmem:[%s348] sm:$0xff] %v4570
      %4582 = vst [vmem:[%s348 + $0x8] sm:$0xf] %v4578
      %s4583 = smul.u32 6, %s21
      %p4584 = scmp.lt.s32.totalorder %s4583, 11
      %s4585 = scalar_select %p4584, %s4583, 11
      %s4586 = smul.addr %s4585, 2
      %s4587 = scalar_lea.vmem %s8, %s4586
      %s4588 = smul.u32 6, %s21
      %p4589 = scmp.lt.s32.totalorder %s4588, 11
      %s4590 = scalar_select %p4589, %s4588, 11
      %s4591 = smul.addr %s4590, 2
      %s4592 = scalar_lea.vmem %s9, %s4591
      // Predicated region
      $region57: #{_lambda_.1} parent=51 // pred_check
        %p4593 = pneg %p212
      $region58: #{_lambda_.1} parent=51 // pred_check_branch
        %4595 = sbr.rel (%p4593) target = $region60
      $region59: #{_lambda_.1} parent=51 // pred_region
        %s4596 = smul.u32 6, %s21
      $region60: #{_lambda_.1} parent=51 // pred_fallthru
        _
      // Predicated region
      $region61: #{_lambda_.1} parent=51 // pred_check
        %p4597 = pneg %p238
      $region62: #{_lambda_.1} parent=51 // pred_check_branch
        %4599 = sbr.rel (%p4597) target = $region64
      $region63: #{_lambda_.1} parent=51 // pred_region
        %s4600 = smul.u32 6, %s21
      $region64: #{_lambda_.1} parent=51 // pred_fallthru
        _
    $region52: #{_lambda_.1} parent=5 // pred_fallthru
      _
    %p4601 = scmp.le.s32.totalorder 2, %s16
    // Predicated region
    $region65: #{_lambda_.1} parent=5 // pred_check
      %p4602 = pneg %p4601
    $region66: #{_lambda_.1} parent=5 // pred_check_branch
      %4604 = sbr.rel (%p4602) target = $region68
    $region67: #{_lambda_.1} parent=5 // pred_region
      %s4605 = ssub.s32 %s16, 2
      // Predicated region
      $region69: #{_lambda_.1} parent=67 // pred_check
        %p4606 = pneg %p218
      $region70: #{_lambda_.1} parent=67 // pred_check_branch
        %4608 = sbr.rel (%p4606) target = $region72
      $region71: #{_lambda_.1} parent=67 // pred_region
        %s4609 = smul.u32 6, %s22
        %p4610 = scmp.lt.s32.totalorder %s4609, 11
        %s4611 = scalar_select %p4610, %s4609, 11
        %s4612 = smul.addr %s4611, 2
        %s4613 = scalar_lea.vmem %s8, %s4612
      $region72: #{_lambda_.1} parent=67 // pred_fallthru
        _
      // Predicated region
      $region73: #{_lambda_.1} parent=67 // pred_check
        %p4614 = pneg %p244
      $region74: #{_lambda_.1} parent=67 // pred_check_branch
        %4616 = sbr.rel (%p4614) target = $region76
      $region75: #{_lambda_.1} parent=67 // pred_region
        %s4617 = smul.u32 6, %s22
        %p4618 = scmp.lt.s32.totalorder %s4617, 11
        %s4619 = scalar_select %p4618, %s4617, 11
        %s4620 = smul.addr %s4619, 2
        %s4621 = scalar_lea.vmem %s9, %s4620
      $region76: #{_lambda_.1} parent=67 // pred_fallthru
        _
    $region68: #{_lambda_.1} parent=5 // pred_fallthru
      _
  $region6: #{_lambda_.1} parent=0 // loop_footer
    %s20 = sadd.s32 1, %s16
  $region7: #{_lambda_.1} parent=0 // loop_footer_branch
    %15 = sbr.rel target = $region3
  $region8: #{_lambda_.1} parent=0 // loop_exit
    _

</llo_original>
